<compile_context>
chip_gen: v6e
topology: v6e:2x2x1
jax: 0.10.0
libtpu: 0.0.40
codegen_flags: <defaults>
</compile_context>

<pallas_src>
import functools

import numpy as np
import jax
import jax.numpy as jnp
from jax import lax
from jax.experimental import pallas as pl
from jax.experimental.pallas import tpu as pltpu

_BN_EPS = 1e-5


# ----------------------------------------------------------------------------
# Compiler params: batch axis is fully parallel (megacore / v7x 2-TC sharding).
# ----------------------------------------------------------------------------
def _compiler_params():
    return pltpu.CompilerParams(dimension_semantics=("parallel",))


# ----------------------------------------------------------------------------
# Trace-time constants (built with numpy, folded into the jitted graph)
# ----------------------------------------------------------------------------
def _boundary_masks(h, w):
    """(9, h*w) {0,1} masks: mask[k, p] == 1 iff tap k of pixel p is in-bounds.

    In the channels-major flat layout a 3x3 tap is a lane roll by dy*w+dx; the
    mask zeroes the lanes whose roll wrapped across a row or image boundary,
    which is exactly the conv's 'SAME' zero padding (so no padded copy of the
    input is ever materialized, neither in HBM nor in VMEM).
    """
    p = np.arange(h * w)
    y, x = p // w, p % w
    rows = []
    for dy in (-1, 0, 1):
        for dx in (-1, 0, 1):
            ok = (y + dy >= 0) & (y + dy < h) & (x + dx >= 0) & (x + dx < w)
            rows.append(ok.astype(np.float32))
    return jnp.asarray(np.stack(rows, axis=0))


def _pool_select_matrix(h, w):
    """(h*w, (h//2)*(w//2)) 0/1 matrix selecting the top-left lane of every 2x2
    window; decimates the window-max image with one small MXU matmul."""
    hp, wp = h // 2, w // 2
    s = np.zeros((h * w, hp * wp), np.float32)
    for r in range(hp * wp):
        yy, xx = r // wp, r % wp
        s[(2 * yy) * w + 2 * xx, r] = 1.0
    return jnp.asarray(s)


# ----------------------------------------------------------------------------
# Pallas kernels
# ----------------------------------------------------------------------------
def _conv3x3_cm(x, w_ref, m_ref, *, width, cout):
    """3x3 'SAME' conv in channels-major flat layout.

    x      : (cin, h*w) f32 value
    w_ref  : (9, cout, cin) weight ref (matmul dtype)
    m_ref  : (9, h*w) f32 boundary-mask ref
    returns: (cout, h*w) f32
    Each tap: static lane roll (XLU) + mask multiply (VPU) + small MXU matmul
    accumulated in f32 -- no im2col scratch, no padded copy, no masked stores.
    """
    hw = x.shape[-1]
    acc = jnp.zeros((cout, hw), jnp.float32)
    for dy in (-1, 0, 1):
        for dx in (-1, 0, 1):
            k = (dy + 1) * 3 + (dx + 1)
            s = dy * width + dx
            if s == 0:
                t = x
            else:
                t = pltpu.roll(x, shift=(-s) % hw, axis=1)
                t = t * m_ref[k:k + 1, :]          # zero wrapped boundary lanes
            acc = acc + jnp.dot(w_ref[k], t.astype(w_ref.dtype),
                                preferred_element_type=jnp.float32)
    return acc


def _conv_stats_kernel(x_ref, w_ref, m_ref, y_ref, st_ref, *, width, cout):
    """Stage 1: conv1 (channels-major flat) + per-image partial BN stats.

    x_ref : (1, cin, h*w)   input image, channels-major flat
    w_ref : (9, cout, cin)  conv1 weights, one (cout, cin) matrix per tap
    m_ref : (9, h*w)        boundary masks
    y_ref : (1, cout, h*w)  conv1 output (pre-BN), lane-dense store
    st_ref: (1, cout, 2)    per-image [sum, sum-of-squares] over pixels
    """
    acc = _conv3x3_cm(x_ref[0].astype(jnp.float32), w_ref, m_ref,
                      width=width, cout=cout)
    # Conv bias skipped: a per-channel constant cancels exactly inside BN.
    st_ref[0, :, 0:1] = jnp.sum(acc, axis=1, keepdims=True)
    st_ref[0, :, 1:2] = jnp.sum(acc * acc, axis=1, keepdims=True)
    y_ref[0] = acc.astype(y_ref.dtype)


def _bn_prelu_conv_stats_kernel(y_ref, sc_ref, sh_ref, a_ref, w_ref, m_ref,
                                o_ref, st_ref, *, width, cout):
    """Stage 2 (fused): BN1-apply + PReLU1 (+ Dropout p=0 identity) + conv2
    + per-image partial BN stats.  All elementwise math in f32."""
    z = y_ref[0].astype(jnp.float32) * sc_ref[0] + sh_ref[0]   # BN affine
    z = jnp.where(z > 0, z, z * a_ref[0])                      # PReLU (SMEM alpha)
    acc = _conv3x3_cm(z, w_ref, m_ref, width=width, cout=cout)
    st_ref[0, :, 0:1] = jnp.sum(acc, axis=1, keepdims=True)
    st_ref[0, :, 1:2] = jnp.sum(acc * acc, axis=1, keepdims=True)
    o_ref[0] = acc.astype(o_ref.dtype)


def _bn_prelu_pool_kernel(y_ref, sc_ref, sh_ref, a_ref, s_ref, o_ref, od_ref,
                          *, h, w):
    """Stage 3 (fused): BN2-apply + PReLU2 + 2x2/stride-2 max-pool."""
    hw = h * w
    z = y_ref[0].astype(jnp.float32) * sc_ref[0] + sh_ref[0]
    z = jnp.where(z > 0, z, z * a_ref[0])
    o_ref[0] = z.astype(o_ref.dtype)                           # lane-dense store
    # Relayout-free pooling: lane rolls build the 2x2 window max at every
    # pixel, a 0/1 selection matmul (exact pass-through) decimates to the
    # pooled grid.  No strided slices or lane-splitting reshapes.
    m1 = jnp.maximum(z, pltpu.roll(z, shift=hw - 1, axis=1))    # + right nbr
    m2 = jnp.maximum(m1, pltpu.roll(m1, shift=hw - w, axis=1))  # + row below
    od_ref[0] = jnp.dot(m2, s_ref[...],
                        preferred_element_type=jnp.float32).astype(od_ref.dtype)


def _bn_prelu_kernel(y_ref, sc_ref, sh_ref, a_ref, o_ref):
    """BN-apply + PReLU only (downsample=False path)."""
    z = y_ref[0].astype(jnp.float32) * sc_ref[0] + sh_ref[0]
    o_ref[0] = jnp.where(z > 0, z, z * a_ref[0]).astype(o_ref.dtype)


# ----------------------------------------------------------------------------
# pallas_call wrappers
# ----------------------------------------------------------------------------
def _conv_stats(x_cm, w_cm, masks, h, w, interstage_dtype):
    n, cin, hw = x_cm.shape
    cout = w_cm.shape[1]
    kern = functools.partial(_conv_stats_kernel, width=w, cout=cout)
    return pl.pallas_call(
        kern,
        grid=(n,),
        in_specs=[
            pl.BlockSpec((1, cin, hw), lambda i: (i, 0, 0)),
            pl.BlockSpec((9, cout, cin), lambda i: (0, 0, 0)),
            pl.BlockSpec((9, hw), lambda i: (0, 0)),
        ],
        out_specs=[
            pl.BlockSpec((1, cout, hw), lambda i: (i, 0, 0)),
            pl.BlockSpec((1, cout, 2), lambda i: (i, 0, 0)),
        ],
        out_shape=[
            jax.ShapeDtypeStruct((n, cout, hw), interstage_dtype),
            jax.ShapeDtypeStruct((n, cout, 2), jnp.float32),
        ],
        compiler_params=_compiler_params(),
    )(x_cm, w_cm, masks)


def _bn_prelu_conv_stats(y1, scale, shift, alpha, w_cm, masks, h, w,
                         interstage_dtype):
    n, c, hw = y1.shape
    cout = w_cm.shape[1]
    kern = functools.partial(_bn_prelu_conv_stats_kernel, width=w, cout=cout)
    return pl.pallas_call(
        kern,
        grid=(n,),
        in_specs=[
            pl.BlockSpec((1, c, hw), lambda i: (i, 0, 0)),
            pl.BlockSpec((1, c, 1), lambda i: (0, 0, 0)),
            pl.BlockSpec((1, c, 1), lambda i: (0, 0, 0)),
            pl.BlockSpec(memory_space=pltpu.MemorySpace.SMEM),   # PReLU alpha
            pl.BlockSpec((9, cout, c), lambda i: (0, 0, 0)),
            pl.BlockSpec((9, hw), lambda i: (0, 0)),
        ],
        out_specs=[
            pl.BlockSpec((1, cout, hw), lambda i: (i, 0, 0)),
            pl.BlockSpec((1, cout, 2), lambda i: (i, 0, 0)),
        ],
        out_shape=[
            jax.ShapeDtypeStruct((n, cout, hw), interstage_dtype),
            jax.ShapeDtypeStruct((n, cout, 2), jnp.float32),
        ],
        compiler_params=_compiler_params(),
    )(y1, scale, shift, alpha, w_cm, masks)


def _bn_prelu_maxpool(y2, scale, shift, alpha, sel, h, w, downsample):
    n, c, hw = y2.shape
    common_in = [
        pl.BlockSpec((1, c, hw), lambda i: (i, 0, 0)),
        pl.BlockSpec((1, c, 1), lambda i: (0, 0, 0)),
        pl.BlockSpec((1, c, 1), lambda i: (0, 0, 0)),
        pl.BlockSpec(memory_space=pltpu.MemorySpace.SMEM),       # PReLU alpha
    ]
    if not downsample:
        out = pl.pallas_call(
            _bn_prelu_kernel,
            grid=(n,),
            in_specs=common_in,
            out_specs=pl.BlockSpec((1, c, hw), lambda i: (i, 0, 0)),
            out_shape=jax.ShapeDtypeStruct((n, c, hw), jnp.float32),
            compiler_params=_compiler_params(),
        )(y2, scale, shift, alpha)
        return out, None
    hp, wp = h // 2, w // 2
    kern = functools.partial(_bn_prelu_pool_kernel, h=h, w=w)
    out, out_d = pl.pallas_call(
        kern,
        grid=(n,),
        in_specs=common_in + [pl.BlockSpec((hw, hp * wp), lambda i: (0, 0))],
        out_specs=[
            pl.BlockSpec((1, c, hw), lambda i: (i, 0, 0)),
            pl.BlockSpec((1, c, hp * wp), lambda i: (i, 0, 0)),
        ],
        out_shape=[
            jax.ShapeDtypeStruct((n, c, hw), jnp.float32),
            jax.ShapeDtypeStruct((n, c, hp * wp), jnp.float32),
        ],
        compiler_params=_compiler_params(),
    )(y2, scale, shift, alpha, sel)
    return out, out_d


def _bn_fold(stats, count, gamma, beta):
    """Finish the two-pass BatchNorm: partial [sum, sumsq] -> (scale, shift)."""
    s = jnp.sum(stats[:, :, 0], axis=0)
    ss = jnp.sum(stats[:, :, 1], axis=0)
    mean = s / count
    var = jnp.maximum(ss / count - mean * mean, 0.0)   # biased variance (train BN)
    scale = gamma * lax.rsqrt(var + _BN_EPS)
    shift = beta - mean * scale
    c = scale.shape[0]
    return scale.reshape(1, c, 1), shift.reshape(1, c, 1)


# ----------------------------------------------------------------------------
# Parameters and forward pass
# ----------------------------------------------------------------------------
def init_down_block_params(key, in_channels, out_channels):
    ks = jax.random.split(key, 8)
    return {
        "w1": 0.1 * jax.random.normal(ks[0], (3, 3, in_channels, out_channels), jnp.float32),
        "b1": 0.05 * jax.random.normal(ks[1], (out_channels,), jnp.float32),
        "g1": 1.0 + 0.1 * jax.random.normal(ks[2], (out_channels,), jnp.float32),
        "be1": 0.05 * jax.random.normal(ks[3], (out_channels,), jnp.float32),
        "a1": jnp.full((1,), 0.25, jnp.float32),        # nn.PReLU() default
        "w2": 0.1 * jax.random.normal(ks[4], (3, 3, out_channels, out_channels), jnp.float32),
        "b2": 0.05 * jax.random.normal(ks[5], (out_channels,), jnp.float32),
        "g2": 1.0 + 0.1 * jax.random.normal(ks[6], (out_channels,), jnp.float32),
        "be2": 0.05 * jax.random.normal(ks[7], (out_channels,), jnp.float32),
        "a2": jnp.full((1,), 0.25, jnp.float32),
    }


def down_block_forward(x_nchw, params, downsample=True,
                       matmul_dtype=jnp.bfloat16,
                       interstage_dtype=jnp.bfloat16):
    """DownBlock.forward for dim=2.  Input NCHW (or NCDHW, folded as in the
    PyTorch code).  Returns (output, output_d) in NCHW (or NCDHW), float32.

    matmul_dtype     : conv matmul operand dtype (bf16 default, MXU-native).
    interstage_dtype : dtype of the y1/y2 HBM round trips (bf16 default halves
                       inter-stage bandwidth).  BN stats, BN/PReLU math and the
                       returned tensors are always float32.
    Pass float32 for both to get tight numerical parity with the reference.
    """
    x_shape = list(x_nchw.shape)
    five_d = len(x_shape) == 5
    if five_d:
        n5, c5, d5, h5, w5 = x_shape
        x_nchw = jnp.transpose(x_nchw, (0, 2, 1, 3, 4)).reshape(n5 * d5, c5, h5, w5)

    n, cin, h, w = x_nchw.shape
    hw = h * w
    cout = params["w1"].shape[-1]
    count = jnp.float32(n * hw)

    # Channels-major flat layout (c, h*w): NCHW <-> kernel layout is a free
    # reshape, and (for h*w a multiple of 128) every load/store is lane-dense.
    x_cm = x_nchw.reshape(n, cin, hw).astype(jnp.float32)

    masks = _boundary_masks(h, w)
    w1_cm = jnp.transpose(params["w1"].reshape(9, cin, cout), (0, 2, 1)).astype(matmul_dtype)
    w2_cm = jnp.transpose(params["w2"].reshape(9, cout, cout), (0, 2, 1)).astype(matmul_dtype)
    a1 = params["a1"].reshape(1).astype(jnp.float32)
    a2 = params["a2"].reshape(1).astype(jnp.float32)

    # Stage 1: conv1 + partial BN stats (conv bias cancels inside BatchNorm).
    y1, st1 = _conv_stats(x_cm, w1_cm, masks, h, w, interstage_dtype)
    sc1, sh1 = _bn_fold(st1, count, params["g1"], params["be1"])

    # Stage 2: BN1 + PReLU1 + Dropout(0) + conv2 + partial BN stats (fused).
    y2, st2 = _bn_prelu_conv_stats(y1, sc1, sh1, a1, w2_cm, masks, h, w,
                                   interstage_dtype)
    sc2, sh2 = _bn_fold(st2, count, params["g2"], params["be2"])

    # Stage 3: BN2 + PReLU2 (+ fused 2x2 max-pool).
    sel = _pool_select_matrix(h, w) if downsample else None
    out_cm, outd_cm = _bn_prelu_maxpool(y2, sc2, sh2, a2, sel, h, w, downsample)

    output = out_cm.reshape(n, cout, h, w)                  # free reshape (NCHW)
    output_d = None
    if downsample:
        output_d = outd_cm.reshape(n, cout, h // 2, w // 2)

    if five_d:
        output = jnp.transpose(output.reshape(n5, d5, *output.shape[1:]),
                               (0, 2, 1, 3, 4))
        if downsample:
            output_d = jnp.transpose(output_d.reshape(n5, d5, *output_d.shape[1:]),
                                     (0, 2, 1, 3, 4))
    return output, output_d


# ----------------------------------------------------------------------------
# Pure-JAX reference (sanity check of the kernel math)
# ----------------------------------------------------------------------------
def _ref_block(x_nhwc, w, b, g, be, a):
    y = lax.conv_general_dilated(
        x_nhwc, w, window_strides=(1, 1), padding="SAME",
        dimension_numbers=("NHWC", "HWIO", "NHWC")) + b
    m = jnp.mean(y, axis=(0, 1, 2), keepdims=True)
    v = jnp.mean(jnp.square(y - m), axis=(0, 1, 2), keepdims=True)
    z = (y - m) * lax.rsqrt(v + _BN_EPS) * g + be
    return jnp.where(z > 0, z, z * a[0])


def ref_down_block(x_nchw, p):
    x = jnp.transpose(x_nchw, (0, 2, 3, 1))
    h = _ref_block(x, p["w1"], p["b1"], p["g1"], p["be1"], p["a1"])
    h = _ref_block(h, p["w2"], p["b2"], p["g2"], p["be2"], p["a2"])
    out = jnp.transpose(h, (0, 3, 1, 2))
    hd = lax.reduce_window(h, -jnp.inf, lax.max,
                           (1, 2, 2, 1), (1, 2, 2, 1), "VALID")
    out_d = jnp.transpose(hd, (0, 3, 1, 2))
    return out, out_d


# ----------------------------------------------------------------------------
if __name__ == "__main__":
    key = jax.random.PRNGKey(0)
    k_x, k_p = jax.random.split(key)

    N, Cin, H, W = 2, 4, 16, 16
    Cout = 8
    x = jax.random.normal(k_x, (N, Cin, H, W), jnp.float32)   # NCHW like PyTorch
    params = init_down_block_params(k_p, Cin, Cout)

    ref_out, ref_out_d = ref_down_block(x, params)
    ref_out = jax.block_until_ready(ref_out)
    ref_out_d = jax.block_until_ready(ref_out_d)

    # Full-precision config: verifies the kernel math against the reference.
    fwd32 = jax.jit(functools.partial(down_block_forward, downsample=True,
                                      matmul_dtype=jnp.float32,
                                      interstage_dtype=jnp.float32))
    out32, outd32 = fwd32(x, params)
    jax.block_until_ready((out32, outd32))
    assert out32.shape == (N, Cout, H, W), out32.shape
    assert outd32.shape == (N, Cout, H // 2, W // 2), outd32.shape
    assert np.allclose(np.asarray(out32), np.asarray(ref_out), atol=1e-2, rtol=1e-2)
    assert np.allclose(np.asarray(outd32), np.asarray(ref_out_d), atol=1e-2, rtol=1e-2)

    # Default (perf) config: bf16 matmul operands + bf16 inter-stage activations.
    fwd = jax.jit(functools.partial(down_block_forward, downsample=True))
    out, out_d = fwd(x, params)
    jax.block_until_ready((out, out_d))
    assert out.shape == (N, Cout, H, W), out.shape
    assert out_d.shape == (N, Cout, H // 2, W // 2), out_d.shape
    assert np.allclose(np.asarray(out), np.asarray(ref_out), atol=5e-2, rtol=5e-2)
    assert np.allclose(np.asarray(out_d), np.asarray(ref_out_d), atol=5e-2, rtol=5e-2)

    print("KERNEL_OK")
</pallas_src>

<mosaic_0001>
module attributes {stable_mosaic.version = 11 : i64} {
  func.func @_conv_stats_kernel(%arg0: i32, %arg1: memref<1x4x256xf32, #tpu.memory_space<vmem>>, %arg2: memref<9x8x4xf32, #tpu.memory_space<vmem>>, %arg3: memref<9x256xf32, #tpu.memory_space<vmem>>, %arg4: memref<1x8x256xf32, #tpu.memory_space<vmem>>, %arg5: memref<1x8x2xf32, #tpu.memory_space<vmem>>) attributes {dimension_semantics = [#tpu.dimension_semantics<parallel>], iteration_bounds = array<i64: 2>, scalar_prefetch = 0 : i64, scratch_operands = 0 : i64, tpu.core_type = #tpu.core_type<tc>, window_params = [{transform_indices = @transform_0, window_bounds = array<i64: 1, 4, 256>}, {pipeline_mode = #tpu.pipeline_mode<synchronous>, transform_indices = @transform_1, window_bounds = array<i64: 9, 8, 4>}, {pipeline_mode = #tpu.pipeline_mode<synchronous>, transform_indices = @transform_2, window_bounds = array<i64: 9, 256>}, {transform_indices = @transform_3, window_bounds = array<i64: 1, 8, 256>}, {transform_indices = @transform_4, window_bounds = array<i64: 1, 8, 2>}]} {
    %c0 = arith.constant 0 : index
    %c0_0 = arith.constant 0 : index
    %c0_1 = arith.constant 0 : index
    %0 = vector.load %arg1[%c0, %c0_0, %c0_1] : memref<1x4x256xf32, #tpu.memory_space<vmem>>, vector<1x4x256xf32>
    %1 = vector.shape_cast %0 : vector<1x4x256xf32> to vector<4x256xf32>
    %cst = arith.constant 0.000000e+00 : f32
    %2 = vector.broadcast %cst : f32 to vector<8x256xf32>
    %c17_i32 = arith.constant 17 : i32
    %3 = tpu.dynamic_rotate %1 by %c17_i32 dim 1 : vector<4x256xf32>, i32 -> vector<4x256xf32>
    %c0_2 = arith.constant 0 : index
    %c0_3 = arith.constant 0 : index
    %4 = vector.load %arg3[%c0_2, %c0_3] : memref<9x256xf32, #tpu.memory_space<vmem>>, vector<1x256xf32>
    %5 = vector.broadcast %4 : vector<1x256xf32> to vector<4x256xf32>
    %6 = arith.mulf %3, %5 : vector<4x256xf32>
    %c0_4 = arith.constant 0 : index
    %c0_5 = arith.constant 0 : index
    %c0_6 = arith.constant 0 : index
    %7 = vector.load %arg2[%c0_4, %c0_5, %c0_6] : memref<9x8x4xf32, #tpu.memory_space<vmem>>, vector<1x8x4xf32>
    %8 = vector.shape_cast %7 : vector<1x8x4xf32> to vector<8x4xf32>
    %cst_7 = arith.constant dense<0.000000e+00> : vector<8x256xf32>
    %9 = tpu.matmul %8, %6, %cst_7 {dimension_numbers = #tpu.dot_dimension_numbers<[1], [0], [0], [1], [0, 0, 1, 1], [], []>} : vector<8x4xf32>, vector<4x256xf32>, vector<8x256xf32> -> vector<8x256xf32>
    %10 = arith.addf %2, %9 : vector<8x256xf32>
    %c16_i32 = arith.constant 16 : i32
    %11 = tpu.dynamic_rotate %1 by %c16_i32 dim 1 : vector<4x256xf32>, i32 -> vector<4x256xf32>
    %c1 = arith.constant 1 : index
    %c0_8 = arith.constant 0 : index
    %12 = vector.load %arg3[%c1, %c0_8] : memref<9x256xf32, #tpu.memory_space<vmem>>, vector<1x256xf32>
    %13 = vector.broadcast %12 : vector<1x256xf32> to vector<4x256xf32>
    %14 = arith.mulf %11, %13 : vector<4x256xf32>
    %c1_9 = arith.constant 1 : index
    %c0_10 = arith.constant 0 : index
    %c0_11 = arith.constant 0 : index
    %15 = vector.load %arg2[%c1_9, %c0_10, %c0_11] : memref<9x8x4xf32, #tpu.memory_space<vmem>>, vector<1x8x4xf32>
    %16 = vector.shape_cast %15 : vector<1x8x4xf32> to vector<8x4xf32>
    %cst_12 = arith.constant dense<0.000000e+00> : vector<8x256xf32>
    %17 = tpu.matmul %16, %14, %cst_12 {dimension_numbers = #tpu.dot_dimension_numbers<[1], [0], [0], [1], [0, 0, 1, 1], [], []>} : vector<8x4xf32>, vector<4x256xf32>, vector<8x256xf32> -> vector<8x256xf32>
    %18 = arith.addf %10, %17 : vector<8x256xf32>
    %c15_i32 = arith.constant 15 : i32
    %19 = tpu.dynamic_rotate %1 by %c15_i32 dim 1 : vector<4x256xf32>, i32 -> vector<4x256xf32>
    %c2 = arith.constant 2 : index
    %c0_13 = arith.constant 0 : index
    %20 = vector.load %arg3[%c2, %c0_13] : memref<9x256xf32, #tpu.memory_space<vmem>>, vector<1x256xf32>
    %21 = vector.broadcast %20 : vector<1x256xf32> to vector<4x256xf32>
    %22 = arith.mulf %19, %21 : vector<4x256xf32>
    %c2_14 = arith.constant 2 : index
    %c0_15 = arith.constant 0 : index
    %c0_16 = arith.constant 0 : index
    %23 = vector.load %arg2[%c2_14, %c0_15, %c0_16] : memref<9x8x4xf32, #tpu.memory_space<vmem>>, vector<1x8x4xf32>
    %24 = vector.shape_cast %23 : vector<1x8x4xf32> to vector<8x4xf32>
    %cst_17 = arith.constant dense<0.000000e+00> : vector<8x256xf32>
    %25 = tpu.matmul %24, %22, %cst_17 {dimension_numbers = #tpu.dot_dimension_numbers<[1], [0], [0], [1], [0, 0, 1, 1], [], []>} : vector<8x4xf32>, vector<4x256xf32>, vector<8x256xf32> -> vector<8x256xf32>
    %26 = arith.addf %18, %25 : vector<8x256xf32>
    %c1_i32 = arith.constant 1 : i32
    %27 = tpu.dynamic_rotate %1 by %c1_i32 dim 1 : vector<4x256xf32>, i32 -> vector<4x256xf32>
    %c3 = arith.constant 3 : index
    %c0_18 = arith.constant 0 : index
    %28 = vector.load %arg3[%c3, %c0_18] : memref<9x256xf32, #tpu.memory_space<vmem>>, vector<1x256xf32>
    %29 = vector.broadcast %28 : vector<1x256xf32> to vector<4x256xf32>
    %30 = arith.mulf %27, %29 : vector<4x256xf32>
    %c3_19 = arith.constant 3 : index
    %c0_20 = arith.constant 0 : index
    %c0_21 = arith.constant 0 : index
    %31 = vector.load %arg2[%c3_19, %c0_20, %c0_21] : memref<9x8x4xf32, #tpu.memory_space<vmem>>, vector<1x8x4xf32>
    %32 = vector.shape_cast %31 : vector<1x8x4xf32> to vector<8x4xf32>
    %cst_22 = arith.constant dense<0.000000e+00> : vector<8x256xf32>
    %33 = tpu.matmul %32, %30, %cst_22 {dimension_numbers = #tpu.dot_dimension_numbers<[1], [0], [0], [1], [0, 0, 1, 1], [], []>} : vector<8x4xf32>, vector<4x256xf32>, vector<8x256xf32> -> vector<8x256xf32>
    %34 = arith.addf %26, %33 : vector<8x256xf32>
    %c4 = arith.constant 4 : index
    %c0_23 = arith.constant 0 : index
    %c0_24 = arith.constant 0 : index
    %35 = vector.load %arg2[%c4, %c0_23, %c0_24] : memref<9x8x4xf32, #tpu.memory_space<vmem>>, vector<1x8x4xf32>
    %36 = vector.shape_cast %35 : vector<1x8x4xf32> to vector<8x4xf32>
    %cst_25 = arith.constant dense<0.000000e+00> : vector<8x256xf32>
    %37 = tpu.matmul %36, %1, %cst_25 {dimension_numbers = #tpu.dot_dimension_numbers<[1], [0], [0], [1], [0, 0, 1, 1], [], []>} : vector<8x4xf32>, vector<4x256xf32>, vector<8x256xf32> -> vector<8x256xf32>
    %38 = arith.addf %34, %37 : vector<8x256xf32>
    %c255_i32 = arith.constant 255 : i32
    %39 = tpu.dynamic_rotate %1 by %c255_i32 dim 1 : vector<4x256xf32>, i32 -> vector<4x256xf32>
    %c5 = arith.constant 5 : index
    %c0_26 = arith.constant 0 : index
    %40 = vector.load %arg3[%c5, %c0_26] : memref<9x256xf32, #tpu.memory_space<vmem>>, vector<1x256xf32>
    %41 = vector.broadcast %40 : vector<1x256xf32> to vector<4x256xf32>
    %42 = arith.mulf %39, %41 : vector<4x256xf32>
    %c5_27 = arith.constant 5 : index
    %c0_28 = arith.constant 0 : index
    %c0_29 = arith.constant 0 : index
    %43 = vector.load %arg2[%c5_27, %c0_28, %c0_29] : memref<9x8x4xf32, #tpu.memory_space<vmem>>, vector<1x8x4xf32>
    %44 = vector.shape_cast %43 : vector<1x8x4xf32> to vector<8x4xf32>
    %cst_30 = arith.constant dense<0.000000e+00> : vector<8x256xf32>
    %45 = tpu.matmul %44, %42, %cst_30 {dimension_numbers = #tpu.dot_dimension_numbers<[1], [0], [0], [1], [0, 0, 1, 1], [], []>} : vector<8x4xf32>, vector<4x256xf32>, vector<8x256xf32> -> vector<8x256xf32>
    %46 = arith.addf %38, %45 : vector<8x256xf32>
    %c241_i32 = arith.constant 241 : i32
    %47 = tpu.dynamic_rotate %1 by %c241_i32 dim 1 : vector<4x256xf32>, i32 -> vector<4x256xf32>
    %c6 = arith.constant 6 : index
    %c0_31 = arith.constant 0 : index
    %48 = vector.load %arg3[%c6, %c0_31] : memref<9x256xf32, #tpu.memory_space<vmem>>, vector<1x256xf32>
    %49 = vector.broadcast %48 : vector<1x256xf32> to vector<4x256xf32>
    %50 = arith.mulf %47, %49 : vector<4x256xf32>
    %c6_32 = arith.constant 6 : index
    %c0_33 = arith.constant 0 : index
    %c0_34 = arith.constant 0 : index
    %51 = vector.load %arg2[%c6_32, %c0_33, %c0_34] : memref<9x8x4xf32, #tpu.memory_space<vmem>>, vector<1x8x4xf32>
    %52 = vector.shape_cast %51 : vector<1x8x4xf32> to vector<8x4xf32>
    %cst_35 = arith.constant dense<0.000000e+00> : vector<8x256xf32>
    %53 = tpu.matmul %52, %50, %cst_35 {dimension_numbers = #tpu.dot_dimension_numbers<[1], [0], [0], [1], [0, 0, 1, 1], [], []>} : vector<8x4xf32>, vector<4x256xf32>, vector<8x256xf32> -> vector<8x256xf32>
    %54 = arith.addf %46, %53 : vector<8x256xf32>
    %c240_i32 = arith.constant 240 : i32
    %55 = tpu.dynamic_rotate %1 by %c240_i32 dim 1 : vector<4x256xf32>, i32 -> vector<4x256xf32>
    %c7 = arith.constant 7 : index
    %c0_36 = arith.constant 0 : index
    %56 = vector.load %arg3[%c7, %c0_36] : memref<9x256xf32, #tpu.memory_space<vmem>>, vector<1x256xf32>
    %57 = vector.broadcast %56 : vector<1x256xf32> to vector<4x256xf32>
    %58 = arith.mulf %55, %57 : vector<4x256xf32>
    %c7_37 = arith.constant 7 : index
    %c0_38 = arith.constant 0 : index
    %c0_39 = arith.constant 0 : index
    %59 = vector.load %arg2[%c7_37, %c0_38, %c0_39] : memref<9x8x4xf32, #tpu.memory_space<vmem>>, vector<1x8x4xf32>
    %60 = vector.shape_cast %59 : vector<1x8x4xf32> to vector<8x4xf32>
    %cst_40 = arith.constant dense<0.000000e+00> : vector<8x256xf32>
    %61 = tpu.matmul %60, %58, %cst_40 {dimension_numbers = #tpu.dot_dimension_numbers<[1], [0], [0], [1], [0, 0, 1, 1], [], []>} : vector<8x4xf32>, vector<4x256xf32>, vector<8x256xf32> -> vector<8x256xf32>
    %62 = arith.addf %54, %61 : vector<8x256xf32>
    %c239_i32 = arith.constant 239 : i32
    %63 = tpu.dynamic_rotate %1 by %c239_i32 dim 1 : vector<4x256xf32>, i32 -> vector<4x256xf32>
    %c8 = arith.constant 8 : index
    %c0_41 = arith.constant 0 : index
    %64 = vector.load %arg3[%c8, %c0_41] : memref<9x256xf32, #tpu.memory_space<vmem>>, vector<1x256xf32>
    %65 = vector.broadcast %64 : vector<1x256xf32> to vector<4x256xf32>
    %66 = arith.mulf %63, %65 : vector<4x256xf32>
    %c8_42 = arith.constant 8 : index
    %c0_43 = arith.constant 0 : index
    %c0_44 = arith.constant 0 : index
    %67 = vector.load %arg2[%c8_42, %c0_43, %c0_44] : memref<9x8x4xf32, #tpu.memory_space<vmem>>, vector<1x8x4xf32>
    %68 = vector.shape_cast %67 : vector<1x8x4xf32> to vector<8x4xf32>
    %cst_45 = arith.constant dense<0.000000e+00> : vector<8x256xf32>
    %69 = tpu.matmul %68, %66, %cst_45 {dimension_numbers = #tpu.dot_dimension_numbers<[1], [0], [0], [1], [0, 0, 1, 1], [], []>} : vector<8x4xf32>, vector<4x256xf32>, vector<8x256xf32> -> vector<8x256xf32>
    %70 = arith.addf %62, %69 : vector<8x256xf32>
    %cst_46 = arith.constant dense<0.000000e+00> : vector<8xf32>
    %71 = vector.multi_reduction <add>, %70, %cst_46 [1] : vector<8x256xf32> to vector<8xf32>
    %72 = vector.shape_cast %71 : vector<8xf32> to vector<8x1xf32>
    %c0_47 = arith.constant 0 : index
    %c0_48 = arith.constant 0 : index
    %c0_49 = arith.constant 0 : index
    %73 = vector.load %arg5[%c0_47, %c0_48, %c0_49] : memref<1x8x2xf32, #tpu.memory_space<vmem>>, vector<1x8x1xf32>
    %74 = vector.shape_cast %73 : vector<1x8x1xf32> to vector<8x1xf32>
    %75 = vector.shape_cast %72 : vector<8x1xf32> to vector<1x8x1xf32>
    tpu.vector_store %arg5[%c0_47, %c0_48, %c0_49], %75 {strides = array<i32>} : memref<1x8x2xf32, #tpu.memory_space<vmem>>, vector<1x8x1xf32>,
    %76 = arith.mulf %70, %70 : vector<8x256xf32>
    %cst_50 = arith.constant dense<0.000000e+00> : vector<8xf32>
    %77 = vector.multi_reduction <add>, %76, %cst_50 [1] : vector<8x256xf32> to vector<8xf32>
    %78 = vector.shape_cast %77 : vector<8xf32> to vector<8x1xf32>
    %c0_51 = arith.constant 0 : index
    %c0_52 = arith.constant 0 : index
    %c1_53 = arith.constant 1 : index
    %79 = vector.load %arg5[%c0_51, %c0_52, %c1_53] : memref<1x8x2xf32, #tpu.memory_space<vmem>>, vector<1x8x1xf32>
    %80 = vector.shape_cast %79 : vector<1x8x1xf32> to vector<8x1xf32>
    %81 = vector.shape_cast %78 : vector<8x1xf32> to vector<1x8x1xf32>
    tpu.vector_store %arg5[%c0_51, %c0_52, %c1_53], %81 {strides = array<i32>} : memref<1x8x2xf32, #tpu.memory_space<vmem>>, vector<1x8x1xf32>,
    %c0_54 = arith.constant 0 : index
    %c0_55 = arith.constant 0 : index
    %c0_56 = arith.constant 0 : index
    %82 = vector.load %arg4[%c0_54, %c0_55, %c0_56] : memref<1x8x256xf32, #tpu.memory_space<vmem>>, vector<1x8x256xf32>
    %83 = vector.shape_cast %82 : vector<1x8x256xf32> to vector<8x256xf32>
    %84 = vector.shape_cast %70 : vector<8x256xf32> to vector<1x8x256xf32>
    tpu.vector_store %arg4[%c0_54, %c0_55, %c0_56], %84 {strides = array<i32>} : memref<1x8x256xf32, #tpu.memory_space<vmem>>, vector<1x8x256xf32>,
    return
  }
  func.func @transform_0(%arg0: i32) -> (i32, i32, i32) {
    %c0_i32 = arith.constant 0 : i32
    %c0_i32_0 = arith.constant 0 : i32
    %c0_i32_1 = arith.constant 0 : i32
    return %arg0, %c0_i32, %c0_i32_0 : i32, i32, i32
  }
  func.func @transform_1(%arg0: i32) -> (i32, i32, i32) {
    %c0_i32 = arith.constant 0 : i32
    %c0_i32_0 = arith.constant 0 : i32
    %c0_i32_1 = arith.constant 0 : i32
    %c0_i32_2 = arith.constant 0 : i32
    return %c0_i32, %c0_i32_0, %c0_i32_1 : i32, i32, i32
  }
  func.func @transform_2(%arg0: i32) -> (i32, i32) {
    %c0_i32 = arith.constant 0 : i32
    %c0_i32_0 = arith.constant 0 : i32
    %c0_i32_1 = arith.constant 0 : i32
    return %c0_i32, %c0_i32_0 : i32, i32
  }
  func.func @transform_3(%arg0: i32) -> (i32, i32, i32) {
    %c0_i32 = arith.constant 0 : i32
    %c0_i32_0 = arith.constant 0 : i32
    %c0_i32_1 = arith.constant 0 : i32
    return %arg0, %c0_i32, %c0_i32_0 : i32, i32, i32
  }
  func.func @transform_4(%arg0: i32) -> (i32, i32, i32) {
    %c0_i32 = arith.constant 0 : i32
    %c0_i32_0 = arith.constant 0 : i32
    %c0_i32_1 = arith.constant 0 : i32
    return %arg0, %c0_i32, %c0_i32_0 : i32, i32, i32
  }
}

module attributes {stable_mosaic.version = 11 : i64} {
  func.func @_bn_prelu_conv_stats_kernel(%arg0: i32, %arg1: memref<1x8x256xf32, #tpu.memory_space<vmem>>, %arg2: memref<1x8x1xf32, #tpu.memory_space<vmem>>, %arg3: memref<1x8x1xf32, #tpu.memory_space<vmem>>, %arg4: memref<1xf32, #tpu.memory_space<smem>>, %arg5: memref<9x8x8xf32, #tpu.memory_space<vmem>>, %arg6: memref<9x256xf32, #tpu.memory_space<vmem>>, %arg7: memref<1x8x256xf32, #tpu.memory_space<vmem>>, %arg8: memref<1x8x2xf32, #tpu.memory_space<vmem>>) attributes {dimension_semantics = [#tpu.dimension_semantics<parallel>], iteration_bounds = array<i64: 2>, scalar_prefetch = 0 : i64, scratch_operands = 0 : i64, tpu.core_type = #tpu.core_type<tc>, window_params = [{transform_indices = @transform_0, window_bounds = array<i64: 1, 8, 256>}, {pipeline_mode = #tpu.pipeline_mode<synchronous>, transform_indices = @transform_1, window_bounds = array<i64: 1, 8, 1>}, {pipeline_mode = #tpu.pipeline_mode<synchronous>, transform_indices = @transform_2, window_bounds = array<i64: 1, 8, 1>}, {transform_indices = @transform_3, window_bounds = array<i64: 1>}, {pipeline_mode = #tpu.pipeline_mode<synchronous>, transform_indices = @transform_4, window_bounds = array<i64: 9, 8, 8>}, {pipeline_mode = #tpu.pipeline_mode<synchronous>, transform_indices = @transform_5, window_bounds = array<i64: 9, 256>}, {transform_indices = @transform_6, window_bounds = array<i64: 1, 8, 256>}, {transform_indices = @transform_7, window_bounds = array<i64: 1, 8, 2>}]} {
    %c0 = arith.constant 0 : index
    %c0_0 = arith.constant 0 : index
    %c0_1 = arith.constant 0 : index
    %0 = vector.load %arg1[%c0, %c0_0, %c0_1] : memref<1x8x256xf32, #tpu.memory_space<vmem>>, vector<1x8x256xf32>
    %1 = vector.shape_cast %0 : vector<1x8x256xf32> to vector<8x256xf32>
    %c0_2 = arith.constant 0 : index
    %c0_3 = arith.constant 0 : index
    %c0_4 = arith.constant 0 : index
    %2 = vector.load %arg2[%c0_2, %c0_3, %c0_4] : memref<1x8x1xf32, #tpu.memory_space<vmem>>, vector<1x8x1xf32>
    %3 = vector.shape_cast %2 : vector<1x8x1xf32> to vector<8x1xf32>
    %4 = vector.broadcast %3 : vector<8x1xf32> to vector<8x256xf32>
    %5 = arith.mulf %1, %4 : vector<8x256xf32>
    %c0_5 = arith.constant 0 : index
    %c0_6 = arith.constant 0 : index
    %c0_7 = arith.constant 0 : index
    %6 = vector.load %arg3[%c0_5, %c0_6, %c0_7] : memref<1x8x1xf32, #tpu.memory_space<vmem>>, vector<1x8x1xf32>
    %7 = vector.shape_cast %6 : vector<1x8x1xf32> to vector<8x1xf32>
    %8 = vector.broadcast %7 : vector<8x1xf32> to vector<8x256xf32>
    %9 = arith.addf %5, %8 : vector<8x256xf32>
    %cst = arith.constant 0.000000e+00 : f32
    %10 = vector.broadcast %cst : f32 to vector<8x256xf32>
    %11 = arith.cmpf ogt, %9, %10 : vector<8x256xf32>
    %c0_8 = arith.constant 0 : index
    %12 = memref.load %arg4[%c0_8] : memref<1xf32, #tpu.memory_space<smem>>
    %13 = vector.broadcast %12 : f32 to vector<8x256xf32>
    %14 = arith.mulf %9, %13 : vector<8x256xf32>
    %15 = arith.select %11, %9, %14 : vector<8x256xi1>, vector<8x256xf32>
    %cst_9 = arith.constant 0.000000e+00 : f32
    %16 = vector.broadcast %cst_9 : f32 to vector<8x256xf32>
    %c17_i32 = arith.constant 17 : i32
    %17 = tpu.dynamic_rotate %15 by %c17_i32 dim 1 : vector<8x256xf32>, i32 -> vector<8x256xf32>
    %c0_10 = arith.constant 0 : index
    %c0_11 = arith.constant 0 : index
    %18 = vector.load %arg6[%c0_10, %c0_11] : memref<9x256xf32, #tpu.memory_space<vmem>>, vector<1x256xf32>
    %19 = vector.broadcast %18 : vector<1x256xf32> to vector<8x256xf32>
    %20 = arith.mulf %17, %19 : vector<8x256xf32>
    %c0_12 = arith.constant 0 : index
    %c0_13 = arith.constant 0 : index
    %c0_14 = arith.constant 0 : index
    %21 = vector.load %arg5[%c0_12, %c0_13, %c0_14] : memref<9x8x8xf32, #tpu.memory_space<vmem>>, vector<1x8x8xf32>
    %22 = vector.shape_cast %21 : vector<1x8x8xf32> to vector<8x8xf32>
    %cst_15 = arith.constant dense<0.000000e+00> : vector<8x256xf32>
    %23 = tpu.matmul %22, %20, %cst_15 {dimension_numbers = #tpu.dot_dimension_numbers<[1], [0], [0], [1], [0, 0, 1, 1], [], []>} : vector<8x8xf32>, vector<8x256xf32>, vector<8x256xf32> -> vector<8x256xf32>
    %24 = arith.addf %16, %23 : vector<8x256xf32>
    %c16_i32 = arith.constant 16 : i32
    %25 = tpu.dynamic_rotate %15 by %c16_i32 dim 1 : vector<8x256xf32>, i32 -> vector<8x256xf32>
    %c1 = arith.constant 1 : index
    %c0_16 = arith.constant 0 : index
    %26 = vector.load %arg6[%c1, %c0_16] : memref<9x256xf32, #tpu.memory_space<vmem>>, vector<1x256xf32>
    %27 = vector.broadcast %26 : vector<1x256xf32> to vector<8x256xf32>
    %28 = arith.mulf %25, %27 : vector<8x256xf32>
    %c1_17 = arith.constant 1 : index
    %c0_18 = arith.constant 0 : index
    %c0_19 = arith.constant 0 : index
    %29 = vector.load %arg5[%c1_17, %c0_18, %c0_19] : memref<9x8x8xf32, #tpu.memory_space<vmem>>, vector<1x8x8xf32>
    %30 = vector.shape_cast %29 : vector<1x8x8xf32> to vector<8x8xf32>
    %cst_20 = arith.constant dense<0.000000e+00> : vector<8x256xf32>
    %31 = tpu.matmul %30, %28, %cst_20 {dimension_numbers = #tpu.dot_dimension_numbers<[1], [0], [0], [1], [0, 0, 1, 1], [], []>} : vector<8x8xf32>, vector<8x256xf32>, vector<8x256xf32> -> vector<8x256xf32>
    %32 = arith.addf %24, %31 : vector<8x256xf32>
    %c15_i32 = arith.constant 15 : i32
    %33 = tpu.dynamic_rotate %15 by %c15_i32 dim 1 : vector<8x256xf32>, i32 -> vector<8x256xf32>
    %c2 = arith.constant 2 : index
    %c0_21 = arith.constant 0 : index
    %34 = vector.load %arg6[%c2, %c0_21] : memref<9x256xf32, #tpu.memory_space<vmem>>, vector<1x256xf32>
    %35 = vector.broadcast %34 : vector<1x256xf32> to vector<8x256xf32>
    %36 = arith.mulf %33, %35 : vector<8x256xf32>
    %c2_22 = arith.constant 2 : index
    %c0_23 = arith.constant 0 : index
    %c0_24 = arith.constant 0 : index
    %37 = vector.load %arg5[%c2_22, %c0_23, %c0_24] : memref<9x8x8xf32, #tpu.memory_space<vmem>>, vector<1x8x8xf32>
    %38 = vector.shape_cast %37 : vector<1x8x8xf32> to vector<8x8xf32>
    %cst_25 = arith.constant dense<0.000000e+00> : vector<8x256xf32>
    %39 = tpu.matmul %38, %36, %cst_25 {dimension_numbers = #tpu.dot_dimension_numbers<[1], [0], [0], [1], [0, 0, 1, 1], [], []>} : vector<8x8xf32>, vector<8x256xf32>, vector<8x256xf32> -> vector<8x256xf32>
    %40 = arith.addf %32, %39 : vector<8x256xf32>
    %c1_i32 = arith.constant 1 : i32
    %41 = tpu.dynamic_rotate %15 by %c1_i32 dim 1 : vector<8x256xf32>, i32 -> vector<8x256xf32>
    %c3 = arith.constant 3 : index
    %c0_26 = arith.constant 0 : index
    %42 = vector.load %arg6[%c3, %c0_26] : memref<9x256xf32, #tpu.memory_space<vmem>>, vector<1x256xf32>
    %43 = vector.broadcast %42 : vector<1x256xf32> to vector<8x256xf32>
    %44 = arith.mulf %41, %43 : vector<8x256xf32>
    %c3_27 = arith.constant 3 : index
    %c0_28 = arith.constant 0 : index
    %c0_29 = arith.constant 0 : index
    %45 = vector.load %arg5[%c3_27, %c0_28, %c0_29] : memref<9x8x8xf32, #tpu.memory_space<vmem>>, vector<1x8x8xf32>
    %46 = vector.shape_cast %45 : vector<1x8x8xf32> to vector<8x8xf32>
    %cst_30 = arith.constant dense<0.000000e+00> : vector<8x256xf32>
    %47 = tpu.matmul %46, %44, %cst_30 {dimension_numbers = #tpu.dot_dimension_numbers<[1], [0], [0], [1], [0, 0, 1, 1], [], []>} : vector<8x8xf32>, vector<8x256xf32>, vector<8x256xf32> -> vector<8x256xf32>
    %48 = arith.addf %40, %47 : vector<8x256xf32>
    %c4 = arith.constant 4 : index
    %c0_31 = arith.constant 0 : index
    %c0_32 = arith.constant 0 : index
    %49 = vector.load %arg5[%c4, %c0_31, %c0_32] : memref<9x8x8xf32, #tpu.memory_space<vmem>>, vector<1x8x8xf32>
    %50 = vector.shape_cast %49 : vector<1x8x8xf32> to vector<8x8xf32>
    %cst_33 = arith.constant dense<0.000000e+00> : vector<8x256xf32>
    %51 = tpu.matmul %50, %15, %cst_33 {dimension_numbers = #tpu.dot_dimension_numbers<[1], [0], [0], [1], [0, 0, 1, 1], [], []>} : vector<8x8xf32>, vector<8x256xf32>, vector<8x256xf32> -> vector<8x256xf32>
    %52 = arith.addf %48, %51 : vector<8x256xf32>
    %c255_i32 = arith.constant 255 : i32
    %53 = tpu.dynamic_rotate %15 by %c255_i32 dim 1 : vector<8x256xf32>, i32 -> vector<8x256xf32>
    %c5 = arith.constant 5 : index
    %c0_34 = arith.constant 0 : index
    %54 = vector.load %arg6[%c5, %c0_34] : memref<9x256xf32, #tpu.memory_space<vmem>>, vector<1x256xf32>
    %55 = vector.broadcast %54 : vector<1x256xf32> to vector<8x256xf32>
    %56 = arith.mulf %53, %55 : vector<8x256xf32>
    %c5_35 = arith.constant 5 : index
    %c0_36 = arith.constant 0 : index
    %c0_37 = arith.constant 0 : index
    %57 = vector.load %arg5[%c5_35, %c0_36, %c0_37] : memref<9x8x8xf32, #tpu.memory_space<vmem>>, vector<1x8x8xf32>
    %58 = vector.shape_cast %57 : vector<1x8x8xf32> to vector<8x8xf32>
    %cst_38 = arith.constant dense<0.000000e+00> : vector<8x256xf32>
    %59 = tpu.matmul %58, %56, %cst_38 {dimension_numbers = #tpu.dot_dimension_numbers<[1], [0], [0], [1], [0, 0, 1, 1], [], []>} : vector<8x8xf32>, vector<8x256xf32>, vector<8x256xf32> -> vector<8x256xf32>
    %60 = arith.addf %52, %59 : vector<8x256xf32>
    %c241_i32 = arith.constant 241 : i32
    %61 = tpu.dynamic_rotate %15 by %c241_i32 dim 1 : vector<8x256xf32>, i32 -> vector<8x256xf32>
    %c6 = arith.constant 6 : index
    %c0_39 = arith.constant 0 : index
    %62 = vector.load %arg6[%c6, %c0_39] : memref<9x256xf32, #tpu.memory_space<vmem>>, vector<1x256xf32>
    %63 = vector.broadcast %62 : vector<1x256xf32> to vector<8x256xf32>
    %64 = arith.mulf %61, %63 : vector<8x256xf32>
    %c6_40 = arith.constant 6 : index
    %c0_41 = arith.constant 0 : index
    %c0_42 = arith.constant 0 : index
    %65 = vector.load %arg5[%c6_40, %c0_41, %c0_42] : memref<9x8x8xf32, #tpu.memory_space<vmem>>, vector<1x8x8xf32>
    %66 = vector.shape_cast %65 : vector<1x8x8xf32> to vector<8x8xf32>
    %cst_43 = arith.constant dense<0.000000e+00> : vector<8x256xf32>
    %67 = tpu.matmul %66, %64, %cst_43 {dimension_numbers = #tpu.dot_dimension_numbers<[1], [0], [0], [1], [0, 0, 1, 1], [], []>} : vector<8x8xf32>, vector<8x256xf32>, vector<8x256xf32> -> vector<8x256xf32>
    %68 = arith.addf %60, %67 : vector<8x256xf32>
    %c240_i32 = arith.constant 240 : i32
    %69 = tpu.dynamic_rotate %15 by %c240_i32 dim 1 : vector<8x256xf32>, i32 -> vector<8x256xf32>
    %c7 = arith.constant 7 : index
    %c0_44 = arith.constant 0 : index
    %70 = vector.load %arg6[%c7, %c0_44] : memref<9x256xf32, #tpu.memory_space<vmem>>, vector<1x256xf32>
    %71 = vector.broadcast %70 : vector<1x256xf32> to vector<8x256xf32>
    %72 = arith.mulf %69, %71 : vector<8x256xf32>
    %c7_45 = arith.constant 7 : index
    %c0_46 = arith.constant 0 : index
    %c0_47 = arith.constant 0 : index
    %73 = vector.load %arg5[%c7_45, %c0_46, %c0_47] : memref<9x8x8xf32, #tpu.memory_space<vmem>>, vector<1x8x8xf32>
    %74 = vector.shape_cast %73 : vector<1x8x8xf32> to vector<8x8xf32>
    %cst_48 = arith.constant dense<0.000000e+00> : vector<8x256xf32>
    %75 = tpu.matmul %74, %72, %cst_48 {dimension_numbers = #tpu.dot_dimension_numbers<[1], [0], [0], [1], [0, 0, 1, 1], [], []>} : vector<8x8xf32>, vector<8x256xf32>, vector<8x256xf32> -> vector<8x256xf32>
    %76 = arith.addf %68, %75 : vector<8x256xf32>
    %c239_i32 = arith.constant 239 : i32
    %77 = tpu.dynamic_rotate %15 by %c239_i32 dim 1 : vector<8x256xf32>, i32 -> vector<8x256xf32>
    %c8 = arith.constant 8 : index
    %c0_49 = arith.constant 0 : index
    %78 = vector.load %arg6[%c8, %c0_49] : memref<9x256xf32, #tpu.memory_space<vmem>>, vector<1x256xf32>
    %79 = vector.broadcast %78 : vector<1x256xf32> to vector<8x256xf32>
    %80 = arith.mulf %77, %79 : vector<8x256xf32>
    %c8_50 = arith.constant 8 : index
    %c0_51 = arith.constant 0 : index
    %c0_52 = arith.constant 0 : index
    %81 = vector.load %arg5[%c8_50, %c0_51, %c0_52] : memref<9x8x8xf32, #tpu.memory_space<vmem>>, vector<1x8x8xf32>
    %82 = vector.shape_cast %81 : vector<1x8x8xf32> to vector<8x8xf32>
    %cst_53 = arith.constant dense<0.000000e+00> : vector<8x256xf32>
    %83 = tpu.matmul %82, %80, %cst_53 {dimension_numbers = #tpu.dot_dimension_numbers<[1], [0], [0], [1], [0, 0, 1, 1], [], []>} : vector<8x8xf32>, vector<8x256xf32>, vector<8x256xf32> -> vector<8x256xf32>
    %84 = arith.addf %76, %83 : vector<8x256xf32>
    %cst_54 = arith.constant dense<0.000000e+00> : vector<8xf32>
    %85 = vector.multi_reduction <add>, %84, %cst_54 [1] : vector<8x256xf32> to vector<8xf32>
    %86 = vector.shape_cast %85 : vector<8xf32> to vector<8x1xf32>
    %c0_55 = arith.constant 0 : index
    %c0_56 = arith.constant 0 : index
    %c0_57 = arith.constant 0 : index
    %87 = vector.load %arg8[%c0_55, %c0_56, %c0_57] : memref<1x8x2xf32, #tpu.memory_space<vmem>>, vector<1x8x1xf32>
    %88 = vector.shape_cast %87 : vector<1x8x1xf32> to vector<8x1xf32>
    %89 = vector.shape_cast %86 : vector<8x1xf32> to vector<1x8x1xf32>
    tpu.vector_store %arg8[%c0_55, %c0_56, %c0_57], %89 {strides = array<i32>} : memref<1x8x2xf32, #tpu.memory_space<vmem>>, vector<1x8x1xf32>,
    %90 = arith.mulf %84, %84 : vector<8x256xf32>
    %cst_58 = arith.constant dense<0.000000e+00> : vector<8xf32>
    %91 = vector.multi_reduction <add>, %90, %cst_58 [1] : vector<8x256xf32> to vector<8xf32>
    %92 = vector.shape_cast %91 : vector<8xf32> to vector<8x1xf32>
    %c0_59 = arith.constant 0 : index
    %c0_60 = arith.constant 0 : index
    %c1_61 = arith.constant 1 : index
    %93 = vector.load %arg8[%c0_59, %c0_60, %c1_61] : memref<1x8x2xf32, #tpu.memory_space<vmem>>, vector<1x8x1xf32>
    %94 = vector.shape_cast %93 : vector<1x8x1xf32> to vector<8x1xf32>
    %95 = vector.shape_cast %92 : vector<8x1xf32> to vector<1x8x1xf32>
    tpu.vector_store %arg8[%c0_59, %c0_60, %c1_61], %95 {strides = array<i32>} : memref<1x8x2xf32, #tpu.memory_space<vmem>>, vector<1x8x1xf32>,
    %c0_62 = arith.constant 0 : index
    %c0_63 = arith.constant 0 : index
    %c0_64 = arith.constant 0 : index
    %96 = vector.load %arg7[%c0_62, %c0_63, %c0_64] : memref<1x8x256xf32, #tpu.memory_space<vmem>>, vector<1x8x256xf32>
    %97 = vector.shape_cast %96 : vector<1x8x256xf32> to vector<8x256xf32>
    %98 = vector.shape_cast %84 : vector<8x256xf32> to vector<1x8x256xf32>
    tpu.vector_store %arg7[%c0_62, %c0_63, %c0_64], %98 {strides = array<i32>} : memref<1x8x256xf32, #tpu.memory_space<vmem>>, vector<1x8x256xf32>,
    return
  }
  func.func @transform_0(%arg0: i32) -> (i32, i32, i32) {
    %c0_i32 = arith.constant 0 : i32
    %c0_i32_0 = arith.constant 0 : i32
    %c0_i32_1 = arith.constant 0 : i32
    return %arg0, %c0_i32, %c0_i32_0 : i32, i32, i32
  }
  func.func @transform_1(%arg0: i32) -> (i32, i32, i32) {
    %c0_i32 = arith.constant 0 : i32
    %c0_i32_0 = arith.constant 0 : i32
    %c0_i32_1 = arith.constant 0 : i32
    %c0_i32_2 = arith.constant 0 : i32
    return %c0_i32, %c0_i32_0, %c0_i32_1 : i32, i32, i32
  }
  func.func @transform_2(%arg0: i32) -> (i32, i32, i32) {
    %c0_i32 = arith.constant 0 : i32
    %c0_i32_0 = arith.constant 0 : i32
    %c0_i32_1 = arith.constant 0 : i32
    %c0_i32_2 = arith.constant 0 : i32
    return %c0_i32, %c0_i32_0, %c0_i32_1 : i32, i32, i32
  }
  func.func @transform_3(%arg0: i32) -> i32 {
    %c0_i32 = arith.constant 0 : i32
    %c0_i32_0 = arith.constant 0 : i32
    return %c0_i32 : i32
  }
  func.func @transform_4(%arg0: i32) -> (i32, i32, i32) {
    %c0_i32 = arith.constant 0 : i32
    %c0_i32_0 = arith.constant 0 : i32
    %c0_i32_1 = arith.constant 0 : i32
    %c0_i32_2 = arith.constant 0 : i32
    return %c0_i32, %c0_i32_0, %c0_i32_1 : i32, i32, i32
  }
  func.func @transform_5(%arg0: i32) -> (i32, i32) {
    %c0_i32 = arith.constant 0 : i32
    %c0_i32_0 = arith.constant 0 : i32
    %c0_i32_1 = arith.constant 0 : i32
    return %c0_i32, %c0_i32_0 : i32, i32
  }
  func.func @transform_6(%arg0: i32) -> (i32, i32, i32) {
    %c0_i32 = arith.constant 0 : i32
    %c0_i32_0 = arith.constant 0 : i32
    %c0_i32_1 = arith.constant 0 : i32
    return %arg0, %c0_i32, %c0_i32_0 : i32, i32, i32
  }
  func.func @transform_7(%arg0: i32) -> (i32, i32, i32) {
    %c0_i32 = arith.constant 0 : i32
    %c0_i32_0 = arith.constant 0 : i32
    %c0_i32_1 = arith.constant 0 : i32
    return %arg0, %c0_i32, %c0_i32_0 : i32, i32, i32
  }
}

module attributes {stable_mosaic.version = 11 : i64} {
  func.func @_bn_prelu_pool_kernel(%arg0: i32, %arg1: memref<1x8x256xf32, #tpu.memory_space<vmem>>, %arg2: memref<1x8x1xf32, #tpu.memory_space<vmem>>, %arg3: memref<1x8x1xf32, #tpu.memory_space<vmem>>, %arg4: memref<1xf32, #tpu.memory_space<smem>>, %arg5: memref<256x64xf32, #tpu.memory_space<vmem>>, %arg6: memref<1x8x256xf32, #tpu.memory_space<vmem>>, %arg7: memref<1x8x64xf32, #tpu.memory_space<vmem>>) attributes {dimension_semantics = [#tpu.dimension_semantics<parallel>], iteration_bounds = array<i64: 2>, scalar_prefetch = 0 : i64, scratch_operands = 0 : i64, tpu.core_type = #tpu.core_type<tc>, window_params = [{transform_indices = @transform_0, window_bounds = array<i64: 1, 8, 256>}, {pipeline_mode = #tpu.pipeline_mode<synchronous>, transform_indices = @transform_1, window_bounds = array<i64: 1, 8, 1>}, {pipeline_mode = #tpu.pipeline_mode<synchronous>, transform_indices = @transform_2, window_bounds = array<i64: 1, 8, 1>}, {transform_indices = @transform_3, window_bounds = array<i64: 1>}, {pipeline_mode = #tpu.pipeline_mode<synchronous>, transform_indices = @transform_4, window_bounds = array<i64: 256, 64>}, {transform_indices = @transform_5, window_bounds = array<i64: 1, 8, 256>}, {transform_indices = @transform_6, window_bounds = array<i64: 1, 8, 64>}]} {
    %c0 = arith.constant 0 : index
    %c0_0 = arith.constant 0 : index
    %c0_1 = arith.constant 0 : index
    %0 = vector.load %arg1[%c0, %c0_0, %c0_1] : memref<1x8x256xf32, #tpu.memory_space<vmem>>, vector<1x8x256xf32>
    %1 = vector.shape_cast %0 : vector<1x8x256xf32> to vector<8x256xf32>
    %c0_2 = arith.constant 0 : index
    %c0_3 = arith.constant 0 : index
    %c0_4 = arith.constant 0 : index
    %2 = vector.load %arg2[%c0_2, %c0_3, %c0_4] : memref<1x8x1xf32, #tpu.memory_space<vmem>>, vector<1x8x1xf32>
    %3 = vector.shape_cast %2 : vector<1x8x1xf32> to vector<8x1xf32>
    %4 = vector.broadcast %3 : vector<8x1xf32> to vector<8x256xf32>
    %5 = arith.mulf %1, %4 : vector<8x256xf32>
    %c0_5 = arith.constant 0 : index
    %c0_6 = arith.constant 0 : index
    %c0_7 = arith.constant 0 : index
    %6 = vector.load %arg3[%c0_5, %c0_6, %c0_7] : memref<1x8x1xf32, #tpu.memory_space<vmem>>, vector<1x8x1xf32>
    %7 = vector.shape_cast %6 : vector<1x8x1xf32> to vector<8x1xf32>
    %8 = vector.broadcast %7 : vector<8x1xf32> to vector<8x256xf32>
    %9 = arith.addf %5, %8 : vector<8x256xf32>
    %cst = arith.constant 0.000000e+00 : f32
    %10 = vector.broadcast %cst : f32 to vector<8x256xf32>
    %11 = arith.cmpf ogt, %9, %10 : vector<8x256xf32>
    %c0_8 = arith.constant 0 : index
    %12 = memref.load %arg4[%c0_8] : memref<1xf32, #tpu.memory_space<smem>>
    %13 = vector.broadcast %12 : f32 to vector<8x256xf32>
    %14 = arith.mulf %9, %13 : vector<8x256xf32>
    %15 = arith.select %11, %9, %14 : vector<8x256xi1>, vector<8x256xf32>
    %c0_9 = arith.constant 0 : index
    %c0_10 = arith.constant 0 : index
    %c0_11 = arith.constant 0 : index
    %16 = vector.load %arg6[%c0_9, %c0_10, %c0_11] : memref<1x8x256xf32, #tpu.memory_space<vmem>>, vector<1x8x256xf32>
    %17 = vector.shape_cast %16 : vector<1x8x256xf32> to vector<8x256xf32>
    %18 = vector.shape_cast %15 : vector<8x256xf32> to vector<1x8x256xf32>
    tpu.vector_store %arg6[%c0_9, %c0_10, %c0_11], %18 {strides = array<i32>} : memref<1x8x256xf32, #tpu.memory_space<vmem>>, vector<1x8x256xf32>,
    %c255_i32 = arith.constant 255 : i32
    %19 = tpu.dynamic_rotate %15 by %c255_i32 dim 1 : vector<8x256xf32>, i32 -> vector<8x256xf32>
    %20 = arith.maximumf %15, %19 : vector<8x256xf32>
    %c240_i32 = arith.constant 240 : i32
    %21 = tpu.dynamic_rotate %20 by %c240_i32 dim 1 : vector<8x256xf32>, i32 -> vector<8x256xf32>
    %22 = arith.maximumf %20, %21 : vector<8x256xf32>
    %c0_12 = arith.constant 0 : index
    %c0_13 = arith.constant 0 : index
    %23 = vector.load %arg5[%c0_12, %c0_13] : memref<256x64xf32, #tpu.memory_space<vmem>>, vector<256x64xf32>
    %cst_14 = arith.constant dense<0.000000e+00> : vector<8x64xf32>
    %24 = tpu.matmul %22, %23, %cst_14 {dimension_numbers = #tpu.dot_dimension_numbers<[1], [0], [0], [1], [0, 0, 1, 1], [], []>} : vector<8x256xf32>, vector<256x64xf32>, vector<8x64xf32> -> vector<8x64xf32>
    %c0_15 = arith.constant 0 : index
    %c0_16 = arith.constant 0 : index
    %c0_17 = arith.constant 0 : index
    %25 = vector.load %arg7[%c0_15, %c0_16, %c0_17] : memref<1x8x64xf32, #tpu.memory_space<vmem>>, vector<1x8x64xf32>
    %26 = vector.shape_cast %25 : vector<1x8x64xf32> to vector<8x64xf32>
    %27 = vector.shape_cast %24 : vector<8x64xf32> to vector<1x8x64xf32>
    tpu.vector_store %arg7[%c0_15, %c0_16, %c0_17], %27 {strides = array<i32>} : memref<1x8x64xf32, #tpu.memory_space<vmem>>, vector<1x8x64xf32>,
    return
  }
  func.func @transform_0(%arg0: i32) -> (i32, i32, i32) {
    %c0_i32 = arith.constant 0 : i32
    %c0_i32_0 = arith.constant 0 : i32
    %c0_i32_1 = arith.constant 0 : i32
    return %arg0, %c0_i32, %c0_i32_0 : i32, i32, i32
  }
  func.func @transform_1(%arg0: i32) -> (i32, i32, i32) {
    %c0_i32 = arith.constant 0 : i32
    %c0_i32_0 = arith.constant 0 : i32
    %c0_i32_1 = arith.constant 0 : i32
    %c0_i32_2 = arith.constant 0 : i32
    return %c0_i32, %c0_i32_0, %c0_i32_1 : i32, i32, i32
  }
  func.func @transform_2(%arg0: i32) -> (i32, i32, i32) {
    %c0_i32 = arith.constant 0 : i32
    %c0_i32_0 = arith.constant 0 : i32
    %c0_i32_1 = arith.constant 0 : i32
    %c0_i32_2 = arith.constant 0 : i32
    return %c0_i32, %c0_i32_0, %c0_i32_1 : i32, i32, i32
  }
  func.func @transform_3(%arg0: i32) -> i32 {
    %c0_i32 = arith.constant 0 : i32
    %c0_i32_0 = arith.constant 0 : i32
    return %c0_i32 : i32
  }
  func.func @transform_4(%arg0: i32) -> (i32, i32) {
    %c0_i32 = arith.constant 0 : i32
    %c0_i32_0 = arith.constant 0 : i32
    %c0_i32_1 = arith.constant 0 : i32
    return %c0_i32, %c0_i32_0 : i32, i32
  }
  func.func @transform_5(%arg0: i32) -> (i32, i32, i32) {
    %c0_i32 = arith.constant 0 : i32
    %c0_i32_0 = arith.constant 0 : i32
    %c0_i32_1 = arith.constant 0 : i32
    return %arg0, %c0_i32, %c0_i32_0 : i32, i32, i32
  }
  func.func @transform_6(%arg0: i32) -> (i32, i32, i32) {
    %c0_i32 = arith.constant 0 : i32
    %c0_i32_0 = arith.constant 0 : i32
    %c0_i32_1 = arith.constant 0 : i32
    return %arg0, %c0_i32, %c0_i32_0 : i32, i32, i32
  }
}

</mosaic_0001>

<llo_original>
// kernel: down_block_forward.5
$region0: #{down_block_forward.5}
  #allocation0 [shape = 'u32[]', space=smem, size = 0x4, offset = 0x4, fixed_abs, tag = 'smem constant byte address 0x4 - core index']
  #allocation1 [shape = 'u32[144,128]{1,0:T(1,128)}', space=vmem, size = 0x12000, scoped, tag = 'internal scratch']
  #allocation2 [shape = 'f32[1]{0:T(128)S(6)}', space=smem, size = 0x200, scoped, tag = 'scoped memory for down_block_forward.5']
  %s0 = inlined_call_operand.vmem [shape: f32[2,8,256], index: 0, kind: input, shape index: {}]
  %s1 = inlined_call_operand.vmem [shape: f32[1,8,1], index: 1, kind: input, shape index: {}]
  %s2 = inlined_call_operand.vmem [shape: f32[1,8,1], index: 2, kind: input, shape index: {}]
  %s3 = inlined_call_operand.<no memory space> [shape: f32[1], index: 3, kind: input, shape index: {}]
  %s4 = inlined_call_operand.vmem [shape: f32[256,64], index: 4, kind: input, shape index: {}]
  %s5 = inlined_call_operand.vmem [shape: f32[2,8,256], index: 5, kind: output, shape index: {0}]
  %s6 = inlined_call_operand.vmem [shape: f32[2,8,64], index: 6, kind: output, shape index: {1}]
  %7 = xla_tuple %s5, %s6
  %s8 = sld [smem:[#allocation0]]
  $region61: #{down_block_forward.5} parent=0
    _
  %s10 = ssub.s32 1, %s8
  %s11 = scalar_select 0, %s10, %s8
  %12 = sst [smem:[#allocation2]] %s3
  loop: start=0, step=1, limit=4
  $region2: #{down_block_forward.5} parent=0 // loop_pre_header
    _
  $region3: #{down_block_forward.5} parent=0 // loop_header
    %s14 = sphi 0, %s18
    %p15 = scmp.ge.s32.totalorder %s14, 4
    %s24 = sphi 0, %s26
    %s27 = sphi 0, %s24
    %s28 = sphi 0, %s27
    %s44 = sphi 0, %s28
    %s48 = sphi 0, %s48
    %s50 = sphi 0, %s48
    %s51 = sphi 0, %s50
    %s65 = sphi 0, %s51
    %s69 = sphi 0, %s69
    %s71 = sphi 0, %s69
    %s72 = sphi 0, %s71
    %s86 = sphi 0, %s72
    %s90 = sphi 0, %s90
    %s92 = sphi 0, %s90
    %s93 = sphi 0, %s92
    %s107 = sphi 0, %s93
    %s111 = sphi 0, %s111
    %s113 = sphi 0, %s111
    %s114 = sphi 0, %s113
    %s128 = sphi 0, %s114
    %s134 = sphi 0, %s136
    %s137 = sphi 0, %s134
    %s138 = sphi 0, %s137
    %s154 = sphi 0, %s138
    %s160 = sphi 0, %s162
    %s163 = sphi 0, %s160
    %s164 = sphi 0, %s163
    %s180 = sphi 0, %s164
  $region4: #{down_block_forward.5} parent=0 // loop_header_branch
    %17 = sbr.rel (%p15) target = $region8
  $region5: #{down_block_forward.5} parent=0 // loop_body
    %s19 = ssub.s32 %s14, 1
    %s20 = ssub.s32 %s14, 2
    %s21 = sadd.s32 %s14, 1
    %s22 = ssub.s32 %s14, %s21
    %p23 = scmp.eq.s32.totalorder %s22, 0
    %s25 = sadd.s32 %s24, 1
    %s26 = scalar_select %p23, %s24, %s25
    %p29 = pneg %p23
    %p30 = scmp.eq.s32.totalorder %s14, 1
    %p31 = por %p29, %p30
    %p32 = scmp.ne.s32.totalorder %s24, %s27
    %p33 = scmp.eq.s32.totalorder %s14, 0
    %p34 = por %p32, %p33
    %p35 = scmp.ne.s32.totalorder %s24, %s27
    %p36 = scmp.eq.s32.totalorder %s19, 1
    %p37 = por %p35, %p36
    %p38 = scmp.ne.s32.totalorder %s27, %s28
    %p39 = scmp.eq.s32.totalorder %s19, 0
    %p40 = por %p38, %p39
    %p41 = scmp.ne.s32.totalorder %s27, %s28
    %p42 = scmp.eq.s32.totalorder %s20, 1
    %p43 = por %p41, %p42
    %p45 = scmp.ne.s32.totalorder %s28, %s44
    %p46 = scmp.eq.s32.totalorder %s20, 0
    %p47 = por %p45, %p46
    %s49 = sadd.s32 %s48, 1
    %p52 = scmp.eq.s32.totalorder %s14, 1
    %p53 = scmp.ne.s32.totalorder %s48, %s50
    %p54 = scmp.eq.s32.totalorder %s14, 0
    %p55 = por %p53, %p54
    %p56 = scmp.ne.s32.totalorder %s48, %s50
    %p57 = scmp.eq.s32.totalorder %s19, 1
    %p58 = por %p56, %p57
    %p59 = scmp.ne.s32.totalorder %s50, %s51
    %p60 = scmp.eq.s32.totalorder %s19, 0
    %p61 = por %p59, %p60
    %p62 = scmp.ne.s32.totalorder %s50, %s51
    %p63 = scmp.eq.s32.totalorder %s20, 1
    %p64 = por %p62, %p63
    %p66 = scmp.ne.s32.totalorder %s51, %s65
    %p67 = scmp.eq.s32.totalorder %s20, 0
    %p68 = por %p66, %p67
    %s70 = sadd.s32 %s69, 1
    %p73 = scmp.eq.s32.totalorder %s14, 1
    %p74 = scmp.ne.s32.totalorder %s69, %s71
    %p75 = scmp.eq.s32.totalorder %s14, 0
    %p76 = por %p74, %p75
    %p77 = scmp.ne.s32.totalorder %s69, %s71
    %p78 = scmp.eq.s32.totalorder %s19, 1
    %p79 = por %p77, %p78
    %p80 = scmp.ne.s32.totalorder %s71, %s72
    %p81 = scmp.eq.s32.totalorder %s19, 0
    %p82 = por %p80, %p81
    %p83 = scmp.ne.s32.totalorder %s71, %s72
    %p84 = scmp.eq.s32.totalorder %s20, 1
    %p85 = por %p83, %p84
    %p87 = scmp.ne.s32.totalorder %s72, %s86
    %p88 = scmp.eq.s32.totalorder %s20, 0
    %p89 = por %p87, %p88
    %s91 = sadd.s32 %s90, 1
    %p94 = scmp.eq.s32.totalorder %s14, 1
    %p95 = scmp.ne.s32.totalorder %s90, %s92
    %p96 = scmp.eq.s32.totalorder %s14, 0
    %p97 = por %p95, %p96
    %p98 = scmp.ne.s32.totalorder %s90, %s92
    %p99 = scmp.eq.s32.totalorder %s19, 1
    %p100 = por %p98, %p99
    %p101 = scmp.ne.s32.totalorder %s92, %s93
    %p102 = scmp.eq.s32.totalorder %s19, 0
    %p103 = por %p101, %p102
    %p104 = scmp.ne.s32.totalorder %s92, %s93
    %p105 = scmp.eq.s32.totalorder %s20, 1
    %p106 = por %p104, %p105
    %p108 = scmp.ne.s32.totalorder %s93, %s107
    %p109 = scmp.eq.s32.totalorder %s20, 0
    %p110 = por %p108, %p109
    %s112 = sadd.s32 %s111, 1
    %p115 = scmp.eq.s32.totalorder %s14, 1
    %p116 = scmp.ne.s32.totalorder %s111, %s113
    %p117 = scmp.eq.s32.totalorder %s14, 0
    %p118 = por %p116, %p117
    %p119 = scmp.ne.s32.totalorder %s111, %s113
    %p120 = scmp.eq.s32.totalorder %s19, 1
    %p121 = por %p119, %p120
    %p122 = scmp.ne.s32.totalorder %s113, %s114
    %p123 = scmp.eq.s32.totalorder %s19, 0
    %p124 = por %p122, %p123
    %p125 = scmp.ne.s32.totalorder %s113, %s114
    %p126 = scmp.eq.s32.totalorder %s20, 1
    %p127 = por %p125, %p126
    %p129 = scmp.ne.s32.totalorder %s114, %s128
    %p130 = scmp.eq.s32.totalorder %s20, 0
    %p131 = por %p129, %p130
    %s132 = ssub.s32 %s14, %s21
    %p133 = scmp.eq.s32.totalorder %s132, 0
    %s135 = sadd.s32 %s134, 1
    %s136 = scalar_select %p133, %s134, %s135
    %p139 = pneg %p133
    %p140 = scmp.eq.s32.totalorder %s14, 1
    %p141 = por %p139, %p140
    %p142 = scmp.ne.s32.totalorder %s134, %s137
    %p143 = scmp.eq.s32.totalorder %s14, 0
    %p144 = por %p142, %p143
    %p145 = scmp.ne.s32.totalorder %s134, %s137
    %p146 = scmp.eq.s32.totalorder %s19, 1
    %p147 = por %p145, %p146
    %p148 = scmp.ne.s32.totalorder %s137, %s138
    %p149 = scmp.eq.s32.totalorder %s19, 0
    %p150 = por %p148, %p149
    %p151 = scmp.ne.s32.totalorder %s137, %s138
    %p152 = scmp.eq.s32.totalorder %s20, 1
    %p153 = por %p151, %p152
    %p155 = scmp.ne.s32.totalorder %s138, %s154
    %p156 = scmp.eq.s32.totalorder %s20, 0
    %p157 = por %p155, %p156
    %s158 = ssub.s32 %s14, %s21
    %p159 = scmp.eq.s32.totalorder %s158, 0
    %s161 = sadd.s32 %s160, 1
    %s162 = scalar_select %p159, %s160, %s161
    %p165 = pneg %p159
    %p166 = scmp.eq.s32.totalorder %s14, 1
    %p167 = por %p165, %p166
    %p168 = scmp.ne.s32.totalorder %s160, %s163
    %p169 = scmp.eq.s32.totalorder %s14, 0
    %p170 = por %p168, %p169
    %p171 = scmp.ne.s32.totalorder %s160, %s163
    %p172 = scmp.eq.s32.totalorder %s19, 1
    %p173 = por %p171, %p172
    %p174 = scmp.ne.s32.totalorder %s163, %s164
    %p175 = scmp.eq.s32.totalorder %s19, 0
    %p176 = por %p174, %p175
    %p177 = scmp.ne.s32.totalorder %s163, %s164
    %p178 = scmp.eq.s32.totalorder %s20, 1
    %p179 = por %p177, %p178
    %p181 = scmp.ne.s32.totalorder %s164, %s180
    %p182 = scmp.eq.s32.totalorder %s20, 0
    %p183 = por %p181, %p182
    %p184 = scmp.le.s32.totalorder 1, %s14
    %p185 = scmp.lt.s32.totalorder %s14, 3
    %p186 = pnand %p184, %p185
    %p187 = pneg %p186
    // Predicated region
    $region9: #{down_block_forward.5} parent=5 // pred_check
      _
    $region10: #{down_block_forward.5} parent=5 // pred_check_branch
      %189 = sbr.rel (%p186) target = $region12
    $region11: #{down_block_forward.5} parent=5 // pred_region
      %s190 = ssub.s32 %s14, 1
      // Predicated region
      $region13: #{down_block_forward.5} parent=11 // pred_check
        %p191 = pneg %p61
      $region14: #{down_block_forward.5} parent=11 // pred_check_branch
        %193 = sbr.rel (%p191) target = $region16
      $region15: #{down_block_forward.5} parent=11 // pred_region
        _
      $region16: #{down_block_forward.5} parent=11 // pred_fallthru
        _
      // Predicated region
      $region17: #{down_block_forward.5} parent=11 // pred_check
        %p194 = pneg %p82
      $region18: #{down_block_forward.5} parent=11 // pred_check_branch
        %196 = sbr.rel (%p194) target = $region20
      $region19: #{down_block_forward.5} parent=11 // pred_region
        _
      $region20: #{down_block_forward.5} parent=11 // pred_fallthru
        _
      // Predicated region
      $region21: #{down_block_forward.5} parent=11 // pred_check
        %p197 = pneg %p103
      $region22: #{down_block_forward.5} parent=11 // pred_check_branch
        %199 = sbr.rel (%p197) target = $region24
      $region23: #{down_block_forward.5} parent=11 // pred_region
        _
      $region24: #{down_block_forward.5} parent=11 // pred_fallthru
        _
      // Predicated region
      $region25: #{down_block_forward.5} parent=11 // pred_check
        %p200 = pneg %p124
      $region26: #{down_block_forward.5} parent=11 // pred_check_branch
        %202 = sbr.rel (%p200) target = $region28
      $region27: #{down_block_forward.5} parent=11 // pred_region
        _
      $region28: #{down_block_forward.5} parent=11 // pred_fallthru
        _
    $region12: #{down_block_forward.5} parent=5 // pred_fallthru
      _
    %p203 = scmp.lt.s32.totalorder %s14, 2
    // Predicated region
    $region29: #{down_block_forward.5} parent=5 // pred_check
      %p204 = pneg %p203
    $region30: #{down_block_forward.5} parent=5 // pred_check_branch
      %206 = sbr.rel (%p204) target = $region32
    $region31: #{down_block_forward.5} parent=5 // pred_region
      // Predicated region
      $region33: #{down_block_forward.5} parent=31 // pred_check
        %p207 = pneg %p34
      $region34: #{down_block_forward.5} parent=31 // pred_check_branch
        %209 = sbr.rel (%p207) target = $region36
      $region35: #{down_block_forward.5} parent=31 // pred_region
        %p210 = scmp.lt.s32.totalorder %s14, 1
        %s211 = scalar_select %p210, %s14, 1
        %s212 = smul.addr %s211, 2
        %s213 = smul.addr %s212, 8
        %s214 = scalar_lea.vmem %s0, %s213
      $region36: #{down_block_forward.5} parent=31 // pred_fallthru
        _
    $region32: #{down_block_forward.5} parent=5 // pred_fallthru
      _
    %p215 = scmp.le.s32.totalorder 1, %s14
    %p216 = scmp.lt.s32.totalorder %s14, 3
    %p217 = pnand %p215, %p216
    %p218 = pneg %p217
    // Predicated region
    $region37: #{down_block_forward.5} parent=5 // pred_check
      _
    $region38: #{down_block_forward.5} parent=5 // pred_check_branch
      %220 = sbr.rel (%p217) target = $region40
    $region39: #{down_block_forward.5} parent=5 // pred_region
      %s221 = ssub.s32 %s14, 1
      %p222 = scmp.lt.s32.totalorder %s19, 1
      %s223 = scalar_select %p222, %s19, 1
      %s224 = smul.addr %s223, 2
      %s225 = smul.addr %s224, 8
      %s226 = scalar_lea.vmem %s0, %s225
      %p227 = pneg %p40
      %p228 = pneg %p37
      %p229 = pneg %p61
      %p230 = pneg %p58
      %p231 = pneg %p82
      %p232 = pneg %p79
      %p233 = pneg %p103
      %p234 = pneg %p100
      %p235 = pneg %p124
      %p236 = pneg %p121
      %p237 = pneg %p150
      %p238 = pneg %p147
      %p239 = scmp.lt.s32.totalorder %s19, 1
      %s240 = scalar_select %p239, %s19, 1
      %s241 = smul.addr %s240, 2
      %s242 = smul.addr %s241, 8
      %s243 = scalar_lea.vmem %s5, %s242
      %p244 = pneg %p176
      %p245 = pneg %p173
      %p246 = scmp.lt.s32.totalorder %s19, 1
      %s247 = scalar_select %p246, %s19, 1
      %s248 = smul.addr %s247, 8
      %s249 = scalar_lea.vmem %s6, %s248
      %p250 = scmp.lt.s32.totalorder %s19, 1
      %s251 = scalar_select %p250, %s19, 1
      %s252 = smul.addr %s251, 2
      %s253 = smul.addr %s252, 8
      %s254 = scalar_lea.vmem %s0, %s253
      %p255 = scmp.lt.s32.totalorder %s19, 1
      %s256 = scalar_select %p255, %s19, 1
      %s257 = smul.addr %s256, 2
      %s258 = smul.addr %s257, 8
      %s259 = scalar_lea.vmem %s5, %s258
      %p260 = scmp.lt.s32.totalorder %s19, 1
      %s261 = scalar_select %p260, %s19, 1
      %s262 = smul.addr %s261, 8
      %s263 = scalar_lea.vmem %s6, %s262
      %v264 = vld [vmem:[%s254] sm:$0xff]
      %v265 = vld [vmem:[%s254 + $0x8] sm:$0xff]
      %v266 = vld [vmem:[%s1] sm:$0xff]
      %268 = vset.pattern.permute.xlu0 0
      %269 = vperm.xlu0 %268, %v266
      %v270 = vpop.permute.xlu0 %269
      %v272 = vmul.f32 %v264, %v270
      %v273 = vmul.f32 %v265, %v270
      %v274 = vld [vmem:[%s2] sm:$0xff]
      %276 = vset.pattern.permute.xlu0 0
      %277 = vperm.xlu0 %276, %v274
      %v278 = vpop.permute.xlu0 %277
      %v280 = vadd.f32 %v272, %v278
      %v281 = vadd.f32 %v273, %v278
      %vm282 = vcmp.gt.f32.partialorder %v280, 0.0
      %vm283 = vcmp.gt.f32.partialorder %v281, 0.0
      %s284 = sld [smem:[#allocation2]]
      %v285 = vstv %s284
      %v286 = vmul.f32 %v280, %v285
      %v287 = vmul.f32 %v281, %v285
      %v288 = vsel %vm282, %v280, %v286
      %v289 = vsel %vm283, %v281, %v287
      %290 = vst [vmem:[%s259] sm:$0xff] %v288
      %291 = vst [vmem:[%s259 + $0x8] sm:$0xff] %v289
      %292 = vrot.lane.b32.xlu0 %v288, 127
      %v293 = vpop.permute.xlu0 %292
      %294 = vrot.lane.b32.xlu0 %v289, 127
      %v295 = vpop.permute.xlu0 %294
      %v296 = vlaneseq
      %v297 = vand.u32 %v296, 127
      %vm298 = vcmp.lt.s32.totalorder %v297, 127
      %v299 = vsel %vm298, %v293, %v295
      %v300 = vsel %vm298, %v295, %v293
      %v301 = vmax.f32 %v288, %v299
      %v302 = vmax.f32 %v289, %v300
      %303 = vrot.lane.b32.xlu0 %v301, 112
      %v304 = vpop.permute.xlu0 %303
      %305 = vrot.lane.b32.xlu0 %v302, 112
      %v306 = vpop.permute.xlu0 %305
      %vm307 = vcmp.lt.s32.totalorder %v297, 112
      %v308 = vsel %vm307, %v304, %v306
      %v309 = vsel %vm307, %v306, %v304
      %v310 = vmax.f32 %v301, %v308
      %v311 = vmax.f32 %v302, %v309
      %v312 = vld [vmem:[%s4] sm:$0xff]
      %v313 = vld [vmem:[%s4 + $0x8] sm:$0xff]
      %v314 = vld [vmem:[%s4 + $0x10] sm:$0xff]
      %v315 = vld [vmem:[%s4 + $0x18] sm:$0xff]
      %v316 = vld [vmem:[%s4 + $0x20] sm:$0xff]
      %v317 = vld [vmem:[%s4 + $0x28] sm:$0xff]
      %v318 = vld [vmem:[%s4 + $0x30] sm:$0xff]
      %v319 = vld [vmem:[%s4 + $0x38] sm:$0xff]
      %v320 = vld [vmem:[%s4 + $0x40] sm:$0xff]
      %v321 = vld [vmem:[%s4 + $0x48] sm:$0xff]
      %v322 = vld [vmem:[%s4 + $0x50] sm:$0xff]
      %v323 = vld [vmem:[%s4 + $0x58] sm:$0xff]
      %v324 = vld [vmem:[%s4 + $0x60] sm:$0xff]
      %v325 = vld [vmem:[%s4 + $0x68] sm:$0xff]
      %v326 = vld [vmem:[%s4 + $0x70] sm:$0xff]
      %v327 = vld [vmem:[%s4 + $0x78] sm:$0xff]
      %v328 = vld [vmem:[%s4 + $0x80] sm:$0xff]
      %v329 = vld [vmem:[%s4 + $0x88] sm:$0xff]
      %v330 = vld [vmem:[%s4 + $0x90] sm:$0xff]
      %v331 = vld [vmem:[%s4 + $0x98] sm:$0xff]
      %v332 = vld [vmem:[%s4 + $0xa0] sm:$0xff]
      %v333 = vld [vmem:[%s4 + $0xa8] sm:$0xff]
      %v334 = vld [vmem:[%s4 + $0xb0] sm:$0xff]
      %v335 = vld [vmem:[%s4 + $0xb8] sm:$0xff]
      %v336 = vld [vmem:[%s4 + $0xc0] sm:$0xff]
      %v337 = vld [vmem:[%s4 + $0xc8] sm:$0xff]
      %v338 = vld [vmem:[%s4 + $0xd0] sm:$0xff]
      %v339 = vld [vmem:[%s4 + $0xd8] sm:$0xff]
      %v340 = vld [vmem:[%s4 + $0xe0] sm:$0xff]
      %v341 = vld [vmem:[%s4 + $0xe8] sm:$0xff]
      %v342 = vld [vmem:[%s4 + $0xf0] sm:$0xff]
      %v343 = vld [vmem:[%s4 + $0xf8] sm:$0xff]
      %344 = vmatprep.subr.mxu0 0.0
      %345 = vmatpush1.msra.mxu0 %v327
      %346 = vmatprep.subr.mxu0 0.0
      %347 = vmatpush1.msra.mxu0 %v326
      %348 = vmatprep.subr.mxu0 0.0
      %349 = vmatpush1.msra.mxu0 %v325
      %350 = vmatprep.subr.mxu0 0.0
      %351 = vmatpush1.msra.mxu0 %v324
      %352 = vmatprep.subr.mxu0 0.0
      %353 = vmatpush1.msra.mxu0 %v323
      %354 = vmatprep.subr.mxu0 0.0
      %355 = vmatpush1.msra.mxu0 %v322
      %356 = vmatprep.subr.mxu0 0.0
      %357 = vmatpush1.msra.mxu0 %v321
      %358 = vmatprep.subr.mxu0 0.0
      %359 = vmatpush1.msra.mxu0 %v320
      %360 = vmatprep.subr.mxu0 0.0
      %361 = vmatpush1.msra.mxu0 %v319
      %362 = vmatprep.subr.mxu0 0.0
      %363 = vmatpush1.msra.mxu0 %v318
      %364 = vmatprep.subr.mxu0 0.0
      %365 = vmatpush1.msra.mxu0 %v317
      %366 = vmatprep.subr.mxu0 0.0
      %367 = vmatpush1.msra.mxu0 %v316
      %368 = vmatprep.subr.mxu0 0.0
      %369 = vmatpush1.msra.mxu0 %v315
      %370 = vmatprep.subr.mxu0 0.0
      %371 = vmatpush1.msra.mxu0 %v314
      %372 = vmatprep.subr.mxu0 0.0
      %373 = vmatpush1.msra.mxu0 %v313
      %374 = vmatprep.subr.mxu0 0.0
      %375 = vmatpush1.msra.mxu0 %v312
      %376 = vmatprep.subr.mxu0 0.0
      %377 = vmatpush2.msra.mxu0 %v343
      %378 = vmatprep.subr.mxu0 0.0
      %379 = vmatpush2.msra.mxu0 %v342
      %380 = vmatprep.subr.mxu0 0.0
      %381 = vmatpush2.msra.mxu0 %v341
      %382 = vmatprep.subr.mxu0 0.0
      %383 = vmatpush2.msra.mxu0 %v340
      %384 = vmatprep.subr.mxu0 0.0
      %385 = vmatpush2.msra.mxu0 %v339
      %386 = vmatprep.subr.mxu0 0.0
      %387 = vmatpush2.msra.mxu0 %v338
      %388 = vmatprep.subr.mxu0 0.0
      %389 = vmatpush2.msra.mxu0 %v337
      %390 = vmatprep.subr.mxu0 0.0
      %391 = vmatpush2.msra.mxu0 %v336
      %392 = vmatprep.subr.mxu0 0.0
      %393 = vmatpush2.msra.mxu0 %v335
      %394 = vmatprep.subr.mxu0 0.0
      %395 = vmatpush2.msra.mxu0 %v334
      %396 = vmatprep.subr.mxu0 0.0
      %397 = vmatpush2.msra.mxu0 %v333
      %398 = vmatprep.subr.mxu0 0.0
      %399 = vmatpush2.msra.mxu0 %v332
      %400 = vmatprep.subr.mxu0 0.0
      %401 = vmatpush2.msra.mxu0 %v331
      %402 = vmatprep.subr.mxu0 0.0
      %403 = vmatpush2.msra.mxu0 %v330
      %404 = vmatprep.subr.mxu0 0.0
      %405 = vmatpush2.msra.mxu0 %v329
      %406 = vmatprep.subr.mxu0 0.0
      %407 = vmatpush2.msra.mxu0 %v328
      %408 = vmatprep.mubr.f32.mxu0 %v311
      %409 = vmatmul.mubr.f32.gmra.mxu0 %v310
      %v410 = vpop.f32.mrf.mxu0
      %v411 = vadd.f32 0.0, %v410
      %v412 = vpop.f32.mrf.mxu0
      %413 = vdwg.mxu0
      %vm414 = vcmask 523264
      %415 = vst.msk [vmem:[%s263] sm:$0xff] %vm414, %v411
      %p416 = scmp.lt.s32.totalorder %s19, 1
      %s417 = scalar_select %p416, %s19, 1
      %s418 = smul.addr %s417, 2
      %s419 = smul.addr %s418, 8
      %s420 = scalar_lea.vmem %s5, %s419
      %p421 = scmp.lt.s32.totalorder %s19, 1
      %s422 = scalar_select %p421, %s19, 1
      %s423 = smul.addr %s422, 8
      %s424 = scalar_lea.vmem %s6, %s423
      // Predicated region
      $region41: #{down_block_forward.5} parent=39 // pred_check
        %p425 = pneg %p147
      $region42: #{down_block_forward.5} parent=39 // pred_check_branch
        %427 = sbr.rel (%p425) target = $region44
      $region43: #{down_block_forward.5} parent=39 // pred_region
        _
      $region44: #{down_block_forward.5} parent=39 // pred_fallthru
        _
      // Predicated region
      $region45: #{down_block_forward.5} parent=39 // pred_check
        %p428 = pneg %p173
      $region46: #{down_block_forward.5} parent=39 // pred_check_branch
        %430 = sbr.rel (%p428) target = $region48
      $region47: #{down_block_forward.5} parent=39 // pred_region
        _
      $region48: #{down_block_forward.5} parent=39 // pred_fallthru
        _
    $region40: #{down_block_forward.5} parent=5 // pred_fallthru
      _
    %p431 = scmp.le.s32.totalorder 2, %s14
    // Predicated region
    $region49: #{down_block_forward.5} parent=5 // pred_check
      %p432 = pneg %p431
    $region50: #{down_block_forward.5} parent=5 // pred_check_branch
      %434 = sbr.rel (%p432) target = $region52
    $region51: #{down_block_forward.5} parent=5 // pred_region
      %s435 = ssub.s32 %s14, 2
      // Predicated region
      $region53: #{down_block_forward.5} parent=51 // pred_check
        %p436 = pneg %p153
      $region54: #{down_block_forward.5} parent=51 // pred_check_branch
        %438 = sbr.rel (%p436) target = $region56
      $region55: #{down_block_forward.5} parent=51 // pred_region
        %p439 = scmp.lt.s32.totalorder %s20, 1
        %s440 = scalar_select %p439, %s20, 1
        %s441 = smul.addr %s440, 2
        %s442 = smul.addr %s441, 8
        %s443 = scalar_lea.vmem %s5, %s442
      $region56: #{down_block_forward.5} parent=51 // pred_fallthru
        _
      // Predicated region
      $region57: #{down_block_forward.5} parent=51 // pred_check
        %p444 = pneg %p179
      $region58: #{down_block_forward.5} parent=51 // pred_check_branch
        %446 = sbr.rel (%p444) target = $region60
      $region59: #{down_block_forward.5} parent=51 // pred_region
        %p447 = scmp.lt.s32.totalorder %s20, 1
        %s448 = scalar_select %p447, %s20, 1
        %s449 = smul.addr %s448, 8
        %s450 = scalar_lea.vmem %s6, %s449
      $region60: #{down_block_forward.5} parent=51 // pred_fallthru
        _
    $region52: #{down_block_forward.5} parent=5 // pred_fallthru
      _
  $region6: #{down_block_forward.5} parent=0 // loop_footer
    %s18 = sadd.s32 1, %s14
  $region7: #{down_block_forward.5} parent=0 // loop_footer_branch
    %13 = sbr.rel target = $region3
  $region8: #{down_block_forward.5} parent=0 // loop_exit
    _

// kernel: down_block_forward.4
$region0: #{down_block_forward.4}
  #allocation0 [shape = 'u32[]', space=smem, size = 0x4, offset = 0x4, fixed_abs, tag = 'smem constant byte address 0x4 - core index']
  #allocation1 [shape = 'u32[144,128]{1,0:T(1,128)}', space=vmem, size = 0x12000, scoped, tag = 'internal scratch']
  #allocation2 [shape = 'f32[1]{0:T(128)S(6)}', space=smem, size = 0x200, scoped, tag = 'scoped memory for down_block_forward.4']
  %s0 = inlined_call_operand.vmem [shape: f32[2,8,256], index: 0, kind: input, shape index: {}]
  %s1 = inlined_call_operand.vmem [shape: f32[1,8,1], index: 1, kind: input, shape index: {}]
  %s2 = inlined_call_operand.vmem [shape: f32[1,8,1], index: 2, kind: input, shape index: {}]
  %s3 = inlined_call_operand.<no memory space> [shape: f32[1], index: 3, kind: input, shape index: {}]
  %s4 = inlined_call_operand.vmem [shape: f32[9,8,8], index: 4, kind: input, shape index: {}]
  %s5 = inlined_call_operand.vmem [shape: f32[9,256], index: 5, kind: input, shape index: {}]
  %s6 = inlined_call_operand.vmem [shape: f32[2,8,256], index: 6, kind: output, shape index: {0}]
  %s7 = inlined_call_operand.vmem [shape: f32[2,8,2], index: 7, kind: output, shape index: {1}]
  %8 = xla_tuple %s6, %s7
  %s9 = sld [smem:[#allocation0]]
  $region65: #{down_block_forward.4} parent=0
    _
  %s11 = ssub.s32 1, %s9
  %s12 = scalar_select 0, %s11, %s9
  %13 = sst [smem:[#allocation2]] %s3
  loop: start=0, step=1, limit=4
  $region2: #{down_block_forward.4} parent=0 // loop_pre_header
    _
  $region3: #{down_block_forward.4} parent=0 // loop_header
    %s15 = sphi 0, %s19
    %p16 = scmp.ge.s32.totalorder %s15, 4
    %s25 = sphi 0, %s27
    %s28 = sphi 0, %s25
    %s29 = sphi 0, %s28
    %s45 = sphi 0, %s29
    %s49 = sphi 0, %s49
    %s51 = sphi 0, %s49
    %s52 = sphi 0, %s51
    %s66 = sphi 0, %s52
    %s70 = sphi 0, %s70
    %s72 = sphi 0, %s70
    %s73 = sphi 0, %s72
    %s87 = sphi 0, %s73
    %s91 = sphi 0, %s91
    %s93 = sphi 0, %s91
    %s94 = sphi 0, %s93
    %s108 = sphi 0, %s94
    %s112 = sphi 0, %s112
    %s114 = sphi 0, %s112
    %s115 = sphi 0, %s114
    %s129 = sphi 0, %s115
    %s133 = sphi 0, %s133
    %s135 = sphi 0, %s133
    %s136 = sphi 0, %s135
    %s150 = sphi 0, %s136
    %s156 = sphi 0, %s158
    %s159 = sphi 0, %s156
    %s160 = sphi 0, %s159
    %s176 = sphi 0, %s160
    %s182 = sphi 0, %s184
    %s185 = sphi 0, %s182
    %s186 = sphi 0, %s185
    %s202 = sphi 0, %s186
  $region4: #{down_block_forward.4} parent=0 // loop_header_branch
    %18 = sbr.rel (%p16) target = $region8
  $region5: #{down_block_forward.4} parent=0 // loop_body
    %s20 = ssub.s32 %s15, 1
    %s21 = ssub.s32 %s15, 2
    %s22 = sadd.s32 %s15, 1
    %s23 = ssub.s32 %s15, %s22
    %p24 = scmp.eq.s32.totalorder %s23, 0
    %s26 = sadd.s32 %s25, 1
    %s27 = scalar_select %p24, %s25, %s26
    %p30 = pneg %p24
    %p31 = scmp.eq.s32.totalorder %s15, 1
    %p32 = por %p30, %p31
    %p33 = scmp.ne.s32.totalorder %s25, %s28
    %p34 = scmp.eq.s32.totalorder %s15, 0
    %p35 = por %p33, %p34
    %p36 = scmp.ne.s32.totalorder %s25, %s28
    %p37 = scmp.eq.s32.totalorder %s20, 1
    %p38 = por %p36, %p37
    %p39 = scmp.ne.s32.totalorder %s28, %s29
    %p40 = scmp.eq.s32.totalorder %s20, 0
    %p41 = por %p39, %p40
    %p42 = scmp.ne.s32.totalorder %s28, %s29
    %p43 = scmp.eq.s32.totalorder %s21, 1
    %p44 = por %p42, %p43
    %p46 = scmp.ne.s32.totalorder %s29, %s45
    %p47 = scmp.eq.s32.totalorder %s21, 0
    %p48 = por %p46, %p47
    %s50 = sadd.s32 %s49, 1
    %p53 = scmp.eq.s32.totalorder %s15, 1
    %p54 = scmp.ne.s32.totalorder %s49, %s51
    %p55 = scmp.eq.s32.totalorder %s15, 0
    %p56 = por %p54, %p55
    %p57 = scmp.ne.s32.totalorder %s49, %s51
    %p58 = scmp.eq.s32.totalorder %s20, 1
    %p59 = por %p57, %p58
    %p60 = scmp.ne.s32.totalorder %s51, %s52
    %p61 = scmp.eq.s32.totalorder %s20, 0
    %p62 = por %p60, %p61
    %p63 = scmp.ne.s32.totalorder %s51, %s52
    %p64 = scmp.eq.s32.totalorder %s21, 1
    %p65 = por %p63, %p64
    %p67 = scmp.ne.s32.totalorder %s52, %s66
    %p68 = scmp.eq.s32.totalorder %s21, 0
    %p69 = por %p67, %p68
    %s71 = sadd.s32 %s70, 1
    %p74 = scmp.eq.s32.totalorder %s15, 1
    %p75 = scmp.ne.s32.totalorder %s70, %s72
    %p76 = scmp.eq.s32.totalorder %s15, 0
    %p77 = por %p75, %p76
    %p78 = scmp.ne.s32.totalorder %s70, %s72
    %p79 = scmp.eq.s32.totalorder %s20, 1
    %p80 = por %p78, %p79
    %p81 = scmp.ne.s32.totalorder %s72, %s73
    %p82 = scmp.eq.s32.totalorder %s20, 0
    %p83 = por %p81, %p82
    %p84 = scmp.ne.s32.totalorder %s72, %s73
    %p85 = scmp.eq.s32.totalorder %s21, 1
    %p86 = por %p84, %p85
    %p88 = scmp.ne.s32.totalorder %s73, %s87
    %p89 = scmp.eq.s32.totalorder %s21, 0
    %p90 = por %p88, %p89
    %s92 = sadd.s32 %s91, 1
    %p95 = scmp.eq.s32.totalorder %s15, 1
    %p96 = scmp.ne.s32.totalorder %s91, %s93
    %p97 = scmp.eq.s32.totalorder %s15, 0
    %p98 = por %p96, %p97
    %p99 = scmp.ne.s32.totalorder %s91, %s93
    %p100 = scmp.eq.s32.totalorder %s20, 1
    %p101 = por %p99, %p100
    %p102 = scmp.ne.s32.totalorder %s93, %s94
    %p103 = scmp.eq.s32.totalorder %s20, 0
    %p104 = por %p102, %p103
    %p105 = scmp.ne.s32.totalorder %s93, %s94
    %p106 = scmp.eq.s32.totalorder %s21, 1
    %p107 = por %p105, %p106
    %p109 = scmp.ne.s32.totalorder %s94, %s108
    %p110 = scmp.eq.s32.totalorder %s21, 0
    %p111 = por %p109, %p110
    %s113 = sadd.s32 %s112, 1
    %p116 = scmp.eq.s32.totalorder %s15, 1
    %p117 = scmp.ne.s32.totalorder %s112, %s114
    %p118 = scmp.eq.s32.totalorder %s15, 0
    %p119 = por %p117, %p118
    %p120 = scmp.ne.s32.totalorder %s112, %s114
    %p121 = scmp.eq.s32.totalorder %s20, 1
    %p122 = por %p120, %p121
    %p123 = scmp.ne.s32.totalorder %s114, %s115
    %p124 = scmp.eq.s32.totalorder %s20, 0
    %p125 = por %p123, %p124
    %p126 = scmp.ne.s32.totalorder %s114, %s115
    %p127 = scmp.eq.s32.totalorder %s21, 1
    %p128 = por %p126, %p127
    %p130 = scmp.ne.s32.totalorder %s115, %s129
    %p131 = scmp.eq.s32.totalorder %s21, 0
    %p132 = por %p130, %p131
    %s134 = sadd.s32 %s133, 1
    %p137 = scmp.eq.s32.totalorder %s15, 1
    %p138 = scmp.ne.s32.totalorder %s133, %s135
    %p139 = scmp.eq.s32.totalorder %s15, 0
    %p140 = por %p138, %p139
    %p141 = scmp.ne.s32.totalorder %s133, %s135
    %p142 = scmp.eq.s32.totalorder %s20, 1
    %p143 = por %p141, %p142
    %p144 = scmp.ne.s32.totalorder %s135, %s136
    %p145 = scmp.eq.s32.totalorder %s20, 0
    %p146 = por %p144, %p145
    %p147 = scmp.ne.s32.totalorder %s135, %s136
    %p148 = scmp.eq.s32.totalorder %s21, 1
    %p149 = por %p147, %p148
    %p151 = scmp.ne.s32.totalorder %s136, %s150
    %p152 = scmp.eq.s32.totalorder %s21, 0
    %p153 = por %p151, %p152
    %s154 = ssub.s32 %s15, %s22
    %p155 = scmp.eq.s32.totalorder %s154, 0
    %s157 = sadd.s32 %s156, 1
    %s158 = scalar_select %p155, %s156, %s157
    %p161 = pneg %p155
    %p162 = scmp.eq.s32.totalorder %s15, 1
    %p163 = por %p161, %p162
    %p164 = scmp.ne.s32.totalorder %s156, %s159
    %p165 = scmp.eq.s32.totalorder %s15, 0
    %p166 = por %p164, %p165
    %p167 = scmp.ne.s32.totalorder %s156, %s159
    %p168 = scmp.eq.s32.totalorder %s20, 1
    %p169 = por %p167, %p168
    %p170 = scmp.ne.s32.totalorder %s159, %s160
    %p171 = scmp.eq.s32.totalorder %s20, 0
    %p172 = por %p170, %p171
    %p173 = scmp.ne.s32.totalorder %s159, %s160
    %p174 = scmp.eq.s32.totalorder %s21, 1
    %p175 = por %p173, %p174
    %p177 = scmp.ne.s32.totalorder %s160, %s176
    %p178 = scmp.eq.s32.totalorder %s21, 0
    %p179 = por %p177, %p178
    %s180 = ssub.s32 %s15, %s22
    %p181 = scmp.eq.s32.totalorder %s180, 0
    %s183 = sadd.s32 %s182, 1
    %s184 = scalar_select %p181, %s182, %s183
    %p187 = pneg %p181
    %p188 = scmp.eq.s32.totalorder %s15, 1
    %p189 = por %p187, %p188
    %p190 = scmp.ne.s32.totalorder %s182, %s185
    %p191 = scmp.eq.s32.totalorder %s15, 0
    %p192 = por %p190, %p191
    %p193 = scmp.ne.s32.totalorder %s182, %s185
    %p194 = scmp.eq.s32.totalorder %s20, 1
    %p195 = por %p193, %p194
    %p196 = scmp.ne.s32.totalorder %s185, %s186
    %p197 = scmp.eq.s32.totalorder %s20, 0
    %p198 = por %p196, %p197
    %p199 = scmp.ne.s32.totalorder %s185, %s186
    %p200 = scmp.eq.s32.totalorder %s21, 1
    %p201 = por %p199, %p200
    %p203 = scmp.ne.s32.totalorder %s186, %s202
    %p204 = scmp.eq.s32.totalorder %s21, 0
    %p205 = por %p203, %p204
    %p206 = scmp.le.s32.totalorder 1, %s15
    %p207 = scmp.lt.s32.totalorder %s15, 3
    %p208 = pnand %p206, %p207
    %p209 = pneg %p208
    // Predicated region
    $region9: #{down_block_forward.4} parent=5 // pred_check
      _
    $region10: #{down_block_forward.4} parent=5 // pred_check_branch
      %211 = sbr.rel (%p208) target = $region12
    $region11: #{down_block_forward.4} parent=5 // pred_region
      %s212 = ssub.s32 %s15, 1
      // Predicated region
      $region13: #{down_block_forward.4} parent=11 // pred_check
        %p213 = pneg %p62
      $region14: #{down_block_forward.4} parent=11 // pred_check_branch
        %215 = sbr.rel (%p213) target = $region16
      $region15: #{down_block_forward.4} parent=11 // pred_region
        _
      $region16: #{down_block_forward.4} parent=11 // pred_fallthru
        _
      // Predicated region
      $region17: #{down_block_forward.4} parent=11 // pred_check
        %p216 = pneg %p83
      $region18: #{down_block_forward.4} parent=11 // pred_check_branch
        %218 = sbr.rel (%p216) target = $region20
      $region19: #{down_block_forward.4} parent=11 // pred_region
        _
      $region20: #{down_block_forward.4} parent=11 // pred_fallthru
        _
      // Predicated region
      $region21: #{down_block_forward.4} parent=11 // pred_check
        %p219 = pneg %p104
      $region22: #{down_block_forward.4} parent=11 // pred_check_branch
        %221 = sbr.rel (%p219) target = $region24
      $region23: #{down_block_forward.4} parent=11 // pred_region
        _
      $region24: #{down_block_forward.4} parent=11 // pred_fallthru
        _
      // Predicated region
      $region25: #{down_block_forward.4} parent=11 // pred_check
        %p222 = pneg %p125
      $region26: #{down_block_forward.4} parent=11 // pred_check_branch
        %224 = sbr.rel (%p222) target = $region28
      $region27: #{down_block_forward.4} parent=11 // pred_region
        _
      $region28: #{down_block_forward.4} parent=11 // pred_fallthru
        _
      // Predicated region
      $region29: #{down_block_forward.4} parent=11 // pred_check
        %p225 = pneg %p146
      $region30: #{down_block_forward.4} parent=11 // pred_check_branch
        %227 = sbr.rel (%p225) target = $region32
      $region31: #{down_block_forward.4} parent=11 // pred_region
        _
      $region32: #{down_block_forward.4} parent=11 // pred_fallthru
        _
    $region12: #{down_block_forward.4} parent=5 // pred_fallthru
      _
    %p228 = scmp.lt.s32.totalorder %s15, 2
    // Predicated region
    $region33: #{down_block_forward.4} parent=5 // pred_check
      %p229 = pneg %p228
    $region34: #{down_block_forward.4} parent=5 // pred_check_branch
      %231 = sbr.rel (%p229) target = $region36
    $region35: #{down_block_forward.4} parent=5 // pred_region
      // Predicated region
      $region37: #{down_block_forward.4} parent=35 // pred_check
        %p232 = pneg %p35
      $region38: #{down_block_forward.4} parent=35 // pred_check_branch
        %234 = sbr.rel (%p232) target = $region40
      $region39: #{down_block_forward.4} parent=35 // pred_region
        %p235 = scmp.lt.s32.totalorder %s15, 1
        %s236 = scalar_select %p235, %s15, 1
        %s237 = smul.addr %s236, 2
        %s238 = smul.addr %s237, 8
        %s239 = scalar_lea.vmem %s0, %s238
      $region40: #{down_block_forward.4} parent=35 // pred_fallthru
        _
    $region36: #{down_block_forward.4} parent=5 // pred_fallthru
      _
    %p240 = scmp.le.s32.totalorder 1, %s15
    %p241 = scmp.lt.s32.totalorder %s15, 3
    %p242 = pnand %p240, %p241
    %p243 = pneg %p242
    // Predicated region
    $region41: #{down_block_forward.4} parent=5 // pred_check
      _
    $region42: #{down_block_forward.4} parent=5 // pred_check_branch
      %245 = sbr.rel (%p242) target = $region44
    $region43: #{down_block_forward.4} parent=5 // pred_region
      %s246 = ssub.s32 %s15, 1
      %p247 = scmp.lt.s32.totalorder %s20, 1
      %s248 = scalar_select %p247, %s20, 1
      %s249 = smul.addr %s248, 2
      %s250 = smul.addr %s249, 8
      %s251 = scalar_lea.vmem %s0, %s250
      %p252 = pneg %p41
      %p253 = pneg %p38
      %p254 = pneg %p62
      %p255 = pneg %p59
      %p256 = pneg %p83
      %p257 = pneg %p80
      %p258 = pneg %p104
      %p259 = pneg %p101
      %p260 = pneg %p125
      %p261 = pneg %p122
      %p262 = pneg %p146
      %p263 = pneg %p143
      %p264 = pneg %p172
      %p265 = pneg %p169
      %p266 = scmp.lt.s32.totalorder %s20, 1
      %s267 = scalar_select %p266, %s20, 1
      %s268 = smul.addr %s267, 2
      %s269 = smul.addr %s268, 8
      %s270 = scalar_lea.vmem %s6, %s269
      %p271 = pneg %p198
      %p272 = pneg %p195
      %p273 = scmp.lt.s32.totalorder %s20, 1
      %s274 = scalar_select %p273, %s20, 1
      %s275 = smul.addr %s274, 8
      %s276 = scalar_lea.vmem %s7, %s275
      %p277 = scmp.lt.s32.totalorder %s20, 1
      %s278 = scalar_select %p277, %s20, 1
      %s279 = smul.addr %s278, 2
      %s280 = smul.addr %s279, 8
      %s281 = scalar_lea.vmem %s0, %s280
      %p282 = scmp.lt.s32.totalorder %s20, 1
      %s283 = scalar_select %p282, %s20, 1
      %s284 = smul.addr %s283, 2
      %s285 = smul.addr %s284, 8
      %s286 = scalar_lea.vmem %s6, %s285
      %p287 = scmp.lt.s32.totalorder %s20, 1
      %s288 = scalar_select %p287, %s20, 1
      %s289 = smul.addr %s288, 8
      %s290 = scalar_lea.vmem %s7, %s289
      %v291 = vld [vmem:[%s281] sm:$0xff]
      %v292 = vld [vmem:[%s281 + $0x8] sm:$0xff]
      %v293 = vld [vmem:[%s1] sm:$0xff]
      %295 = vset.pattern.permute.xlu0 0
      %296 = vperm.xlu0 %295, %v293
      %v297 = vpop.permute.xlu0 %296
      %v299 = vmul.f32 %v291, %v297
      %v300 = vmul.f32 %v292, %v297
      %v301 = vld [vmem:[%s2] sm:$0xff]
      %303 = vset.pattern.permute.xlu0 0
      %304 = vperm.xlu0 %303, %v301
      %v305 = vpop.permute.xlu0 %304
      %v307 = vadd.f32 %v299, %v305
      %v308 = vadd.f32 %v300, %v305
      %vm309 = vcmp.gt.f32.partialorder %v307, 0.0
      %vm310 = vcmp.gt.f32.partialorder %v308, 0.0
      %s311 = sld [smem:[#allocation2]]
      %v312 = vstv %s311
      %v313 = vmul.f32 %v307, %v312
      %v314 = vmul.f32 %v308, %v312
      %v315 = vsel %vm309, %v307, %v313
      %v316 = vsel %vm310, %v308, %v314
      %317 = vrot.lane.b32.xlu0 %v315, 17
      %v318 = vpop.permute.xlu0 %317
      %319 = vrot.lane.b32.xlu0 %v316, 17
      %v320 = vpop.permute.xlu0 %319
      %v321 = vlaneseq
      %v322 = vand.u32 %v321, 127
      %vm323 = vcmp.lt.s32.totalorder %v322, 17
      %v324 = vsel %vm323, %v318, %v320
      %v325 = vsel %vm323, %v320, %v318
      %v326 = vld [vmem:[%s5] ss:$8 sm:$0x3]
      %v328 = vlaneseq
      %v329 = vshrl.u32 %v328, 7
      %v330 = vsub.s32 0, %v329
      %v331 = vrot.slane %v326, %v330
      %v332 = vlaneseq
      %v333 = vshrl.u32 %v332, 7
      %v334 = vsub.s32 1, %v333
      %v335 = vrot.slane %v326, %v334
      %v338 = vmul.f32 %v325, %v331
      %v339 = vmul.f32 %v324, %v335
      %v340 = vld [vmem:[%s4] sm:$0xff]
      %341 = vrot.lane.b32.xlu0 %v315, 16
      %v342 = vpop.permute.xlu0 %341
      %343 = vrot.lane.b32.xlu0 %v316, 16
      %v344 = vpop.permute.xlu0 %343
      %vm345 = vcmp.lt.s32.totalorder %v322, 16
      %v346 = vsel %vm345, %v342, %v344
      %v347 = vsel %vm345, %v344, %v342
      %s348 = scalar_lea.vmem %s5, 1
      %v349 = vld [vmem:[%s348] ss:$8 sm:$0x3]
      %v351 = vlaneseq
      %v352 = vshrl.u32 %v351, 7
      %v353 = vsub.s32 0, %v352
      %v354 = vrot.slane %v349, %v353
      %v355 = vlaneseq
      %v356 = vshrl.u32 %v355, 7
      %v357 = vsub.s32 1, %v356
      %v358 = vrot.slane %v349, %v357
      %v361 = vmul.f32 %v347, %v354
      %v362 = vmul.f32 %v346, %v358
      %s363 = scalar_lea.vmem %s4, 8
      %v364 = vld [vmem:[%s363] sm:$0xff]
      %vm365 = vcmask 64512
      %v367 = vsel %vm365, %v364, 0
      %369 = vmatprep.subr.mxu0 0.0
      %370 = vmatpush1.msra.mxu0 0.0
      %371 = vmatprep.subr.mxu0 0.0
      %372 = vmatpush1.msra.mxu0 0.0
      %373 = vmatprep.subr.mxu0 0.0
      %374 = vmatpush1.msra.mxu0 0.0
      %375 = vmatprep.subr.mxu0 0.0
      %376 = vmatpush1.msra.mxu0 0.0
      %377 = vmatprep.subr.mxu0 0.0
      %378 = vmatpush1.msra.mxu0 0.0
      %379 = vmatprep.subr.mxu0 0.0
      %380 = vmatpush1.msra.mxu0 0.0
      %381 = vmatprep.subr.mxu0 0.0
      %382 = vmatpush1.msra.mxu0 0.0
      %383 = vmatprep.subr.mxu0 0.0
      %384 = vmatpush1.msra.mxu0 0.0
      %385 = vmatprep.subr.mxu0 0.0
      %386 = vmatpush1.msra.mxu0 0.0
      %387 = vmatprep.subr.mxu0 0.0
      %388 = vmatpush1.msra.mxu0 0.0
      %389 = vmatprep.subr.mxu0 0.0
      %390 = vmatpush1.msra.mxu0 0.0
      %391 = vmatprep.subr.mxu0 0.0
      %392 = vmatpush1.msra.mxu0 0.0
      %393 = vmatprep.subr.mxu0 0.0
      %394 = vmatpush1.msra.mxu0 0.0
      %395 = vmatprep.subr.mxu0 0.0
      %396 = vmatpush1.msra.mxu0 0.0
      %397 = vmatprep.subr.mxu0 0.0
      %398 = vmatpush1.msra.mxu0 0.0
      %399 = vmatprep.subr.mxu0 %v362
      %400 = vmatpush1.msra.mxu0 %v361
      %401 = vmatprep.subr.mxu0 0.0
      %402 = vmatpush2.msra.mxu0 0.0
      %403 = vmatprep.subr.mxu0 0.0
      %404 = vmatpush2.msra.mxu0 0.0
      %405 = vmatprep.subr.mxu0 0.0
      %406 = vmatpush2.msra.mxu0 0.0
      %407 = vmatprep.subr.mxu0 0.0
      %408 = vmatpush2.msra.mxu0 0.0
      %409 = vmatprep.subr.mxu0 0.0
      %410 = vmatpush2.msra.mxu0 0.0
      %411 = vmatprep.subr.mxu0 0.0
      %412 = vmatpush2.msra.mxu0 0.0
      %413 = vmatprep.subr.mxu0 0.0
      %414 = vmatpush2.msra.mxu0 0.0
      %415 = vmatprep.subr.mxu0 0.0
      %416 = vmatpush2.msra.mxu0 0.0
      %417 = vmatprep.subr.mxu0 0.0
      %418 = vmatpush2.msra.mxu0 0.0
      %419 = vmatprep.subr.mxu0 0.0
      %420 = vmatpush2.msra.mxu0 0.0
      %421 = vmatprep.subr.mxu0 0.0
      %422 = vmatpush2.msra.mxu0 0.0
      %423 = vmatprep.subr.mxu0 0.0
      %424 = vmatpush2.msra.mxu0 0.0
      %425 = vmatprep.subr.mxu0 0.0
      %426 = vmatpush2.msra.mxu0 0.0
      %427 = vmatprep.subr.mxu0 0.0
      %428 = vmatpush2.msra.mxu0 0.0
      %429 = vmatprep.subr.mxu0 0.0
      %430 = vmatpush2.msra.mxu0 0.0
      %431 = vmatprep.subr.mxu0 0.0
      %432 = vmatpush2.msra.mxu0 0.0
      %433 = vmatprep.mubr.f32.mxu0 0.0
      %434 = vmatmul.mubr.f32.gmra.mxu0 %v367
      %v435 = vpop.f32.mrf.mxu0
      %v436 = vadd.f32 0.0, %v435
      %v437 = vpop.f32.mrf.mxu0
      %v438 = vadd.f32 0.0, %v437
      %439 = vdwg.mxu0
      %v441 = vsel %vm365, %v340, 0
      %443 = vmatprep.subr.mxu0 0.0
      %444 = vmatpush1.msra.mxu0 0.0
      %445 = vmatprep.subr.mxu0 0.0
      %446 = vmatpush1.msra.mxu0 0.0
      %447 = vmatprep.subr.mxu0 0.0
      %448 = vmatpush1.msra.mxu0 0.0
      %449 = vmatprep.subr.mxu0 0.0
      %450 = vmatpush1.msra.mxu0 0.0
      %451 = vmatprep.subr.mxu0 0.0
      %452 = vmatpush1.msra.mxu0 0.0
      %453 = vmatprep.subr.mxu0 0.0
      %454 = vmatpush1.msra.mxu0 0.0
      %455 = vmatprep.subr.mxu0 0.0
      %456 = vmatpush1.msra.mxu0 0.0
      %457 = vmatprep.subr.mxu0 0.0
      %458 = vmatpush1.msra.mxu0 0.0
      %459 = vmatprep.subr.mxu0 0.0
      %460 = vmatpush1.msra.mxu0 0.0
      %461 = vmatprep.subr.mxu0 0.0
      %462 = vmatpush1.msra.mxu0 0.0
      %463 = vmatprep.subr.mxu0 0.0
      %464 = vmatpush1.msra.mxu0 0.0
      %465 = vmatprep.subr.mxu0 0.0
      %466 = vmatpush1.msra.mxu0 0.0
      %467 = vmatprep.subr.mxu0 0.0
      %468 = vmatpush1.msra.mxu0 0.0
      %469 = vmatprep.subr.mxu0 0.0
      %470 = vmatpush1.msra.mxu0 0.0
      %471 = vmatprep.subr.mxu0 0.0
      %472 = vmatpush1.msra.mxu0 0.0
      %473 = vmatprep.subr.mxu0 %v339
      %474 = vmatpush1.msra.mxu0 %v338
      %475 = vmatprep.subr.mxu0 0.0
      %476 = vmatpush2.msra.mxu0 0.0
      %477 = vmatprep.subr.mxu0 0.0
      %478 = vmatpush2.msra.mxu0 0.0
      %479 = vmatprep.subr.mxu0 0.0
      %480 = vmatpush2.msra.mxu0 0.0
      %481 = vmatprep.subr.mxu0 0.0
      %482 = vmatpush2.msra.mxu0 0.0
      %483 = vmatprep.subr.mxu0 0.0
      %484 = vmatpush2.msra.mxu0 0.0
      %485 = vmatprep.subr.mxu0 0.0
      %486 = vmatpush2.msra.mxu0 0.0
      %487 = vmatprep.subr.mxu0 0.0
      %488 = vmatpush2.msra.mxu0 0.0
      %489 = vmatprep.subr.mxu0 0.0
      %490 = vmatpush2.msra.mxu0 0.0
      %491 = vmatprep.subr.mxu0 0.0
      %492 = vmatpush2.msra.mxu0 0.0
      %493 = vmatprep.subr.mxu0 0.0
      %494 = vmatpush2.msra.mxu0 0.0
      %495 = vmatprep.subr.mxu0 0.0
      %496 = vmatpush2.msra.mxu0 0.0
      %497 = vmatprep.subr.mxu0 0.0
      %498 = vmatpush2.msra.mxu0 0.0
      %499 = vmatprep.subr.mxu0 0.0
      %500 = vmatpush2.msra.mxu0 0.0
      %501 = vmatprep.subr.mxu0 0.0
      %502 = vmatpush2.msra.mxu0 0.0
      %503 = vmatprep.subr.mxu0 0.0
      %504 = vmatpush2.msra.mxu0 0.0
      %505 = vmatprep.subr.mxu0 0.0
      %506 = vmatpush2.msra.mxu0 0.0
      %507 = vmatprep.mubr.f32.mxu0 0.0
      %508 = vmatmul.mubr.f32.gmra.mxu0 %v441
      %v509 = vpop.f32.mrf.mxu0
      %v510 = vadd.f32 %v436, %v509
      %v511 = vpop.f32.mrf.mxu0
      %v512 = vadd.f32 %v438, %v511
      %513 = vdwg.mxu0
      %514 = vrot.lane.b32.xlu0 %v315, 15
      %v515 = vpop.permute.xlu0 %514
      %516 = vrot.lane.b32.xlu0 %v316, 15
      %v517 = vpop.permute.xlu0 %516
      %vm518 = vcmp.lt.s32.totalorder %v322, 15
      %v519 = vsel %vm518, %v515, %v517
      %v520 = vsel %vm518, %v517, %v515
      %s521 = scalar_lea.vmem %s5, 2
      %v522 = vld [vmem:[%s521] ss:$8 sm:$0x3]
      %v524 = vlaneseq
      %v525 = vshrl.u32 %v524, 7
      %v526 = vsub.s32 0, %v525
      %v527 = vrot.slane %v522, %v526
      %v528 = vlaneseq
      %v529 = vshrl.u32 %v528, 7
      %v530 = vsub.s32 1, %v529
      %v531 = vrot.slane %v522, %v530
      %v534 = vmul.f32 %v520, %v527
      %v535 = vmul.f32 %v519, %v531
      %s536 = scalar_lea.vmem %s4, 16
      %v537 = vld [vmem:[%s536] sm:$0xff]
      %v539 = vsel %vm365, %v537, 0
      %541 = vmatprep.subr.mxu0 0.0
      %542 = vmatpush1.msra.mxu0 0.0
      %543 = vmatprep.subr.mxu0 0.0
      %544 = vmatpush1.msra.mxu0 0.0
      %545 = vmatprep.subr.mxu0 0.0
      %546 = vmatpush1.msra.mxu0 0.0
      %547 = vmatprep.subr.mxu0 0.0
      %548 = vmatpush1.msra.mxu0 0.0
      %549 = vmatprep.subr.mxu0 0.0
      %550 = vmatpush1.msra.mxu0 0.0
      %551 = vmatprep.subr.mxu0 0.0
      %552 = vmatpush1.msra.mxu0 0.0
      %553 = vmatprep.subr.mxu0 0.0
      %554 = vmatpush1.msra.mxu0 0.0
      %555 = vmatprep.subr.mxu0 0.0
      %556 = vmatpush1.msra.mxu0 0.0
      %557 = vmatprep.subr.mxu0 0.0
      %558 = vmatpush1.msra.mxu0 0.0
      %559 = vmatprep.subr.mxu0 0.0
      %560 = vmatpush1.msra.mxu0 0.0
      %561 = vmatprep.subr.mxu0 0.0
      %562 = vmatpush1.msra.mxu0 0.0
      %563 = vmatprep.subr.mxu0 0.0
      %564 = vmatpush1.msra.mxu0 0.0
      %565 = vmatprep.subr.mxu0 0.0
      %566 = vmatpush1.msra.mxu0 0.0
      %567 = vmatprep.subr.mxu0 0.0
      %568 = vmatpush1.msra.mxu0 0.0
      %569 = vmatprep.subr.mxu0 0.0
      %570 = vmatpush1.msra.mxu0 0.0
      %571 = vmatprep.subr.mxu0 %v535
      %572 = vmatpush1.msra.mxu0 %v534
      %573 = vmatprep.subr.mxu0 0.0
      %574 = vmatpush2.msra.mxu0 0.0
      %575 = vmatprep.subr.mxu0 0.0
      %576 = vmatpush2.msra.mxu0 0.0
      %577 = vmatprep.subr.mxu0 0.0
      %578 = vmatpush2.msra.mxu0 0.0
      %579 = vmatprep.subr.mxu0 0.0
      %580 = vmatpush2.msra.mxu0 0.0
      %581 = vmatprep.subr.mxu0 0.0
      %582 = vmatpush2.msra.mxu0 0.0
      %583 = vmatprep.subr.mxu0 0.0
      %584 = vmatpush2.msra.mxu0 0.0
      %585 = vmatprep.subr.mxu0 0.0
      %586 = vmatpush2.msra.mxu0 0.0
      %587 = vmatprep.subr.mxu0 0.0
      %588 = vmatpush2.msra.mxu0 0.0
      %589 = vmatprep.subr.mxu0 0.0
      %590 = vmatpush2.msra.mxu0 0.0
      %591 = vmatprep.subr.mxu0 0.0
      %592 = vmatpush2.msra.mxu0 0.0
      %593 = vmatprep.subr.mxu0 0.0
      %594 = vmatpush2.msra.mxu0 0.0
      %595 = vmatprep.subr.mxu0 0.0
      %596 = vmatpush2.msra.mxu0 0.0
      %597 = vmatprep.subr.mxu0 0.0
      %598 = vmatpush2.msra.mxu0 0.0
      %599 = vmatprep.subr.mxu0 0.0
      %600 = vmatpush2.msra.mxu0 0.0
      %601 = vmatprep.subr.mxu0 0.0
      %602 = vmatpush2.msra.mxu0 0.0
      %603 = vmatprep.subr.mxu0 0.0
      %604 = vmatpush2.msra.mxu0 0.0
      %605 = vmatprep.mubr.f32.mxu0 0.0
      %606 = vmatmul.mubr.f32.gmra.mxu0 %v539
      %v607 = vpop.f32.mrf.mxu0
      %v608 = vadd.f32 0.0, %v607
      %v609 = vpop.f32.mrf.mxu0
      %v610 = vadd.f32 0.0, %v609
      %611 = vdwg.mxu0
      %v612 = vadd.f32 %v510, %v608
      %v613 = vadd.f32 %v512, %v610
      %614 = vrot.lane.b32.xlu0 %v315, 1
      %v615 = vpop.permute.xlu0 %614
      %616 = vrot.lane.b32.xlu0 %v316, 1
      %v617 = vpop.permute.xlu0 %616
      %vm618 = vcmp.lt.s32.totalorder %v322, 1
      %v619 = vsel %vm618, %v615, %v617
      %v620 = vsel %vm618, %v617, %v615
      %s621 = scalar_lea.vmem %s5, 3
      %v622 = vld [vmem:[%s621] ss:$8 sm:$0x3]
      %v624 = vlaneseq
      %v625 = vshrl.u32 %v624, 7
      %v626 = vsub.s32 0, %v625
      %v627 = vrot.slane %v622, %v626
      %v628 = vlaneseq
      %v629 = vshrl.u32 %v628, 7
      %v630 = vsub.s32 1, %v629
      %v631 = vrot.slane %v622, %v630
      %v634 = vmul.f32 %v620, %v627
      %v635 = vmul.f32 %v619, %v631
      %s636 = scalar_lea.vmem %s4, 24
      %v637 = vld [vmem:[%s636] sm:$0xff]
      %v639 = vsel %vm365, %v637, 0
      %641 = vmatprep.subr.mxu0 0.0
      %642 = vmatpush1.msra.mxu0 0.0
      %643 = vmatprep.subr.mxu0 0.0
      %644 = vmatpush1.msra.mxu0 0.0
      %645 = vmatprep.subr.mxu0 0.0
      %646 = vmatpush1.msra.mxu0 0.0
      %647 = vmatprep.subr.mxu0 0.0
      %648 = vmatpush1.msra.mxu0 0.0
      %649 = vmatprep.subr.mxu0 0.0
      %650 = vmatpush1.msra.mxu0 0.0
      %651 = vmatprep.subr.mxu0 0.0
      %652 = vmatpush1.msra.mxu0 0.0
      %653 = vmatprep.subr.mxu0 0.0
      %654 = vmatpush1.msra.mxu0 0.0
      %655 = vmatprep.subr.mxu0 0.0
      %656 = vmatpush1.msra.mxu0 0.0
      %657 = vmatprep.subr.mxu0 0.0
      %658 = vmatpush1.msra.mxu0 0.0
      %659 = vmatprep.subr.mxu0 0.0
      %660 = vmatpush1.msra.mxu0 0.0
      %661 = vmatprep.subr.mxu0 0.0
      %662 = vmatpush1.msra.mxu0 0.0
      %663 = vmatprep.subr.mxu0 0.0
      %664 = vmatpush1.msra.mxu0 0.0
      %665 = vmatprep.subr.mxu0 0.0
      %666 = vmatpush1.msra.mxu0 0.0
      %667 = vmatprep.subr.mxu0 0.0
      %668 = vmatpush1.msra.mxu0 0.0
      %669 = vmatprep.subr.mxu0 0.0
      %670 = vmatpush1.msra.mxu0 0.0
      %671 = vmatprep.subr.mxu0 %v635
      %672 = vmatpush1.msra.mxu0 %v634
      %673 = vmatprep.subr.mxu0 0.0
      %674 = vmatpush2.msra.mxu0 0.0
      %675 = vmatprep.subr.mxu0 0.0
      %676 = vmatpush2.msra.mxu0 0.0
      %677 = vmatprep.subr.mxu0 0.0
      %678 = vmatpush2.msra.mxu0 0.0
      %679 = vmatprep.subr.mxu0 0.0
      %680 = vmatpush2.msra.mxu0 0.0
      %681 = vmatprep.subr.mxu0 0.0
      %682 = vmatpush2.msra.mxu0 0.0
      %683 = vmatprep.subr.mxu0 0.0
      %684 = vmatpush2.msra.mxu0 0.0
      %685 = vmatprep.subr.mxu0 0.0
      %686 = vmatpush2.msra.mxu0 0.0
      %687 = vmatprep.subr.mxu0 0.0
      %688 = vmatpush2.msra.mxu0 0.0
      %689 = vmatprep.subr.mxu0 0.0
      %690 = vmatpush2.msra.mxu0 0.0
      %691 = vmatprep.subr.mxu0 0.0
      %692 = vmatpush2.msra.mxu0 0.0
      %693 = vmatprep.subr.mxu0 0.0
      %694 = vmatpush2.msra.mxu0 0.0
      %695 = vmatprep.subr.mxu0 0.0
      %696 = vmatpush2.msra.mxu0 0.0
      %697 = vmatprep.subr.mxu0 0.0
      %698 = vmatpush2.msra.mxu0 0.0
      %699 = vmatprep.subr.mxu0 0.0
      %700 = vmatpush2.msra.mxu0 0.0
      %701 = vmatprep.subr.mxu0 0.0
      %702 = vmatpush2.msra.mxu0 0.0
      %703 = vmatprep.subr.mxu0 0.0
      %704 = vmatpush2.msra.mxu0 0.0
      %705 = vmatprep.mubr.f32.mxu0 0.0
      %706 = vmatmul.mubr.f32.gmra.mxu0 %v639
      %v707 = vpop.f32.mrf.mxu0
      %v708 = vadd.f32 0.0, %v707
      %v709 = vpop.f32.mrf.mxu0
      %v710 = vadd.f32 0.0, %v709
      %711 = vdwg.mxu0
      %v712 = vadd.f32 %v612, %v708
      %v713 = vadd.f32 %v613, %v710
      %s714 = scalar_lea.vmem %s4, 32
      %v715 = vld [vmem:[%s714] sm:$0xff]
      %v717 = vsel %vm365, %v715, 0
      %719 = vmatprep.subr.mxu0 0.0
      %720 = vmatpush1.msra.mxu0 0.0
      %721 = vmatprep.subr.mxu0 0.0
      %722 = vmatpush1.msra.mxu0 0.0
      %723 = vmatprep.subr.mxu0 0.0
      %724 = vmatpush1.msra.mxu0 0.0
      %725 = vmatprep.subr.mxu0 0.0
      %726 = vmatpush1.msra.mxu0 0.0
      %727 = vmatprep.subr.mxu0 0.0
      %728 = vmatpush1.msra.mxu0 0.0
      %729 = vmatprep.subr.mxu0 0.0
      %730 = vmatpush1.msra.mxu0 0.0
      %731 = vmatprep.subr.mxu0 0.0
      %732 = vmatpush1.msra.mxu0 0.0
      %733 = vmatprep.subr.mxu0 0.0
      %734 = vmatpush1.msra.mxu0 0.0
      %735 = vmatprep.subr.mxu0 0.0
      %736 = vmatpush1.msra.mxu0 0.0
      %737 = vmatprep.subr.mxu0 0.0
      %738 = vmatpush1.msra.mxu0 0.0
      %739 = vmatprep.subr.mxu0 0.0
      %740 = vmatpush1.msra.mxu0 0.0
      %741 = vmatprep.subr.mxu0 0.0
      %742 = vmatpush1.msra.mxu0 0.0
      %743 = vmatprep.subr.mxu0 0.0
      %744 = vmatpush1.msra.mxu0 0.0
      %745 = vmatprep.subr.mxu0 0.0
      %746 = vmatpush1.msra.mxu0 0.0
      %747 = vmatprep.subr.mxu0 0.0
      %748 = vmatpush1.msra.mxu0 0.0
      %749 = vmatprep.subr.mxu0 %v316
      %750 = vmatpush1.msra.mxu0 %v315
      %751 = vmatprep.subr.mxu0 0.0
      %752 = vmatpush2.msra.mxu0 0.0
      %753 = vmatprep.subr.mxu0 0.0
      %754 = vmatpush2.msra.mxu0 0.0
      %755 = vmatprep.subr.mxu0 0.0
      %756 = vmatpush2.msra.mxu0 0.0
      %757 = vmatprep.subr.mxu0 0.0
      %758 = vmatpush2.msra.mxu0 0.0
      %759 = vmatprep.subr.mxu0 0.0
      %760 = vmatpush2.msra.mxu0 0.0
      %761 = vmatprep.subr.mxu0 0.0
      %762 = vmatpush2.msra.mxu0 0.0
      %763 = vmatprep.subr.mxu0 0.0
      %764 = vmatpush2.msra.mxu0 0.0
      %765 = vmatprep.subr.mxu0 0.0
      %766 = vmatpush2.msra.mxu0 0.0
      %767 = vmatprep.subr.mxu0 0.0
      %768 = vmatpush2.msra.mxu0 0.0
      %769 = vmatprep.subr.mxu0 0.0
      %770 = vmatpush2.msra.mxu0 0.0
      %771 = vmatprep.subr.mxu0 0.0
      %772 = vmatpush2.msra.mxu0 0.0
      %773 = vmatprep.subr.mxu0 0.0
      %774 = vmatpush2.msra.mxu0 0.0
      %775 = vmatprep.subr.mxu0 0.0
      %776 = vmatpush2.msra.mxu0 0.0
      %777 = vmatprep.subr.mxu0 0.0
      %778 = vmatpush2.msra.mxu0 0.0
      %779 = vmatprep.subr.mxu0 0.0
      %780 = vmatpush2.msra.mxu0 0.0
      %781 = vmatprep.subr.mxu0 0.0
      %782 = vmatpush2.msra.mxu0 0.0
      %783 = vmatprep.mubr.f32.mxu0 0.0
      %784 = vmatmul.mubr.f32.gmra.mxu0 %v717
      %v785 = vpop.f32.mrf.mxu0
      %v786 = vadd.f32 0.0, %v785
      %v787 = vpop.f32.mrf.mxu0
      %v788 = vadd.f32 0.0, %v787
      %789 = vdwg.mxu0
      %v790 = vadd.f32 %v712, %v786
      %v791 = vadd.f32 %v713, %v788
      %792 = vrot.lane.b32.xlu0 %v315, 127
      %v793 = vpop.permute.xlu0 %792
      %794 = vrot.lane.b32.xlu0 %v316, 127
      %v795 = vpop.permute.xlu0 %794
      %vm796 = vcmp.lt.s32.totalorder %v322, 127
      %v797 = vsel %vm796, %v793, %v795
      %v798 = vsel %vm796, %v795, %v793
      %s799 = scalar_lea.vmem %s5, 5
      %v800 = vld [vmem:[%s799] ss:$8 sm:$0x3]
      %v802 = vlaneseq
      %v803 = vshrl.u32 %v802, 7
      %v804 = vsub.s32 0, %v803
      %v805 = vrot.slane %v800, %v804
      %v806 = vlaneseq
      %v807 = vshrl.u32 %v806, 7
      %v808 = vsub.s32 1, %v807
      %v809 = vrot.slane %v800, %v808
      %v812 = vmul.f32 %v797, %v805
      %v813 = vmul.f32 %v798, %v809
      %s814 = scalar_lea.vmem %s4, 40
      %v815 = vld [vmem:[%s814] sm:$0xff]
      %v817 = vsel %vm365, %v815, 0
      %819 = vmatprep.subr.mxu0 0.0
      %820 = vmatpush1.msra.mxu0 0.0
      %821 = vmatprep.subr.mxu0 0.0
      %822 = vmatpush1.msra.mxu0 0.0
      %823 = vmatprep.subr.mxu0 0.0
      %824 = vmatpush1.msra.mxu0 0.0
      %825 = vmatprep.subr.mxu0 0.0
      %826 = vmatpush1.msra.mxu0 0.0
      %827 = vmatprep.subr.mxu0 0.0
      %828 = vmatpush1.msra.mxu0 0.0
      %829 = vmatprep.subr.mxu0 0.0
      %830 = vmatpush1.msra.mxu0 0.0
      %831 = vmatprep.subr.mxu0 0.0
      %832 = vmatpush1.msra.mxu0 0.0
      %833 = vmatprep.subr.mxu0 0.0
      %834 = vmatpush1.msra.mxu0 0.0
      %835 = vmatprep.subr.mxu0 0.0
      %836 = vmatpush1.msra.mxu0 0.0
      %837 = vmatprep.subr.mxu0 0.0
      %838 = vmatpush1.msra.mxu0 0.0
      %839 = vmatprep.subr.mxu0 0.0
      %840 = vmatpush1.msra.mxu0 0.0
      %841 = vmatprep.subr.mxu0 0.0
      %842 = vmatpush1.msra.mxu0 0.0
      %843 = vmatprep.subr.mxu0 0.0
      %844 = vmatpush1.msra.mxu0 0.0
      %845 = vmatprep.subr.mxu0 0.0
      %846 = vmatpush1.msra.mxu0 0.0
      %847 = vmatprep.subr.mxu0 0.0
      %848 = vmatpush1.msra.mxu0 0.0
      %849 = vmatprep.subr.mxu0 %v813
      %850 = vmatpush1.msra.mxu0 %v812
      %851 = vmatprep.subr.mxu0 0.0
      %852 = vmatpush2.msra.mxu0 0.0
      %853 = vmatprep.subr.mxu0 0.0
      %854 = vmatpush2.msra.mxu0 0.0
      %855 = vmatprep.subr.mxu0 0.0
      %856 = vmatpush2.msra.mxu0 0.0
      %857 = vmatprep.subr.mxu0 0.0
      %858 = vmatpush2.msra.mxu0 0.0
      %859 = vmatprep.subr.mxu0 0.0
      %860 = vmatpush2.msra.mxu0 0.0
      %861 = vmatprep.subr.mxu0 0.0
      %862 = vmatpush2.msra.mxu0 0.0
      %863 = vmatprep.subr.mxu0 0.0
      %864 = vmatpush2.msra.mxu0 0.0
      %865 = vmatprep.subr.mxu0 0.0
      %866 = vmatpush2.msra.mxu0 0.0
      %867 = vmatprep.subr.mxu0 0.0
      %868 = vmatpush2.msra.mxu0 0.0
      %869 = vmatprep.subr.mxu0 0.0
      %870 = vmatpush2.msra.mxu0 0.0
      %871 = vmatprep.subr.mxu0 0.0
      %872 = vmatpush2.msra.mxu0 0.0
      %873 = vmatprep.subr.mxu0 0.0
      %874 = vmatpush2.msra.mxu0 0.0
      %875 = vmatprep.subr.mxu0 0.0
      %876 = vmatpush2.msra.mxu0 0.0
      %877 = vmatprep.subr.mxu0 0.0
      %878 = vmatpush2.msra.mxu0 0.0
      %879 = vmatprep.subr.mxu0 0.0
      %880 = vmatpush2.msra.mxu0 0.0
      %881 = vmatprep.subr.mxu0 0.0
      %882 = vmatpush2.msra.mxu0 0.0
      %883 = vmatprep.mubr.f32.mxu0 0.0
      %884 = vmatmul.mubr.f32.gmra.mxu0 %v817
      %v885 = vpop.f32.mrf.mxu0
      %v886 = vadd.f32 0.0, %v885
      %v887 = vpop.f32.mrf.mxu0
      %v888 = vadd.f32 0.0, %v887
      %889 = vdwg.mxu0
      %v890 = vadd.f32 %v790, %v886
      %v891 = vadd.f32 %v791, %v888
      %892 = vrot.lane.b32.xlu0 %v315, 113
      %v893 = vpop.permute.xlu0 %892
      %894 = vrot.lane.b32.xlu0 %v316, 113
      %v895 = vpop.permute.xlu0 %894
      %vm896 = vcmp.lt.s32.totalorder %v322, 113
      %v897 = vsel %vm896, %v893, %v895
      %v898 = vsel %vm896, %v895, %v893
      %s899 = scalar_lea.vmem %s5, 6
      %v900 = vld [vmem:[%s899] ss:$8 sm:$0x3]
      %v902 = vlaneseq
      %v903 = vshrl.u32 %v902, 7
      %v904 = vsub.s32 0, %v903
      %v905 = vrot.slane %v900, %v904
      %v906 = vlaneseq
      %v907 = vshrl.u32 %v906, 7
      %v908 = vsub.s32 1, %v907
      %v909 = vrot.slane %v900, %v908
      %v912 = vmul.f32 %v897, %v905
      %v913 = vmul.f32 %v898, %v909
      %s914 = scalar_lea.vmem %s4, 48
      %v915 = vld [vmem:[%s914] sm:$0xff]
      %v917 = vsel %vm365, %v915, 0
      %919 = vmatprep.subr.mxu0 0.0
      %920 = vmatpush1.msra.mxu0 0.0
      %921 = vmatprep.subr.mxu0 0.0
      %922 = vmatpush1.msra.mxu0 0.0
      %923 = vmatprep.subr.mxu0 0.0
      %924 = vmatpush1.msra.mxu0 0.0
      %925 = vmatprep.subr.mxu0 0.0
      %926 = vmatpush1.msra.mxu0 0.0
      %927 = vmatprep.subr.mxu0 0.0
      %928 = vmatpush1.msra.mxu0 0.0
      %929 = vmatprep.subr.mxu0 0.0
      %930 = vmatpush1.msra.mxu0 0.0
      %931 = vmatprep.subr.mxu0 0.0
      %932 = vmatpush1.msra.mxu0 0.0
      %933 = vmatprep.subr.mxu0 0.0
      %934 = vmatpush1.msra.mxu0 0.0
      %935 = vmatprep.subr.mxu0 0.0
      %936 = vmatpush1.msra.mxu0 0.0
      %937 = vmatprep.subr.mxu0 0.0
      %938 = vmatpush1.msra.mxu0 0.0
      %939 = vmatprep.subr.mxu0 0.0
      %940 = vmatpush1.msra.mxu0 0.0
      %941 = vmatprep.subr.mxu0 0.0
      %942 = vmatpush1.msra.mxu0 0.0
      %943 = vmatprep.subr.mxu0 0.0
      %944 = vmatpush1.msra.mxu0 0.0
      %945 = vmatprep.subr.mxu0 0.0
      %946 = vmatpush1.msra.mxu0 0.0
      %947 = vmatprep.subr.mxu0 0.0
      %948 = vmatpush1.msra.mxu0 0.0
      %949 = vmatprep.subr.mxu0 %v913
      %950 = vmatpush1.msra.mxu0 %v912
      %951 = vmatprep.subr.mxu0 0.0
      %952 = vmatpush2.msra.mxu0 0.0
      %953 = vmatprep.subr.mxu0 0.0
      %954 = vmatpush2.msra.mxu0 0.0
      %955 = vmatprep.subr.mxu0 0.0
      %956 = vmatpush2.msra.mxu0 0.0
      %957 = vmatprep.subr.mxu0 0.0
      %958 = vmatpush2.msra.mxu0 0.0
      %959 = vmatprep.subr.mxu0 0.0
      %960 = vmatpush2.msra.mxu0 0.0
      %961 = vmatprep.subr.mxu0 0.0
      %962 = vmatpush2.msra.mxu0 0.0
      %963 = vmatprep.subr.mxu0 0.0
      %964 = vmatpush2.msra.mxu0 0.0
      %965 = vmatprep.subr.mxu0 0.0
      %966 = vmatpush2.msra.mxu0 0.0
      %967 = vmatprep.subr.mxu0 0.0
      %968 = vmatpush2.msra.mxu0 0.0
      %969 = vmatprep.subr.mxu0 0.0
      %970 = vmatpush2.msra.mxu0 0.0
      %971 = vmatprep.subr.mxu0 0.0
      %972 = vmatpush2.msra.mxu0 0.0
      %973 = vmatprep.subr.mxu0 0.0
      %974 = vmatpush2.msra.mxu0 0.0
      %975 = vmatprep.subr.mxu0 0.0
      %976 = vmatpush2.msra.mxu0 0.0
      %977 = vmatprep.subr.mxu0 0.0
      %978 = vmatpush2.msra.mxu0 0.0
      %979 = vmatprep.subr.mxu0 0.0
      %980 = vmatpush2.msra.mxu0 0.0
      %981 = vmatprep.subr.mxu0 0.0
      %982 = vmatpush2.msra.mxu0 0.0
      %983 = vmatprep.mubr.f32.mxu0 0.0
      %984 = vmatmul.mubr.f32.gmra.mxu0 %v917
      %v985 = vpop.f32.mrf.mxu0
      %v986 = vadd.f32 0.0, %v985
      %v987 = vpop.f32.mrf.mxu0
      %v988 = vadd.f32 0.0, %v987
      %989 = vdwg.mxu0
      %v990 = vadd.f32 %v890, %v986
      %v991 = vadd.f32 %v891, %v988
      %992 = vrot.lane.b32.xlu0 %v315, 112
      %v993 = vpop.permute.xlu0 %992
      %994 = vrot.lane.b32.xlu0 %v316, 112
      %v995 = vpop.permute.xlu0 %994
      %vm996 = vcmp.lt.s32.totalorder %v322, 112
      %v997 = vsel %vm996, %v993, %v995
      %v998 = vsel %vm996, %v995, %v993
      %s999 = scalar_lea.vmem %s5, 7
      %v1000 = vld [vmem:[%s999] ss:$8 sm:$0x3]
      %v1002 = vlaneseq
      %v1003 = vshrl.u32 %v1002, 7
      %v1004 = vsub.s32 0, %v1003
      %v1005 = vrot.slane %v1000, %v1004
      %v1006 = vlaneseq
      %v1007 = vshrl.u32 %v1006, 7
      %v1008 = vsub.s32 1, %v1007
      %v1009 = vrot.slane %v1000, %v1008
      %v1012 = vmul.f32 %v997, %v1005
      %v1013 = vmul.f32 %v998, %v1009
      %s1014 = scalar_lea.vmem %s4, 56
      %v1015 = vld [vmem:[%s1014] sm:$0xff]
      %v1017 = vsel %vm365, %v1015, 0
      %1019 = vmatprep.subr.mxu0 0.0
      %1020 = vmatpush1.msra.mxu0 0.0
      %1021 = vmatprep.subr.mxu0 0.0
      %1022 = vmatpush1.msra.mxu0 0.0
      %1023 = vmatprep.subr.mxu0 0.0
      %1024 = vmatpush1.msra.mxu0 0.0
      %1025 = vmatprep.subr.mxu0 0.0
      %1026 = vmatpush1.msra.mxu0 0.0
      %1027 = vmatprep.subr.mxu0 0.0
      %1028 = vmatpush1.msra.mxu0 0.0
      %1029 = vmatprep.subr.mxu0 0.0
      %1030 = vmatpush1.msra.mxu0 0.0
      %1031 = vmatprep.subr.mxu0 0.0
      %1032 = vmatpush1.msra.mxu0 0.0
      %1033 = vmatprep.subr.mxu0 0.0
      %1034 = vmatpush1.msra.mxu0 0.0
      %1035 = vmatprep.subr.mxu0 0.0
      %1036 = vmatpush1.msra.mxu0 0.0
      %1037 = vmatprep.subr.mxu0 0.0
      %1038 = vmatpush1.msra.mxu0 0.0
      %1039 = vmatprep.subr.mxu0 0.0
      %1040 = vmatpush1.msra.mxu0 0.0
      %1041 = vmatprep.subr.mxu0 0.0
      %1042 = vmatpush1.msra.mxu0 0.0
      %1043 = vmatprep.subr.mxu0 0.0
      %1044 = vmatpush1.msra.mxu0 0.0
      %1045 = vmatprep.subr.mxu0 0.0
      %1046 = vmatpush1.msra.mxu0 0.0
      %1047 = vmatprep.subr.mxu0 0.0
      %1048 = vmatpush1.msra.mxu0 0.0
      %1049 = vmatprep.subr.mxu0 %v1013
      %1050 = vmatpush1.msra.mxu0 %v1012
      %1051 = vmatprep.subr.mxu0 0.0
      %1052 = vmatpush2.msra.mxu0 0.0
      %1053 = vmatprep.subr.mxu0 0.0
      %1054 = vmatpush2.msra.mxu0 0.0
      %1055 = vmatprep.subr.mxu0 0.0
      %1056 = vmatpush2.msra.mxu0 0.0
      %1057 = vmatprep.subr.mxu0 0.0
      %1058 = vmatpush2.msra.mxu0 0.0
      %1059 = vmatprep.subr.mxu0 0.0
      %1060 = vmatpush2.msra.mxu0 0.0
      %1061 = vmatprep.subr.mxu0 0.0
      %1062 = vmatpush2.msra.mxu0 0.0
      %1063 = vmatprep.subr.mxu0 0.0
      %1064 = vmatpush2.msra.mxu0 0.0
      %1065 = vmatprep.subr.mxu0 0.0
      %1066 = vmatpush2.msra.mxu0 0.0
      %1067 = vmatprep.subr.mxu0 0.0
      %1068 = vmatpush2.msra.mxu0 0.0
      %1069 = vmatprep.subr.mxu0 0.0
      %1070 = vmatpush2.msra.mxu0 0.0
      %1071 = vmatprep.subr.mxu0 0.0
      %1072 = vmatpush2.msra.mxu0 0.0
      %1073 = vmatprep.subr.mxu0 0.0
      %1074 = vmatpush2.msra.mxu0 0.0
      %1075 = vmatprep.subr.mxu0 0.0
      %1076 = vmatpush2.msra.mxu0 0.0
      %1077 = vmatprep.subr.mxu0 0.0
      %1078 = vmatpush2.msra.mxu0 0.0
      %1079 = vmatprep.subr.mxu0 0.0
      %1080 = vmatpush2.msra.mxu0 0.0
      %1081 = vmatprep.subr.mxu0 0.0
      %1082 = vmatpush2.msra.mxu0 0.0
      %1083 = vmatprep.mubr.f32.mxu0 0.0
      %1084 = vmatmul.mubr.f32.gmra.mxu0 %v1017
      %v1085 = vpop.f32.mrf.mxu0
      %v1086 = vadd.f32 0.0, %v1085
      %v1087 = vpop.f32.mrf.mxu0
      %v1088 = vadd.f32 0.0, %v1087
      %1089 = vdwg.mxu0
      %v1090 = vadd.f32 %v990, %v1086
      %v1091 = vadd.f32 %v991, %v1088
      %1092 = vrot.lane.b32.xlu0 %v315, 111
      %v1093 = vpop.permute.xlu0 %1092
      %1094 = vrot.lane.b32.xlu0 %v316, 111
      %v1095 = vpop.permute.xlu0 %1094
      %vm1096 = vcmp.lt.s32.totalorder %v322, 111
      %v1097 = vsel %vm1096, %v1093, %v1095
      %v1098 = vsel %vm1096, %v1095, %v1093
      %s1099 = scalar_lea.vmem %s5, 16
      %v1100 = vld [vmem:[%s1099] ss:$8 sm:$0x3]
      %v1102 = vlaneseq
      %v1103 = vshrl.u32 %v1102, 7
      %v1104 = vsub.s32 0, %v1103
      %v1105 = vrot.slane %v1100, %v1104
      %v1106 = vlaneseq
      %v1107 = vshrl.u32 %v1106, 7
      %v1108 = vsub.s32 1, %v1107
      %v1109 = vrot.slane %v1100, %v1108
      %v1112 = vmul.f32 %v1097, %v1105
      %v1113 = vmul.f32 %v1098, %v1109
      %s1114 = scalar_lea.vmem %s4, 64
      %v1115 = vld [vmem:[%s1114] sm:$0xff]
      %v1117 = vsel %vm365, %v1115, 0
      %1119 = vmatprep.subr.mxu0 0.0
      %1120 = vmatpush1.msra.mxu0 0.0
      %1121 = vmatprep.subr.mxu0 0.0
      %1122 = vmatpush1.msra.mxu0 0.0
      %1123 = vmatprep.subr.mxu0 0.0
      %1124 = vmatpush1.msra.mxu0 0.0
      %1125 = vmatprep.subr.mxu0 0.0
      %1126 = vmatpush1.msra.mxu0 0.0
      %1127 = vmatprep.subr.mxu0 0.0
      %1128 = vmatpush1.msra.mxu0 0.0
      %1129 = vmatprep.subr.mxu0 0.0
      %1130 = vmatpush1.msra.mxu0 0.0
      %1131 = vmatprep.subr.mxu0 0.0
      %1132 = vmatpush1.msra.mxu0 0.0
      %1133 = vmatprep.subr.mxu0 0.0
      %1134 = vmatpush1.msra.mxu0 0.0
      %1135 = vmatprep.subr.mxu0 0.0
      %1136 = vmatpush1.msra.mxu0 0.0
      %1137 = vmatprep.subr.mxu0 0.0
      %1138 = vmatpush1.msra.mxu0 0.0
      %1139 = vmatprep.subr.mxu0 0.0
      %1140 = vmatpush1.msra.mxu0 0.0
      %1141 = vmatprep.subr.mxu0 0.0
      %1142 = vmatpush1.msra.mxu0 0.0
      %1143 = vmatprep.subr.mxu0 0.0
      %1144 = vmatpush1.msra.mxu0 0.0
      %1145 = vmatprep.subr.mxu0 0.0
      %1146 = vmatpush1.msra.mxu0 0.0
      %1147 = vmatprep.subr.mxu0 0.0
      %1148 = vmatpush1.msra.mxu0 0.0
      %1149 = vmatprep.subr.mxu0 %v1113
      %1150 = vmatpush1.msra.mxu0 %v1112
      %1151 = vmatprep.subr.mxu0 0.0
      %1152 = vmatpush2.msra.mxu0 0.0
      %1153 = vmatprep.subr.mxu0 0.0
      %1154 = vmatpush2.msra.mxu0 0.0
      %1155 = vmatprep.subr.mxu0 0.0
      %1156 = vmatpush2.msra.mxu0 0.0
      %1157 = vmatprep.subr.mxu0 0.0
      %1158 = vmatpush2.msra.mxu0 0.0
      %1159 = vmatprep.subr.mxu0 0.0
      %1160 = vmatpush2.msra.mxu0 0.0
      %1161 = vmatprep.subr.mxu0 0.0
      %1162 = vmatpush2.msra.mxu0 0.0
      %1163 = vmatprep.subr.mxu0 0.0
      %1164 = vmatpush2.msra.mxu0 0.0
      %1165 = vmatprep.subr.mxu0 0.0
      %1166 = vmatpush2.msra.mxu0 0.0
      %1167 = vmatprep.subr.mxu0 0.0
      %1168 = vmatpush2.msra.mxu0 0.0
      %1169 = vmatprep.subr.mxu0 0.0
      %1170 = vmatpush2.msra.mxu0 0.0
      %1171 = vmatprep.subr.mxu0 0.0
      %1172 = vmatpush2.msra.mxu0 0.0
      %1173 = vmatprep.subr.mxu0 0.0
      %1174 = vmatpush2.msra.mxu0 0.0
      %1175 = vmatprep.subr.mxu0 0.0
      %1176 = vmatpush2.msra.mxu0 0.0
      %1177 = vmatprep.subr.mxu0 0.0
      %1178 = vmatpush2.msra.mxu0 0.0
      %1179 = vmatprep.subr.mxu0 0.0
      %1180 = vmatpush2.msra.mxu0 0.0
      %1181 = vmatprep.subr.mxu0 0.0
      %1182 = vmatpush2.msra.mxu0 0.0
      %1183 = vmatprep.mubr.f32.mxu0 0.0
      %1184 = vmatmul.mubr.f32.gmra.mxu0 %v1117
      %v1185 = vpop.f32.mrf.mxu0
      %v1186 = vadd.f32 0.0, %v1185
      %v1187 = vpop.f32.mrf.mxu0
      %v1188 = vadd.f32 0.0, %v1187
      %1189 = vdwg.mxu0
      %v1190 = vadd.f32 %v1090, %v1186
      %v1191 = vadd.f32 %v1091, %v1188
      %v1192 = vadd.f32 %v1190, %v1191
      %1193 = vadd.xlane.f32.xlu0 %v1192
      %v1194 = vpop.xlane.xlu0 %1193
      %vm1195 = vcmask 7168
      %1196 = vst.msk [vmem:[%s290] sm:$0xff] %vm1195, %v1194
      %v1197 = vmul.f32 %v1190, %v1190
      %v1198 = vmul.f32 %v1191, %v1191
      %v1199 = vadd.f32 %v1197, %v1198
      %1200 = vadd.xlane.f32.xlu0 %v1199
      %v1201 = vpop.xlane.xlu0 %1200
      %vm1202 = vcmask 15368
      %1203 = vst.msk [vmem:[%s290] sm:$0xff] %vm1202, %v1201
      %1204 = vst [vmem:[%s286] sm:$0xff] %v1190
      %1205 = vst [vmem:[%s286 + $0x8] sm:$0xff] %v1191
      %p1206 = scmp.lt.s32.totalorder %s20, 1
      %s1207 = scalar_select %p1206, %s20, 1
      %s1208 = smul.addr %s1207, 2
      %s1209 = smul.addr %s1208, 8
      %s1210 = scalar_lea.vmem %s6, %s1209
      %p1211 = scmp.lt.s32.totalorder %s20, 1
      %s1212 = scalar_select %p1211, %s20, 1
      %s1213 = smul.addr %s1212, 8
      %s1214 = scalar_lea.vmem %s7, %s1213
      // Predicated region
      $region45: #{down_block_forward.4} parent=43 // pred_check
        %p1215 = pneg %p169
      $region46: #{down_block_forward.4} parent=43 // pred_check_branch
        %1217 = sbr.rel (%p1215) target = $region48
      $region47: #{down_block_forward.4} parent=43 // pred_region
        _
      $region48: #{down_block_forward.4} parent=43 // pred_fallthru
        _
      // Predicated region
      $region49: #{down_block_forward.4} parent=43 // pred_check
        %p1218 = pneg %p195
      $region50: #{down_block_forward.4} parent=43 // pred_check_branch
        %1220 = sbr.rel (%p1218) target = $region52
      $region51: #{down_block_forward.4} parent=43 // pred_region
        _
      $region52: #{down_block_forward.4} parent=43 // pred_fallthru
        _
    $region44: #{down_block_forward.4} parent=5 // pred_fallthru
      _
    %p1221 = scmp.le.s32.totalorder 2, %s15
    // Predicated region
    $region53: #{down_block_forward.4} parent=5 // pred_check
      %p1222 = pneg %p1221
    $region54: #{down_block_forward.4} parent=5 // pred_check_branch
      %1224 = sbr.rel (%p1222) target = $region56
    $region55: #{down_block_forward.4} parent=5 // pred_region
      %s1225 = ssub.s32 %s15, 2
      // Predicated region
      $region57: #{down_block_forward.4} parent=55 // pred_check
        %p1226 = pneg %p175
      $region58: #{down_block_forward.4} parent=55 // pred_check_branch
        %1228 = sbr.rel (%p1226) target = $region60
      $region59: #{down_block_forward.4} parent=55 // pred_region
        %p1229 = scmp.lt.s32.totalorder %s21, 1
        %s1230 = scalar_select %p1229, %s21, 1
        %s1231 = smul.addr %s1230, 2
        %s1232 = smul.addr %s1231, 8
        %s1233 = scalar_lea.vmem %s6, %s1232
      $region60: #{down_block_forward.4} parent=55 // pred_fallthru
        _
      // Predicated region
      $region61: #{down_block_forward.4} parent=55 // pred_check
        %p1234 = pneg %p201
      $region62: #{down_block_forward.4} parent=55 // pred_check_branch
        %1236 = sbr.rel (%p1234) target = $region64
      $region63: #{down_block_forward.4} parent=55 // pred_region
        %p1237 = scmp.lt.s32.totalorder %s21, 1
        %s1238 = scalar_select %p1237, %s21, 1
        %s1239 = smul.addr %s1238, 8
        %s1240 = scalar_lea.vmem %s7, %s1239
      $region64: #{down_block_forward.4} parent=55 // pred_fallthru
        _
    $region56: #{down_block_forward.4} parent=5 // pred_fallthru
      _
  $region6: #{down_block_forward.4} parent=0 // loop_footer
    %s19 = sadd.s32 1, %s15
  $region7: #{down_block_forward.4} parent=0 // loop_footer_branch
    %14 = sbr.rel target = $region3
  $region8: #{down_block_forward.4} parent=0 // loop_exit
    _

// kernel: down_block_forward.3
$region0: #{down_block_forward.3}
  #allocation0 [shape = 'u32[]', space=smem, size = 0x4, offset = 0x4, fixed_abs, tag = 'smem constant byte address 0x4 - core index']
  #allocation1 [shape = 'u32[144,128]{1,0:T(1,128)}', space=vmem, size = 0x12000, scoped, tag = 'internal scratch']
  %s0 = inlined_call_operand.vmem [shape: f32[2,4,256], index: 0, kind: input, shape index: {}]
  %s1 = inlined_call_operand.vmem [shape: f32[9,8,4], index: 1, kind: input, shape index: {}]
  %s2 = inlined_call_operand.vmem [shape: f32[9,256], index: 2, kind: input, shape index: {}]
  %s3 = inlined_call_operand.vmem [shape: f32[2,8,256], index: 3, kind: output, shape index: {0}]
  %s4 = inlined_call_operand.vmem [shape: f32[2,8,2], index: 4, kind: output, shape index: {1}]
  %5 = xla_tuple %s3, %s4
  %s6 = sld [smem:[#allocation0]]
  $region53: #{down_block_forward.3} parent=0
    _
  %s8 = ssub.s32 1, %s6
  %s9 = scalar_select 0, %s8, %s6
  loop: start=0, step=1, limit=4
  $region2: #{down_block_forward.3} parent=0 // loop_pre_header
    _
  $region3: #{down_block_forward.3} parent=0 // loop_header
    %s11 = sphi 0, %s15
    %p12 = scmp.ge.s32.totalorder %s11, 4
    %s21 = sphi 0, %s23
    %s24 = sphi 0, %s21
    %s25 = sphi 0, %s24
    %s41 = sphi 0, %s25
    %s45 = sphi 0, %s45
    %s47 = sphi 0, %s45
    %s48 = sphi 0, %s47
    %s62 = sphi 0, %s48
    %s66 = sphi 0, %s66
    %s68 = sphi 0, %s66
    %s69 = sphi 0, %s68
    %s83 = sphi 0, %s69
    %s89 = sphi 0, %s91
    %s92 = sphi 0, %s89
    %s93 = sphi 0, %s92
    %s109 = sphi 0, %s93
    %s115 = sphi 0, %s117
    %s118 = sphi 0, %s115
    %s119 = sphi 0, %s118
    %s135 = sphi 0, %s119
  $region4: #{down_block_forward.3} parent=0 // loop_header_branch
    %14 = sbr.rel (%p12) target = $region8
  $region5: #{down_block_forward.3} parent=0 // loop_body
    %s16 = ssub.s32 %s11, 1
    %s17 = ssub.s32 %s11, 2
    %s18 = sadd.s32 %s11, 1
    %s19 = ssub.s32 %s11, %s18
    %p20 = scmp.eq.s32.totalorder %s19, 0
    %s22 = sadd.s32 %s21, 1
    %s23 = scalar_select %p20, %s21, %s22
    %p26 = pneg %p20
    %p27 = scmp.eq.s32.totalorder %s11, 1
    %p28 = por %p26, %p27
    %p29 = scmp.ne.s32.totalorder %s21, %s24
    %p30 = scmp.eq.s32.totalorder %s11, 0
    %p31 = por %p29, %p30
    %p32 = scmp.ne.s32.totalorder %s21, %s24
    %p33 = scmp.eq.s32.totalorder %s16, 1
    %p34 = por %p32, %p33
    %p35 = scmp.ne.s32.totalorder %s24, %s25
    %p36 = scmp.eq.s32.totalorder %s16, 0
    %p37 = por %p35, %p36
    %p38 = scmp.ne.s32.totalorder %s24, %s25
    %p39 = scmp.eq.s32.totalorder %s17, 1
    %p40 = por %p38, %p39
    %p42 = scmp.ne.s32.totalorder %s25, %s41
    %p43 = scmp.eq.s32.totalorder %s17, 0
    %p44 = por %p42, %p43
    %s46 = sadd.s32 %s45, 1
    %p49 = scmp.eq.s32.totalorder %s11, 1
    %p50 = scmp.ne.s32.totalorder %s45, %s47
    %p51 = scmp.eq.s32.totalorder %s11, 0
    %p52 = por %p50, %p51
    %p53 = scmp.ne.s32.totalorder %s45, %s47
    %p54 = scmp.eq.s32.totalorder %s16, 1
    %p55 = por %p53, %p54
    %p56 = scmp.ne.s32.totalorder %s47, %s48
    %p57 = scmp.eq.s32.totalorder %s16, 0
    %p58 = por %p56, %p57
    %p59 = scmp.ne.s32.totalorder %s47, %s48
    %p60 = scmp.eq.s32.totalorder %s17, 1
    %p61 = por %p59, %p60
    %p63 = scmp.ne.s32.totalorder %s48, %s62
    %p64 = scmp.eq.s32.totalorder %s17, 0
    %p65 = por %p63, %p64
    %s67 = sadd.s32 %s66, 1
    %p70 = scmp.eq.s32.totalorder %s11, 1
    %p71 = scmp.ne.s32.totalorder %s66, %s68
    %p72 = scmp.eq.s32.totalorder %s11, 0
    %p73 = por %p71, %p72
    %p74 = scmp.ne.s32.totalorder %s66, %s68
    %p75 = scmp.eq.s32.totalorder %s16, 1
    %p76 = por %p74, %p75
    %p77 = scmp.ne.s32.totalorder %s68, %s69
    %p78 = scmp.eq.s32.totalorder %s16, 0
    %p79 = por %p77, %p78
    %p80 = scmp.ne.s32.totalorder %s68, %s69
    %p81 = scmp.eq.s32.totalorder %s17, 1
    %p82 = por %p80, %p81
    %p84 = scmp.ne.s32.totalorder %s69, %s83
    %p85 = scmp.eq.s32.totalorder %s17, 0
    %p86 = por %p84, %p85
    %s87 = ssub.s32 %s11, %s18
    %p88 = scmp.eq.s32.totalorder %s87, 0
    %s90 = sadd.s32 %s89, 1
    %s91 = scalar_select %p88, %s89, %s90
    %p94 = pneg %p88
    %p95 = scmp.eq.s32.totalorder %s11, 1
    %p96 = por %p94, %p95
    %p97 = scmp.ne.s32.totalorder %s89, %s92
    %p98 = scmp.eq.s32.totalorder %s11, 0
    %p99 = por %p97, %p98
    %p100 = scmp.ne.s32.totalorder %s89, %s92
    %p101 = scmp.eq.s32.totalorder %s16, 1
    %p102 = por %p100, %p101
    %p103 = scmp.ne.s32.totalorder %s92, %s93
    %p104 = scmp.eq.s32.totalorder %s16, 0
    %p105 = por %p103, %p104
    %p106 = scmp.ne.s32.totalorder %s92, %s93
    %p107 = scmp.eq.s32.totalorder %s17, 1
    %p108 = por %p106, %p107
    %p110 = scmp.ne.s32.totalorder %s93, %s109
    %p111 = scmp.eq.s32.totalorder %s17, 0
    %p112 = por %p110, %p111
    %s113 = ssub.s32 %s11, %s18
    %p114 = scmp.eq.s32.totalorder %s113, 0
    %s116 = sadd.s32 %s115, 1
    %s117 = scalar_select %p114, %s115, %s116
    %p120 = pneg %p114
    %p121 = scmp.eq.s32.totalorder %s11, 1
    %p122 = por %p120, %p121
    %p123 = scmp.ne.s32.totalorder %s115, %s118
    %p124 = scmp.eq.s32.totalorder %s11, 0
    %p125 = por %p123, %p124
    %p126 = scmp.ne.s32.totalorder %s115, %s118
    %p127 = scmp.eq.s32.totalorder %s16, 1
    %p128 = por %p126, %p127
    %p129 = scmp.ne.s32.totalorder %s118, %s119
    %p130 = scmp.eq.s32.totalorder %s16, 0
    %p131 = por %p129, %p130
    %p132 = scmp.ne.s32.totalorder %s118, %s119
    %p133 = scmp.eq.s32.totalorder %s17, 1
    %p134 = por %p132, %p133
    %p136 = scmp.ne.s32.totalorder %s119, %s135
    %p137 = scmp.eq.s32.totalorder %s17, 0
    %p138 = por %p136, %p137
    %p139 = scmp.le.s32.totalorder 1, %s11
    %p140 = scmp.lt.s32.totalorder %s11, 3
    %p141 = pnand %p139, %p140
    %p142 = pneg %p141
    // Predicated region
    $region9: #{down_block_forward.3} parent=5 // pred_check
      _
    $region10: #{down_block_forward.3} parent=5 // pred_check_branch
      %144 = sbr.rel (%p141) target = $region12
    $region11: #{down_block_forward.3} parent=5 // pred_region
      %s145 = ssub.s32 %s11, 1
      // Predicated region
      $region13: #{down_block_forward.3} parent=11 // pred_check
        %p146 = pneg %p58
      $region14: #{down_block_forward.3} parent=11 // pred_check_branch
        %148 = sbr.rel (%p146) target = $region16
      $region15: #{down_block_forward.3} parent=11 // pred_region
        _
      $region16: #{down_block_forward.3} parent=11 // pred_fallthru
        _
      // Predicated region
      $region17: #{down_block_forward.3} parent=11 // pred_check
        %p149 = pneg %p79
      $region18: #{down_block_forward.3} parent=11 // pred_check_branch
        %151 = sbr.rel (%p149) target = $region20
      $region19: #{down_block_forward.3} parent=11 // pred_region
        _
      $region20: #{down_block_forward.3} parent=11 // pred_fallthru
        _
    $region12: #{down_block_forward.3} parent=5 // pred_fallthru
      _
    %p152 = scmp.lt.s32.totalorder %s11, 2
    // Predicated region
    $region21: #{down_block_forward.3} parent=5 // pred_check
      %p153 = pneg %p152
    $region22: #{down_block_forward.3} parent=5 // pred_check_branch
      %155 = sbr.rel (%p153) target = $region24
    $region23: #{down_block_forward.3} parent=5 // pred_region
      // Predicated region
      $region25: #{down_block_forward.3} parent=23 // pred_check
        %p156 = pneg %p31
      $region26: #{down_block_forward.3} parent=23 // pred_check_branch
        %158 = sbr.rel (%p156) target = $region28
      $region27: #{down_block_forward.3} parent=23 // pred_region
        %p159 = scmp.lt.s32.totalorder %s11, 1
        %s160 = scalar_select %p159, %s11, 1
        %s161 = smul.addr %s160, 2
        %s162 = smul.addr %s161, 4
        %s163 = scalar_lea.vmem %s0, %s162
      $region28: #{down_block_forward.3} parent=23 // pred_fallthru
        _
    $region24: #{down_block_forward.3} parent=5 // pred_fallthru
      _
    %p164 = scmp.le.s32.totalorder 1, %s11
    %p165 = scmp.lt.s32.totalorder %s11, 3
    %p166 = pnand %p164, %p165
    %p167 = pneg %p166
    // Predicated region
    $region29: #{down_block_forward.3} parent=5 // pred_check
      _
    $region30: #{down_block_forward.3} parent=5 // pred_check_branch
      %169 = sbr.rel (%p166) target = $region32
    $region31: #{down_block_forward.3} parent=5 // pred_region
      %s170 = ssub.s32 %s11, 1
      %p171 = scmp.lt.s32.totalorder %s16, 1
      %s172 = scalar_select %p171, %s16, 1
      %s173 = smul.addr %s172, 2
      %s174 = smul.addr %s173, 4
      %s175 = scalar_lea.vmem %s0, %s174
      %p176 = pneg %p37
      %p177 = pneg %p34
      %p178 = pneg %p58
      %p179 = pneg %p55
      %p180 = pneg %p79
      %p181 = pneg %p76
      %p182 = pneg %p105
      %p183 = pneg %p102
      %p184 = scmp.lt.s32.totalorder %s16, 1
      %s185 = scalar_select %p184, %s16, 1
      %s186 = smul.addr %s185, 2
      %s187 = smul.addr %s186, 8
      %s188 = scalar_lea.vmem %s3, %s187
      %p189 = pneg %p131
      %p190 = pneg %p128
      %p191 = scmp.lt.s32.totalorder %s16, 1
      %s192 = scalar_select %p191, %s16, 1
      %s193 = smul.addr %s192, 8
      %s194 = scalar_lea.vmem %s4, %s193
      %p195 = scmp.lt.s32.totalorder %s16, 1
      %s196 = scalar_select %p195, %s16, 1
      %s197 = smul.addr %s196, 2
      %s198 = smul.addr %s197, 4
      %s199 = scalar_lea.vmem %s0, %s198
      %p200 = scmp.lt.s32.totalorder %s16, 1
      %s201 = scalar_select %p200, %s16, 1
      %s202 = smul.addr %s201, 2
      %s203 = smul.addr %s202, 8
      %s204 = scalar_lea.vmem %s3, %s203
      %p205 = scmp.lt.s32.totalorder %s16, 1
      %s206 = scalar_select %p205, %s16, 1
      %s207 = smul.addr %s206, 8
      %s208 = scalar_lea.vmem %s4, %s207
      %v209 = vld [vmem:[%s199] sm:$0xff]
      %v211 = vcombine.high %v209, %v209
      %213 = vrot.lane.b32.xlu0 %v209, 17
      %v214 = vpop.permute.xlu0 %213
      %215 = vrot.lane.b32.xlu0 %v211, 17
      %v216 = vpop.permute.xlu0 %215
      %v217 = vlaneseq
      %v218 = vand.u32 %v217, 127
      %vm219 = vcmp.lt.s32.totalorder %v218, 17
      %v220 = vsel %vm219, %v214, %v216
      %v221 = vsel %vm219, %v216, %v214
      %v222 = vld [vmem:[%s2] ss:$8 sm:$0x3]
      %v224 = vlaneseq
      %v225 = vshrl.u32 %v224, 7
      %v226 = vsub.s32 0, %v225
      %v227 = vrot.slane %v222, %v226
      %v228 = vlaneseq
      %v229 = vshrl.u32 %v228, 7
      %v230 = vsub.s32 1, %v229
      %v231 = vrot.slane %v222, %v230
      %v234 = vmul.f32 %v221, %v227
      %v235 = vmul.f32 %v220, %v231
      %v236 = vld [vmem:[%s1] sm:$0xff]
      %237 = vrot.lane.b32.xlu0 %v209, 16
      %v238 = vpop.permute.xlu0 %237
      %239 = vrot.lane.b32.xlu0 %v211, 16
      %v240 = vpop.permute.xlu0 %239
      %vm241 = vcmp.lt.s32.totalorder %v218, 16
      %v242 = vsel %vm241, %v238, %v240
      %v243 = vsel %vm241, %v240, %v238
      %s244 = scalar_lea.vmem %s2, 1
      %v245 = vld [vmem:[%s244] ss:$8 sm:$0x3]
      %v247 = vlaneseq
      %v248 = vshrl.u32 %v247, 7
      %v249 = vsub.s32 0, %v248
      %v250 = vrot.slane %v245, %v249
      %v251 = vlaneseq
      %v252 = vshrl.u32 %v251, 7
      %v253 = vsub.s32 1, %v252
      %v254 = vrot.slane %v245, %v253
      %v257 = vmul.f32 %v243, %v250
      %v258 = vmul.f32 %v242, %v254
      %s259 = scalar_lea.vmem %s1, 8
      %v260 = vld [vmem:[%s259] sm:$0xff]
      %vm261 = vcmask 31744
      %v263 = vsel %vm261, %v260, 0
      %vm265 = vcmask 1043456
      %v267 = vsel %vm265, %v257, 0
      %v270 = vsel %vm265, %v258, 0
      %272 = vmatprep.subr.mxu0 0.0
      %273 = vmatpush1.msra.mxu0 0.0
      %274 = vmatprep.subr.mxu0 0.0
      %275 = vmatpush1.msra.mxu0 0.0
      %276 = vmatprep.subr.mxu0 0.0
      %277 = vmatpush1.msra.mxu0 0.0
      %278 = vmatprep.subr.mxu0 0.0
      %279 = vmatpush1.msra.mxu0 0.0
      %280 = vmatprep.subr.mxu0 0.0
      %281 = vmatpush1.msra.mxu0 0.0
      %282 = vmatprep.subr.mxu0 0.0
      %283 = vmatpush1.msra.mxu0 0.0
      %284 = vmatprep.subr.mxu0 0.0
      %285 = vmatpush1.msra.mxu0 0.0
      %286 = vmatprep.subr.mxu0 0.0
      %287 = vmatpush1.msra.mxu0 0.0
      %288 = vmatprep.subr.mxu0 0.0
      %289 = vmatpush1.msra.mxu0 0.0
      %290 = vmatprep.subr.mxu0 0.0
      %291 = vmatpush1.msra.mxu0 0.0
      %292 = vmatprep.subr.mxu0 0.0
      %293 = vmatpush1.msra.mxu0 0.0
      %294 = vmatprep.subr.mxu0 0.0
      %295 = vmatpush1.msra.mxu0 0.0
      %296 = vmatprep.subr.mxu0 0.0
      %297 = vmatpush1.msra.mxu0 0.0
      %298 = vmatprep.subr.mxu0 0.0
      %299 = vmatpush1.msra.mxu0 0.0
      %300 = vmatprep.subr.mxu0 0.0
      %301 = vmatpush1.msra.mxu0 0.0
      %302 = vmatprep.subr.mxu0 %v270
      %303 = vmatpush1.msra.mxu0 %v267
      %304 = vmatprep.subr.mxu0 0.0
      %305 = vmatpush2.msra.mxu0 0.0
      %306 = vmatprep.subr.mxu0 0.0
      %307 = vmatpush2.msra.mxu0 0.0
      %308 = vmatprep.subr.mxu0 0.0
      %309 = vmatpush2.msra.mxu0 0.0
      %310 = vmatprep.subr.mxu0 0.0
      %311 = vmatpush2.msra.mxu0 0.0
      %312 = vmatprep.subr.mxu0 0.0
      %313 = vmatpush2.msra.mxu0 0.0
      %314 = vmatprep.subr.mxu0 0.0
      %315 = vmatpush2.msra.mxu0 0.0
      %316 = vmatprep.subr.mxu0 0.0
      %317 = vmatpush2.msra.mxu0 0.0
      %318 = vmatprep.subr.mxu0 0.0
      %319 = vmatpush2.msra.mxu0 0.0
      %320 = vmatprep.subr.mxu0 0.0
      %321 = vmatpush2.msra.mxu0 0.0
      %322 = vmatprep.subr.mxu0 0.0
      %323 = vmatpush2.msra.mxu0 0.0
      %324 = vmatprep.subr.mxu0 0.0
      %325 = vmatpush2.msra.mxu0 0.0
      %326 = vmatprep.subr.mxu0 0.0
      %327 = vmatpush2.msra.mxu0 0.0
      %328 = vmatprep.subr.mxu0 0.0
      %329 = vmatpush2.msra.mxu0 0.0
      %330 = vmatprep.subr.mxu0 0.0
      %331 = vmatpush2.msra.mxu0 0.0
      %332 = vmatprep.subr.mxu0 0.0
      %333 = vmatpush2.msra.mxu0 0.0
      %334 = vmatprep.subr.mxu0 0.0
      %335 = vmatpush2.msra.mxu0 0.0
      %336 = vmatprep.mubr.f32.mxu0 0.0
      %337 = vmatmul.mubr.f32.gmra.mxu0 %v263
      %v338 = vpop.f32.mrf.mxu0
      %v339 = vadd.f32 0.0, %v338
      %v340 = vpop.f32.mrf.mxu0
      %v341 = vadd.f32 0.0, %v340
      %342 = vdwg.mxu0
      %v344 = vsel %vm261, %v236, 0
      %v347 = vsel %vm265, %v234, 0
      %v350 = vsel %vm265, %v235, 0
      %352 = vmatprep.subr.mxu0 0.0
      %353 = vmatpush1.msra.mxu0 0.0
      %354 = vmatprep.subr.mxu0 0.0
      %355 = vmatpush1.msra.mxu0 0.0
      %356 = vmatprep.subr.mxu0 0.0
      %357 = vmatpush1.msra.mxu0 0.0
      %358 = vmatprep.subr.mxu0 0.0
      %359 = vmatpush1.msra.mxu0 0.0
      %360 = vmatprep.subr.mxu0 0.0
      %361 = vmatpush1.msra.mxu0 0.0
      %362 = vmatprep.subr.mxu0 0.0
      %363 = vmatpush1.msra.mxu0 0.0
      %364 = vmatprep.subr.mxu0 0.0
      %365 = vmatpush1.msra.mxu0 0.0
      %366 = vmatprep.subr.mxu0 0.0
      %367 = vmatpush1.msra.mxu0 0.0
      %368 = vmatprep.subr.mxu0 0.0
      %369 = vmatpush1.msra.mxu0 0.0
      %370 = vmatprep.subr.mxu0 0.0
      %371 = vmatpush1.msra.mxu0 0.0
      %372 = vmatprep.subr.mxu0 0.0
      %373 = vmatpush1.msra.mxu0 0.0
      %374 = vmatprep.subr.mxu0 0.0
      %375 = vmatpush1.msra.mxu0 0.0
      %376 = vmatprep.subr.mxu0 0.0
      %377 = vmatpush1.msra.mxu0 0.0
      %378 = vmatprep.subr.mxu0 0.0
      %379 = vmatpush1.msra.mxu0 0.0
      %380 = vmatprep.subr.mxu0 0.0
      %381 = vmatpush1.msra.mxu0 0.0
      %382 = vmatprep.subr.mxu0 %v350
      %383 = vmatpush1.msra.mxu0 %v347
      %384 = vmatprep.subr.mxu0 0.0
      %385 = vmatpush2.msra.mxu0 0.0
      %386 = vmatprep.subr.mxu0 0.0
      %387 = vmatpush2.msra.mxu0 0.0
      %388 = vmatprep.subr.mxu0 0.0
      %389 = vmatpush2.msra.mxu0 0.0
      %390 = vmatprep.subr.mxu0 0.0
      %391 = vmatpush2.msra.mxu0 0.0
      %392 = vmatprep.subr.mxu0 0.0
      %393 = vmatpush2.msra.mxu0 0.0
      %394 = vmatprep.subr.mxu0 0.0
      %395 = vmatpush2.msra.mxu0 0.0
      %396 = vmatprep.subr.mxu0 0.0
      %397 = vmatpush2.msra.mxu0 0.0
      %398 = vmatprep.subr.mxu0 0.0
      %399 = vmatpush2.msra.mxu0 0.0
      %400 = vmatprep.subr.mxu0 0.0
      %401 = vmatpush2.msra.mxu0 0.0
      %402 = vmatprep.subr.mxu0 0.0
      %403 = vmatpush2.msra.mxu0 0.0
      %404 = vmatprep.subr.mxu0 0.0
      %405 = vmatpush2.msra.mxu0 0.0
      %406 = vmatprep.subr.mxu0 0.0
      %407 = vmatpush2.msra.mxu0 0.0
      %408 = vmatprep.subr.mxu0 0.0
      %409 = vmatpush2.msra.mxu0 0.0
      %410 = vmatprep.subr.mxu0 0.0
      %411 = vmatpush2.msra.mxu0 0.0
      %412 = vmatprep.subr.mxu0 0.0
      %413 = vmatpush2.msra.mxu0 0.0
      %414 = vmatprep.subr.mxu0 0.0
      %415 = vmatpush2.msra.mxu0 0.0
      %416 = vmatprep.mubr.f32.mxu0 0.0
      %417 = vmatmul.mubr.f32.gmra.mxu0 %v344
      %v418 = vpop.f32.mrf.mxu0
      %v419 = vadd.f32 %v339, %v418
      %v420 = vpop.f32.mrf.mxu0
      %v421 = vadd.f32 %v341, %v420
      %422 = vdwg.mxu0
      %423 = vrot.lane.b32.xlu0 %v209, 15
      %v424 = vpop.permute.xlu0 %423
      %425 = vrot.lane.b32.xlu0 %v211, 15
      %v426 = vpop.permute.xlu0 %425
      %vm427 = vcmp.lt.s32.totalorder %v218, 15
      %v428 = vsel %vm427, %v424, %v426
      %v429 = vsel %vm427, %v426, %v424
      %s430 = scalar_lea.vmem %s2, 2
      %v431 = vld [vmem:[%s430] ss:$8 sm:$0x3]
      %v433 = vlaneseq
      %v434 = vshrl.u32 %v433, 7
      %v435 = vsub.s32 0, %v434
      %v436 = vrot.slane %v431, %v435
      %v437 = vlaneseq
      %v438 = vshrl.u32 %v437, 7
      %v439 = vsub.s32 1, %v438
      %v440 = vrot.slane %v431, %v439
      %v443 = vmul.f32 %v429, %v436
      %v444 = vmul.f32 %v428, %v440
      %s445 = scalar_lea.vmem %s1, 16
      %v446 = vld [vmem:[%s445] sm:$0xff]
      %v448 = vsel %vm261, %v446, 0
      %v451 = vsel %vm265, %v443, 0
      %v454 = vsel %vm265, %v444, 0
      %456 = vmatprep.subr.mxu0 0.0
      %457 = vmatpush1.msra.mxu0 0.0
      %458 = vmatprep.subr.mxu0 0.0
      %459 = vmatpush1.msra.mxu0 0.0
      %460 = vmatprep.subr.mxu0 0.0
      %461 = vmatpush1.msra.mxu0 0.0
      %462 = vmatprep.subr.mxu0 0.0
      %463 = vmatpush1.msra.mxu0 0.0
      %464 = vmatprep.subr.mxu0 0.0
      %465 = vmatpush1.msra.mxu0 0.0
      %466 = vmatprep.subr.mxu0 0.0
      %467 = vmatpush1.msra.mxu0 0.0
      %468 = vmatprep.subr.mxu0 0.0
      %469 = vmatpush1.msra.mxu0 0.0
      %470 = vmatprep.subr.mxu0 0.0
      %471 = vmatpush1.msra.mxu0 0.0
      %472 = vmatprep.subr.mxu0 0.0
      %473 = vmatpush1.msra.mxu0 0.0
      %474 = vmatprep.subr.mxu0 0.0
      %475 = vmatpush1.msra.mxu0 0.0
      %476 = vmatprep.subr.mxu0 0.0
      %477 = vmatpush1.msra.mxu0 0.0
      %478 = vmatprep.subr.mxu0 0.0
      %479 = vmatpush1.msra.mxu0 0.0
      %480 = vmatprep.subr.mxu0 0.0
      %481 = vmatpush1.msra.mxu0 0.0
      %482 = vmatprep.subr.mxu0 0.0
      %483 = vmatpush1.msra.mxu0 0.0
      %484 = vmatprep.subr.mxu0 0.0
      %485 = vmatpush1.msra.mxu0 0.0
      %486 = vmatprep.subr.mxu0 %v454
      %487 = vmatpush1.msra.mxu0 %v451
      %488 = vmatprep.subr.mxu0 0.0
      %489 = vmatpush2.msra.mxu0 0.0
      %490 = vmatprep.subr.mxu0 0.0
      %491 = vmatpush2.msra.mxu0 0.0
      %492 = vmatprep.subr.mxu0 0.0
      %493 = vmatpush2.msra.mxu0 0.0
      %494 = vmatprep.subr.mxu0 0.0
      %495 = vmatpush2.msra.mxu0 0.0
      %496 = vmatprep.subr.mxu0 0.0
      %497 = vmatpush2.msra.mxu0 0.0
      %498 = vmatprep.subr.mxu0 0.0
      %499 = vmatpush2.msra.mxu0 0.0
      %500 = vmatprep.subr.mxu0 0.0
      %501 = vmatpush2.msra.mxu0 0.0
      %502 = vmatprep.subr.mxu0 0.0
      %503 = vmatpush2.msra.mxu0 0.0
      %504 = vmatprep.subr.mxu0 0.0
      %505 = vmatpush2.msra.mxu0 0.0
      %506 = vmatprep.subr.mxu0 0.0
      %507 = vmatpush2.msra.mxu0 0.0
      %508 = vmatprep.subr.mxu0 0.0
      %509 = vmatpush2.msra.mxu0 0.0
      %510 = vmatprep.subr.mxu0 0.0
      %511 = vmatpush2.msra.mxu0 0.0
      %512 = vmatprep.subr.mxu0 0.0
      %513 = vmatpush2.msra.mxu0 0.0
      %514 = vmatprep.subr.mxu0 0.0
      %515 = vmatpush2.msra.mxu0 0.0
      %516 = vmatprep.subr.mxu0 0.0
      %517 = vmatpush2.msra.mxu0 0.0
      %518 = vmatprep.subr.mxu0 0.0
      %519 = vmatpush2.msra.mxu0 0.0
      %520 = vmatprep.mubr.f32.mxu0 0.0
      %521 = vmatmul.mubr.f32.gmra.mxu0 %v448
      %v522 = vpop.f32.mrf.mxu0
      %v523 = vadd.f32 0.0, %v522
      %v524 = vpop.f32.mrf.mxu0
      %v525 = vadd.f32 0.0, %v524
      %526 = vdwg.mxu0
      %v527 = vadd.f32 %v419, %v523
      %v528 = vadd.f32 %v421, %v525
      %529 = vrot.lane.b32.xlu0 %v209, 1
      %v530 = vpop.permute.xlu0 %529
      %531 = vrot.lane.b32.xlu0 %v211, 1
      %v532 = vpop.permute.xlu0 %531
      %vm533 = vcmp.lt.s32.totalorder %v218, 1
      %v534 = vsel %vm533, %v530, %v532
      %v535 = vsel %vm533, %v532, %v530
      %s536 = scalar_lea.vmem %s2, 3
      %v537 = vld [vmem:[%s536] ss:$8 sm:$0x3]
      %v539 = vlaneseq
      %v540 = vshrl.u32 %v539, 7
      %v541 = vsub.s32 0, %v540
      %v542 = vrot.slane %v537, %v541
      %v543 = vlaneseq
      %v544 = vshrl.u32 %v543, 7
      %v545 = vsub.s32 1, %v544
      %v546 = vrot.slane %v537, %v545
      %v549 = vmul.f32 %v535, %v542
      %v550 = vmul.f32 %v534, %v546
      %s551 = scalar_lea.vmem %s1, 24
      %v552 = vld [vmem:[%s551] sm:$0xff]
      %v554 = vsel %vm261, %v552, 0
      %v557 = vsel %vm265, %v549, 0
      %v560 = vsel %vm265, %v550, 0
      %562 = vmatprep.subr.mxu0 0.0
      %563 = vmatpush1.msra.mxu0 0.0
      %564 = vmatprep.subr.mxu0 0.0
      %565 = vmatpush1.msra.mxu0 0.0
      %566 = vmatprep.subr.mxu0 0.0
      %567 = vmatpush1.msra.mxu0 0.0
      %568 = vmatprep.subr.mxu0 0.0
      %569 = vmatpush1.msra.mxu0 0.0
      %570 = vmatprep.subr.mxu0 0.0
      %571 = vmatpush1.msra.mxu0 0.0
      %572 = vmatprep.subr.mxu0 0.0
      %573 = vmatpush1.msra.mxu0 0.0
      %574 = vmatprep.subr.mxu0 0.0
      %575 = vmatpush1.msra.mxu0 0.0
      %576 = vmatprep.subr.mxu0 0.0
      %577 = vmatpush1.msra.mxu0 0.0
      %578 = vmatprep.subr.mxu0 0.0
      %579 = vmatpush1.msra.mxu0 0.0
      %580 = vmatprep.subr.mxu0 0.0
      %581 = vmatpush1.msra.mxu0 0.0
      %582 = vmatprep.subr.mxu0 0.0
      %583 = vmatpush1.msra.mxu0 0.0
      %584 = vmatprep.subr.mxu0 0.0
      %585 = vmatpush1.msra.mxu0 0.0
      %586 = vmatprep.subr.mxu0 0.0
      %587 = vmatpush1.msra.mxu0 0.0
      %588 = vmatprep.subr.mxu0 0.0
      %589 = vmatpush1.msra.mxu0 0.0
      %590 = vmatprep.subr.mxu0 0.0
      %591 = vmatpush1.msra.mxu0 0.0
      %592 = vmatprep.subr.mxu0 %v560
      %593 = vmatpush1.msra.mxu0 %v557
      %594 = vmatprep.subr.mxu0 0.0
      %595 = vmatpush2.msra.mxu0 0.0
      %596 = vmatprep.subr.mxu0 0.0
      %597 = vmatpush2.msra.mxu0 0.0
      %598 = vmatprep.subr.mxu0 0.0
      %599 = vmatpush2.msra.mxu0 0.0
      %600 = vmatprep.subr.mxu0 0.0
      %601 = vmatpush2.msra.mxu0 0.0
      %602 = vmatprep.subr.mxu0 0.0
      %603 = vmatpush2.msra.mxu0 0.0
      %604 = vmatprep.subr.mxu0 0.0
      %605 = vmatpush2.msra.mxu0 0.0
      %606 = vmatprep.subr.mxu0 0.0
      %607 = vmatpush2.msra.mxu0 0.0
      %608 = vmatprep.subr.mxu0 0.0
      %609 = vmatpush2.msra.mxu0 0.0
      %610 = vmatprep.subr.mxu0 0.0
      %611 = vmatpush2.msra.mxu0 0.0
      %612 = vmatprep.subr.mxu0 0.0
      %613 = vmatpush2.msra.mxu0 0.0
      %614 = vmatprep.subr.mxu0 0.0
      %615 = vmatpush2.msra.mxu0 0.0
      %616 = vmatprep.subr.mxu0 0.0
      %617 = vmatpush2.msra.mxu0 0.0
      %618 = vmatprep.subr.mxu0 0.0
      %619 = vmatpush2.msra.mxu0 0.0
      %620 = vmatprep.subr.mxu0 0.0
      %621 = vmatpush2.msra.mxu0 0.0
      %622 = vmatprep.subr.mxu0 0.0
      %623 = vmatpush2.msra.mxu0 0.0
      %624 = vmatprep.subr.mxu0 0.0
      %625 = vmatpush2.msra.mxu0 0.0
      %626 = vmatprep.mubr.f32.mxu0 0.0
      %627 = vmatmul.mubr.f32.gmra.mxu0 %v554
      %v628 = vpop.f32.mrf.mxu0
      %v629 = vadd.f32 0.0, %v628
      %v630 = vpop.f32.mrf.mxu0
      %v631 = vadd.f32 0.0, %v630
      %632 = vdwg.mxu0
      %v633 = vadd.f32 %v527, %v629
      %v634 = vadd.f32 %v528, %v631
      %s635 = scalar_lea.vmem %s1, 32
      %v636 = vld [vmem:[%s635] sm:$0xff]
      %v638 = vsel %vm261, %v636, 0
      %v640 = vsel %vm265, %v209, 0
      %v642 = vsel %vm265, %v211, 0
      %644 = vmatprep.subr.mxu0 0.0
      %645 = vmatpush1.msra.mxu0 0.0
      %646 = vmatprep.subr.mxu0 0.0
      %647 = vmatpush1.msra.mxu0 0.0
      %648 = vmatprep.subr.mxu0 0.0
      %649 = vmatpush1.msra.mxu0 0.0
      %650 = vmatprep.subr.mxu0 0.0
      %651 = vmatpush1.msra.mxu0 0.0
      %652 = vmatprep.subr.mxu0 0.0
      %653 = vmatpush1.msra.mxu0 0.0
      %654 = vmatprep.subr.mxu0 0.0
      %655 = vmatpush1.msra.mxu0 0.0
      %656 = vmatprep.subr.mxu0 0.0
      %657 = vmatpush1.msra.mxu0 0.0
      %658 = vmatprep.subr.mxu0 0.0
      %659 = vmatpush1.msra.mxu0 0.0
      %660 = vmatprep.subr.mxu0 0.0
      %661 = vmatpush1.msra.mxu0 0.0
      %662 = vmatprep.subr.mxu0 0.0
      %663 = vmatpush1.msra.mxu0 0.0
      %664 = vmatprep.subr.mxu0 0.0
      %665 = vmatpush1.msra.mxu0 0.0
      %666 = vmatprep.subr.mxu0 0.0
      %667 = vmatpush1.msra.mxu0 0.0
      %668 = vmatprep.subr.mxu0 0.0
      %669 = vmatpush1.msra.mxu0 0.0
      %670 = vmatprep.subr.mxu0 0.0
      %671 = vmatpush1.msra.mxu0 0.0
      %672 = vmatprep.subr.mxu0 0.0
      %673 = vmatpush1.msra.mxu0 0.0
      %674 = vmatprep.subr.mxu0 %v642
      %675 = vmatpush1.msra.mxu0 %v640
      %676 = vmatprep.subr.mxu0 0.0
      %677 = vmatpush2.msra.mxu0 0.0
      %678 = vmatprep.subr.mxu0 0.0
      %679 = vmatpush2.msra.mxu0 0.0
      %680 = vmatprep.subr.mxu0 0.0
      %681 = vmatpush2.msra.mxu0 0.0
      %682 = vmatprep.subr.mxu0 0.0
      %683 = vmatpush2.msra.mxu0 0.0
      %684 = vmatprep.subr.mxu0 0.0
      %685 = vmatpush2.msra.mxu0 0.0
      %686 = vmatprep.subr.mxu0 0.0
      %687 = vmatpush2.msra.mxu0 0.0
      %688 = vmatprep.subr.mxu0 0.0
      %689 = vmatpush2.msra.mxu0 0.0
      %690 = vmatprep.subr.mxu0 0.0
      %691 = vmatpush2.msra.mxu0 0.0
      %692 = vmatprep.subr.mxu0 0.0
      %693 = vmatpush2.msra.mxu0 0.0
      %694 = vmatprep.subr.mxu0 0.0
      %695 = vmatpush2.msra.mxu0 0.0
      %696 = vmatprep.subr.mxu0 0.0
      %697 = vmatpush2.msra.mxu0 0.0
      %698 = vmatprep.subr.mxu0 0.0
      %699 = vmatpush2.msra.mxu0 0.0
      %700 = vmatprep.subr.mxu0 0.0
      %701 = vmatpush2.msra.mxu0 0.0
      %702 = vmatprep.subr.mxu0 0.0
      %703 = vmatpush2.msra.mxu0 0.0
      %704 = vmatprep.subr.mxu0 0.0
      %705 = vmatpush2.msra.mxu0 0.0
      %706 = vmatprep.subr.mxu0 0.0
      %707 = vmatpush2.msra.mxu0 0.0
      %708 = vmatprep.mubr.f32.mxu0 0.0
      %709 = vmatmul.mubr.f32.gmra.mxu0 %v638
      %v710 = vpop.f32.mrf.mxu0
      %v711 = vadd.f32 0.0, %v710
      %v712 = vpop.f32.mrf.mxu0
      %v713 = vadd.f32 0.0, %v712
      %714 = vdwg.mxu0
      %v715 = vadd.f32 %v633, %v711
      %v716 = vadd.f32 %v634, %v713
      %717 = vrot.lane.b32.xlu0 %v209, 127
      %v718 = vpop.permute.xlu0 %717
      %719 = vrot.lane.b32.xlu0 %v211, 127
      %v720 = vpop.permute.xlu0 %719
      %vm721 = vcmp.lt.s32.totalorder %v218, 127
      %v722 = vsel %vm721, %v718, %v720
      %v723 = vsel %vm721, %v720, %v718
      %s724 = scalar_lea.vmem %s2, 5
      %v725 = vld [vmem:[%s724] ss:$8 sm:$0x3]
      %v727 = vlaneseq
      %v728 = vshrl.u32 %v727, 7
      %v729 = vsub.s32 0, %v728
      %v730 = vrot.slane %v725, %v729
      %v731 = vlaneseq
      %v732 = vshrl.u32 %v731, 7
      %v733 = vsub.s32 1, %v732
      %v734 = vrot.slane %v725, %v733
      %v737 = vmul.f32 %v722, %v730
      %v738 = vmul.f32 %v723, %v734
      %s739 = scalar_lea.vmem %s1, 40
      %v740 = vld [vmem:[%s739] sm:$0xff]
      %v742 = vsel %vm261, %v740, 0
      %v745 = vsel %vm265, %v737, 0
      %v748 = vsel %vm265, %v738, 0
      %750 = vmatprep.subr.mxu0 0.0
      %751 = vmatpush1.msra.mxu0 0.0
      %752 = vmatprep.subr.mxu0 0.0
      %753 = vmatpush1.msra.mxu0 0.0
      %754 = vmatprep.subr.mxu0 0.0
      %755 = vmatpush1.msra.mxu0 0.0
      %756 = vmatprep.subr.mxu0 0.0
      %757 = vmatpush1.msra.mxu0 0.0
      %758 = vmatprep.subr.mxu0 0.0
      %759 = vmatpush1.msra.mxu0 0.0
      %760 = vmatprep.subr.mxu0 0.0
      %761 = vmatpush1.msra.mxu0 0.0
      %762 = vmatprep.subr.mxu0 0.0
      %763 = vmatpush1.msra.mxu0 0.0
      %764 = vmatprep.subr.mxu0 0.0
      %765 = vmatpush1.msra.mxu0 0.0
      %766 = vmatprep.subr.mxu0 0.0
      %767 = vmatpush1.msra.mxu0 0.0
      %768 = vmatprep.subr.mxu0 0.0
      %769 = vmatpush1.msra.mxu0 0.0
      %770 = vmatprep.subr.mxu0 0.0
      %771 = vmatpush1.msra.mxu0 0.0
      %772 = vmatprep.subr.mxu0 0.0
      %773 = vmatpush1.msra.mxu0 0.0
      %774 = vmatprep.subr.mxu0 0.0
      %775 = vmatpush1.msra.mxu0 0.0
      %776 = vmatprep.subr.mxu0 0.0
      %777 = vmatpush1.msra.mxu0 0.0
      %778 = vmatprep.subr.mxu0 0.0
      %779 = vmatpush1.msra.mxu0 0.0
      %780 = vmatprep.subr.mxu0 %v748
      %781 = vmatpush1.msra.mxu0 %v745
      %782 = vmatprep.subr.mxu0 0.0
      %783 = vmatpush2.msra.mxu0 0.0
      %784 = vmatprep.subr.mxu0 0.0
      %785 = vmatpush2.msra.mxu0 0.0
      %786 = vmatprep.subr.mxu0 0.0
      %787 = vmatpush2.msra.mxu0 0.0
      %788 = vmatprep.subr.mxu0 0.0
      %789 = vmatpush2.msra.mxu0 0.0
      %790 = vmatprep.subr.mxu0 0.0
      %791 = vmatpush2.msra.mxu0 0.0
      %792 = vmatprep.subr.mxu0 0.0
      %793 = vmatpush2.msra.mxu0 0.0
      %794 = vmatprep.subr.mxu0 0.0
      %795 = vmatpush2.msra.mxu0 0.0
      %796 = vmatprep.subr.mxu0 0.0
      %797 = vmatpush2.msra.mxu0 0.0
      %798 = vmatprep.subr.mxu0 0.0
      %799 = vmatpush2.msra.mxu0 0.0
      %800 = vmatprep.subr.mxu0 0.0
      %801 = vmatpush2.msra.mxu0 0.0
      %802 = vmatprep.subr.mxu0 0.0
      %803 = vmatpush2.msra.mxu0 0.0
      %804 = vmatprep.subr.mxu0 0.0
      %805 = vmatpush2.msra.mxu0 0.0
      %806 = vmatprep.subr.mxu0 0.0
      %807 = vmatpush2.msra.mxu0 0.0
      %808 = vmatprep.subr.mxu0 0.0
      %809 = vmatpush2.msra.mxu0 0.0
      %810 = vmatprep.subr.mxu0 0.0
      %811 = vmatpush2.msra.mxu0 0.0
      %812 = vmatprep.subr.mxu0 0.0
      %813 = vmatpush2.msra.mxu0 0.0
      %814 = vmatprep.mubr.f32.mxu0 0.0
      %815 = vmatmul.mubr.f32.gmra.mxu0 %v742
      %v816 = vpop.f32.mrf.mxu0
      %v817 = vadd.f32 0.0, %v816
      %v818 = vpop.f32.mrf.mxu0
      %v819 = vadd.f32 0.0, %v818
      %820 = vdwg.mxu0
      %v821 = vadd.f32 %v715, %v817
      %v822 = vadd.f32 %v716, %v819
      %823 = vrot.lane.b32.xlu0 %v209, 113
      %v824 = vpop.permute.xlu0 %823
      %825 = vrot.lane.b32.xlu0 %v211, 113
      %v826 = vpop.permute.xlu0 %825
      %vm827 = vcmp.lt.s32.totalorder %v218, 113
      %v828 = vsel %vm827, %v824, %v826
      %v829 = vsel %vm827, %v826, %v824
      %s830 = scalar_lea.vmem %s2, 6
      %v831 = vld [vmem:[%s830] ss:$8 sm:$0x3]
      %v833 = vlaneseq
      %v834 = vshrl.u32 %v833, 7
      %v835 = vsub.s32 0, %v834
      %v836 = vrot.slane %v831, %v835
      %v837 = vlaneseq
      %v838 = vshrl.u32 %v837, 7
      %v839 = vsub.s32 1, %v838
      %v840 = vrot.slane %v831, %v839
      %v843 = vmul.f32 %v828, %v836
      %v844 = vmul.f32 %v829, %v840
      %s845 = scalar_lea.vmem %s1, 48
      %v846 = vld [vmem:[%s845] sm:$0xff]
      %v848 = vsel %vm261, %v846, 0
      %v851 = vsel %vm265, %v843, 0
      %v854 = vsel %vm265, %v844, 0
      %856 = vmatprep.subr.mxu0 0.0
      %857 = vmatpush1.msra.mxu0 0.0
      %858 = vmatprep.subr.mxu0 0.0
      %859 = vmatpush1.msra.mxu0 0.0
      %860 = vmatprep.subr.mxu0 0.0
      %861 = vmatpush1.msra.mxu0 0.0
      %862 = vmatprep.subr.mxu0 0.0
      %863 = vmatpush1.msra.mxu0 0.0
      %864 = vmatprep.subr.mxu0 0.0
      %865 = vmatpush1.msra.mxu0 0.0
      %866 = vmatprep.subr.mxu0 0.0
      %867 = vmatpush1.msra.mxu0 0.0
      %868 = vmatprep.subr.mxu0 0.0
      %869 = vmatpush1.msra.mxu0 0.0
      %870 = vmatprep.subr.mxu0 0.0
      %871 = vmatpush1.msra.mxu0 0.0
      %872 = vmatprep.subr.mxu0 0.0
      %873 = vmatpush1.msra.mxu0 0.0
      %874 = vmatprep.subr.mxu0 0.0
      %875 = vmatpush1.msra.mxu0 0.0
      %876 = vmatprep.subr.mxu0 0.0
      %877 = vmatpush1.msra.mxu0 0.0
      %878 = vmatprep.subr.mxu0 0.0
      %879 = vmatpush1.msra.mxu0 0.0
      %880 = vmatprep.subr.mxu0 0.0
      %881 = vmatpush1.msra.mxu0 0.0
      %882 = vmatprep.subr.mxu0 0.0
      %883 = vmatpush1.msra.mxu0 0.0
      %884 = vmatprep.subr.mxu0 0.0
      %885 = vmatpush1.msra.mxu0 0.0
      %886 = vmatprep.subr.mxu0 %v854
      %887 = vmatpush1.msra.mxu0 %v851
      %888 = vmatprep.subr.mxu0 0.0
      %889 = vmatpush2.msra.mxu0 0.0
      %890 = vmatprep.subr.mxu0 0.0
      %891 = vmatpush2.msra.mxu0 0.0
      %892 = vmatprep.subr.mxu0 0.0
      %893 = vmatpush2.msra.mxu0 0.0
      %894 = vmatprep.subr.mxu0 0.0
      %895 = vmatpush2.msra.mxu0 0.0
      %896 = vmatprep.subr.mxu0 0.0
      %897 = vmatpush2.msra.mxu0 0.0
      %898 = vmatprep.subr.mxu0 0.0
      %899 = vmatpush2.msra.mxu0 0.0
      %900 = vmatprep.subr.mxu0 0.0
      %901 = vmatpush2.msra.mxu0 0.0
      %902 = vmatprep.subr.mxu0 0.0
      %903 = vmatpush2.msra.mxu0 0.0
      %904 = vmatprep.subr.mxu0 0.0
      %905 = vmatpush2.msra.mxu0 0.0
      %906 = vmatprep.subr.mxu0 0.0
      %907 = vmatpush2.msra.mxu0 0.0
      %908 = vmatprep.subr.mxu0 0.0
      %909 = vmatpush2.msra.mxu0 0.0
      %910 = vmatprep.subr.mxu0 0.0
      %911 = vmatpush2.msra.mxu0 0.0
      %912 = vmatprep.subr.mxu0 0.0
      %913 = vmatpush2.msra.mxu0 0.0
      %914 = vmatprep.subr.mxu0 0.0
      %915 = vmatpush2.msra.mxu0 0.0
      %916 = vmatprep.subr.mxu0 0.0
      %917 = vmatpush2.msra.mxu0 0.0
      %918 = vmatprep.subr.mxu0 0.0
      %919 = vmatpush2.msra.mxu0 0.0
      %920 = vmatprep.mubr.f32.mxu0 0.0
      %921 = vmatmul.mubr.f32.gmra.mxu0 %v848
      %v922 = vpop.f32.mrf.mxu0
      %v923 = vadd.f32 0.0, %v922
      %v924 = vpop.f32.mrf.mxu0
      %v925 = vadd.f32 0.0, %v924
      %926 = vdwg.mxu0
      %v927 = vadd.f32 %v821, %v923
      %v928 = vadd.f32 %v822, %v925
      %929 = vrot.lane.b32.xlu0 %v209, 112
      %v930 = vpop.permute.xlu0 %929
      %931 = vrot.lane.b32.xlu0 %v211, 112
      %v932 = vpop.permute.xlu0 %931
      %vm933 = vcmp.lt.s32.totalorder %v218, 112
      %v934 = vsel %vm933, %v930, %v932
      %v935 = vsel %vm933, %v932, %v930
      %s936 = scalar_lea.vmem %s2, 7
      %v937 = vld [vmem:[%s936] ss:$8 sm:$0x3]
      %v939 = vlaneseq
      %v940 = vshrl.u32 %v939, 7
      %v941 = vsub.s32 0, %v940
      %v942 = vrot.slane %v937, %v941
      %v943 = vlaneseq
      %v944 = vshrl.u32 %v943, 7
      %v945 = vsub.s32 1, %v944
      %v946 = vrot.slane %v937, %v945
      %v949 = vmul.f32 %v934, %v942
      %v950 = vmul.f32 %v935, %v946
      %s951 = scalar_lea.vmem %s1, 56
      %v952 = vld [vmem:[%s951] sm:$0xff]
      %v954 = vsel %vm261, %v952, 0
      %v957 = vsel %vm265, %v949, 0
      %v960 = vsel %vm265, %v950, 0
      %962 = vmatprep.subr.mxu0 0.0
      %963 = vmatpush1.msra.mxu0 0.0
      %964 = vmatprep.subr.mxu0 0.0
      %965 = vmatpush1.msra.mxu0 0.0
      %966 = vmatprep.subr.mxu0 0.0
      %967 = vmatpush1.msra.mxu0 0.0
      %968 = vmatprep.subr.mxu0 0.0
      %969 = vmatpush1.msra.mxu0 0.0
      %970 = vmatprep.subr.mxu0 0.0
      %971 = vmatpush1.msra.mxu0 0.0
      %972 = vmatprep.subr.mxu0 0.0
      %973 = vmatpush1.msra.mxu0 0.0
      %974 = vmatprep.subr.mxu0 0.0
      %975 = vmatpush1.msra.mxu0 0.0
      %976 = vmatprep.subr.mxu0 0.0
      %977 = vmatpush1.msra.mxu0 0.0
      %978 = vmatprep.subr.mxu0 0.0
      %979 = vmatpush1.msra.mxu0 0.0
      %980 = vmatprep.subr.mxu0 0.0
      %981 = vmatpush1.msra.mxu0 0.0
      %982 = vmatprep.subr.mxu0 0.0
      %983 = vmatpush1.msra.mxu0 0.0
      %984 = vmatprep.subr.mxu0 0.0
      %985 = vmatpush1.msra.mxu0 0.0
      %986 = vmatprep.subr.mxu0 0.0
      %987 = vmatpush1.msra.mxu0 0.0
      %988 = vmatprep.subr.mxu0 0.0
      %989 = vmatpush1.msra.mxu0 0.0
      %990 = vmatprep.subr.mxu0 0.0
      %991 = vmatpush1.msra.mxu0 0.0
      %992 = vmatprep.subr.mxu0 %v960
      %993 = vmatpush1.msra.mxu0 %v957
      %994 = vmatprep.subr.mxu0 0.0
      %995 = vmatpush2.msra.mxu0 0.0
      %996 = vmatprep.subr.mxu0 0.0
      %997 = vmatpush2.msra.mxu0 0.0
      %998 = vmatprep.subr.mxu0 0.0
      %999 = vmatpush2.msra.mxu0 0.0
      %1000 = vmatprep.subr.mxu0 0.0
      %1001 = vmatpush2.msra.mxu0 0.0
      %1002 = vmatprep.subr.mxu0 0.0
      %1003 = vmatpush2.msra.mxu0 0.0
      %1004 = vmatprep.subr.mxu0 0.0
      %1005 = vmatpush2.msra.mxu0 0.0
      %1006 = vmatprep.subr.mxu0 0.0
      %1007 = vmatpush2.msra.mxu0 0.0
      %1008 = vmatprep.subr.mxu0 0.0
      %1009 = vmatpush2.msra.mxu0 0.0
      %1010 = vmatprep.subr.mxu0 0.0
      %1011 = vmatpush2.msra.mxu0 0.0
      %1012 = vmatprep.subr.mxu0 0.0
      %1013 = vmatpush2.msra.mxu0 0.0
      %1014 = vmatprep.subr.mxu0 0.0
      %1015 = vmatpush2.msra.mxu0 0.0
      %1016 = vmatprep.subr.mxu0 0.0
      %1017 = vmatpush2.msra.mxu0 0.0
      %1018 = vmatprep.subr.mxu0 0.0
      %1019 = vmatpush2.msra.mxu0 0.0
      %1020 = vmatprep.subr.mxu0 0.0
      %1021 = vmatpush2.msra.mxu0 0.0
      %1022 = vmatprep.subr.mxu0 0.0
      %1023 = vmatpush2.msra.mxu0 0.0
      %1024 = vmatprep.subr.mxu0 0.0
      %1025 = vmatpush2.msra.mxu0 0.0
      %1026 = vmatprep.mubr.f32.mxu0 0.0
      %1027 = vmatmul.mubr.f32.gmra.mxu0 %v954
      %v1028 = vpop.f32.mrf.mxu0
      %v1029 = vadd.f32 0.0, %v1028
      %v1030 = vpop.f32.mrf.mxu0
      %v1031 = vadd.f32 0.0, %v1030
      %1032 = vdwg.mxu0
      %v1033 = vadd.f32 %v927, %v1029
      %v1034 = vadd.f32 %v928, %v1031
      %1035 = vrot.lane.b32.xlu0 %v209, 111
      %v1036 = vpop.permute.xlu0 %1035
      %1037 = vrot.lane.b32.xlu0 %v211, 111
      %v1038 = vpop.permute.xlu0 %1037
      %vm1039 = vcmp.lt.s32.totalorder %v218, 111
      %v1040 = vsel %vm1039, %v1036, %v1038
      %v1041 = vsel %vm1039, %v1038, %v1036
      %s1042 = scalar_lea.vmem %s2, 16
      %v1043 = vld [vmem:[%s1042] ss:$8 sm:$0x3]
      %v1045 = vlaneseq
      %v1046 = vshrl.u32 %v1045, 7
      %v1047 = vsub.s32 0, %v1046
      %v1048 = vrot.slane %v1043, %v1047
      %v1049 = vlaneseq
      %v1050 = vshrl.u32 %v1049, 7
      %v1051 = vsub.s32 1, %v1050
      %v1052 = vrot.slane %v1043, %v1051
      %v1055 = vmul.f32 %v1040, %v1048
      %v1056 = vmul.f32 %v1041, %v1052
      %s1057 = scalar_lea.vmem %s1, 64
      %v1058 = vld [vmem:[%s1057] sm:$0xff]
      %v1060 = vsel %vm261, %v1058, 0
      %v1063 = vsel %vm265, %v1055, 0
      %v1066 = vsel %vm265, %v1056, 0
      %1068 = vmatprep.subr.mxu0 0.0
      %1069 = vmatpush1.msra.mxu0 0.0
      %1070 = vmatprep.subr.mxu0 0.0
      %1071 = vmatpush1.msra.mxu0 0.0
      %1072 = vmatprep.subr.mxu0 0.0
      %1073 = vmatpush1.msra.mxu0 0.0
      %1074 = vmatprep.subr.mxu0 0.0
      %1075 = vmatpush1.msra.mxu0 0.0
      %1076 = vmatprep.subr.mxu0 0.0
      %1077 = vmatpush1.msra.mxu0 0.0
      %1078 = vmatprep.subr.mxu0 0.0
      %1079 = vmatpush1.msra.mxu0 0.0
      %1080 = vmatprep.subr.mxu0 0.0
      %1081 = vmatpush1.msra.mxu0 0.0
      %1082 = vmatprep.subr.mxu0 0.0
      %1083 = vmatpush1.msra.mxu0 0.0
      %1084 = vmatprep.subr.mxu0 0.0
      %1085 = vmatpush1.msra.mxu0 0.0
      %1086 = vmatprep.subr.mxu0 0.0
      %1087 = vmatpush1.msra.mxu0 0.0
      %1088 = vmatprep.subr.mxu0 0.0
      %1089 = vmatpush1.msra.mxu0 0.0
      %1090 = vmatprep.subr.mxu0 0.0
      %1091 = vmatpush1.msra.mxu0 0.0
      %1092 = vmatprep.subr.mxu0 0.0
      %1093 = vmatpush1.msra.mxu0 0.0
      %1094 = vmatprep.subr.mxu0 0.0
      %1095 = vmatpush1.msra.mxu0 0.0
      %1096 = vmatprep.subr.mxu0 0.0
      %1097 = vmatpush1.msra.mxu0 0.0
      %1098 = vmatprep.subr.mxu0 %v1066
      %1099 = vmatpush1.msra.mxu0 %v1063
      %1100 = vmatprep.subr.mxu0 0.0
      %1101 = vmatpush2.msra.mxu0 0.0
      %1102 = vmatprep.subr.mxu0 0.0
      %1103 = vmatpush2.msra.mxu0 0.0
      %1104 = vmatprep.subr.mxu0 0.0
      %1105 = vmatpush2.msra.mxu0 0.0
      %1106 = vmatprep.subr.mxu0 0.0
      %1107 = vmatpush2.msra.mxu0 0.0
      %1108 = vmatprep.subr.mxu0 0.0
      %1109 = vmatpush2.msra.mxu0 0.0
      %1110 = vmatprep.subr.mxu0 0.0
      %1111 = vmatpush2.msra.mxu0 0.0
      %1112 = vmatprep.subr.mxu0 0.0
      %1113 = vmatpush2.msra.mxu0 0.0
      %1114 = vmatprep.subr.mxu0 0.0
      %1115 = vmatpush2.msra.mxu0 0.0
      %1116 = vmatprep.subr.mxu0 0.0
      %1117 = vmatpush2.msra.mxu0 0.0
      %1118 = vmatprep.subr.mxu0 0.0
      %1119 = vmatpush2.msra.mxu0 0.0
      %1120 = vmatprep.subr.mxu0 0.0
      %1121 = vmatpush2.msra.mxu0 0.0
      %1122 = vmatprep.subr.mxu0 0.0
      %1123 = vmatpush2.msra.mxu0 0.0
      %1124 = vmatprep.subr.mxu0 0.0
      %1125 = vmatpush2.msra.mxu0 0.0
      %1126 = vmatprep.subr.mxu0 0.0
      %1127 = vmatpush2.msra.mxu0 0.0
      %1128 = vmatprep.subr.mxu0 0.0
      %1129 = vmatpush2.msra.mxu0 0.0
      %1130 = vmatprep.subr.mxu0 0.0
      %1131 = vmatpush2.msra.mxu0 0.0
      %1132 = vmatprep.mubr.f32.mxu0 0.0
      %1133 = vmatmul.mubr.f32.gmra.mxu0 %v1060
      %v1134 = vpop.f32.mrf.mxu0
      %v1135 = vadd.f32 0.0, %v1134
      %v1136 = vpop.f32.mrf.mxu0
      %v1137 = vadd.f32 0.0, %v1136
      %1138 = vdwg.mxu0
      %v1139 = vadd.f32 %v1033, %v1135
      %v1140 = vadd.f32 %v1034, %v1137
      %v1141 = vadd.f32 %v1139, %v1140
      %1142 = vadd.xlane.f32.xlu0 %v1141
      %v1143 = vpop.xlane.xlu0 %1142
      %vm1144 = vcmask 7168
      %1145 = vst.msk [vmem:[%s208] sm:$0xff] %vm1144, %v1143
      %v1146 = vmul.f32 %v1139, %v1139
      %v1147 = vmul.f32 %v1140, %v1140
      %v1148 = vadd.f32 %v1146, %v1147
      %1149 = vadd.xlane.f32.xlu0 %v1148
      %v1150 = vpop.xlane.xlu0 %1149
      %vm1151 = vcmask 15368
      %1152 = vst.msk [vmem:[%s208] sm:$0xff] %vm1151, %v1150
      %1153 = vst [vmem:[%s204] sm:$0xff] %v1139
      %1154 = vst [vmem:[%s204 + $0x8] sm:$0xff] %v1140
      %p1155 = scmp.lt.s32.totalorder %s16, 1
      %s1156 = scalar_select %p1155, %s16, 1
      %s1157 = smul.addr %s1156, 2
      %s1158 = smul.addr %s1157, 8
      %s1159 = scalar_lea.vmem %s3, %s1158
      %p1160 = scmp.lt.s32.totalorder %s16, 1
      %s1161 = scalar_select %p1160, %s16, 1
      %s1162 = smul.addr %s1161, 8
      %s1163 = scalar_lea.vmem %s4, %s1162
      // Predicated region
      $region33: #{down_block_forward.3} parent=31 // pred_check
        %p1164 = pneg %p102
      $region34: #{down_block_forward.3} parent=31 // pred_check_branch
        %1166 = sbr.rel (%p1164) target = $region36
      $region35: #{down_block_forward.3} parent=31 // pred_region
        _
      $region36: #{down_block_forward.3} parent=31 // pred_fallthru
        _
      // Predicated region
      $region37: #{down_block_forward.3} parent=31 // pred_check
        %p1167 = pneg %p128
      $region38: #{down_block_forward.3} parent=31 // pred_check_branch
        %1169 = sbr.rel (%p1167) target = $region40
      $region39: #{down_block_forward.3} parent=31 // pred_region
        _
      $region40: #{down_block_forward.3} parent=31 // pred_fallthru
        _
    $region32: #{down_block_forward.3} parent=5 // pred_fallthru
      _
    %p1170 = scmp.le.s32.totalorder 2, %s11
    // Predicated region
    $region41: #{down_block_forward.3} parent=5 // pred_check
      %p1171 = pneg %p1170
    $region42: #{down_block_forward.3} parent=5 // pred_check_branch
      %1173 = sbr.rel (%p1171) target = $region44
    $region43: #{down_block_forward.3} parent=5 // pred_region
      %s1174 = ssub.s32 %s11, 2
      // Predicated region
      $region45: #{down_block_forward.3} parent=43 // pred_check
        %p1175 = pneg %p108
      $region46: #{down_block_forward.3} parent=43 // pred_check_branch
        %1177 = sbr.rel (%p1175) target = $region48
      $region47: #{down_block_forward.3} parent=43 // pred_region
        %p1178 = scmp.lt.s32.totalorder %s17, 1
        %s1179 = scalar_select %p1178, %s17, 1
        %s1180 = smul.addr %s1179, 2
        %s1181 = smul.addr %s1180, 8
        %s1182 = scalar_lea.vmem %s3, %s1181
      $region48: #{down_block_forward.3} parent=43 // pred_fallthru
        _
      // Predicated region
      $region49: #{down_block_forward.3} parent=43 // pred_check
        %p1183 = pneg %p134
      $region50: #{down_block_forward.3} parent=43 // pred_check_branch
        %1185 = sbr.rel (%p1183) target = $region52
      $region51: #{down_block_forward.3} parent=43 // pred_region
        %p1186 = scmp.lt.s32.totalorder %s17, 1
        %s1187 = scalar_select %p1186, %s17, 1
        %s1188 = smul.addr %s1187, 8
        %s1189 = scalar_lea.vmem %s4, %s1188
      $region52: #{down_block_forward.3} parent=43 // pred_fallthru
        _
    $region44: #{down_block_forward.3} parent=5 // pred_fallthru
      _
  $region6: #{down_block_forward.3} parent=0 // loop_footer
    %s15 = sadd.s32 1, %s11
  $region7: #{down_block_forward.3} parent=0 // loop_footer_branch
    %10 = sbr.rel target = $region3
  $region8: #{down_block_forward.3} parent=0 // loop_exit
    _

</llo_original>
